<compile_context>
chip_gen: v6e
topology: v6e:2x2x1
jax: 0.10.0
libtpu: 0.0.40
codegen_flags: <defaults>
</compile_context>

<pallas_src>
import jax
import jax.numpy as jnp
from jax import lax
from jax.experimental import pallas as pl
from jax.experimental.pallas import tpu as pltpu

# Problem sizes (small, consistent with the module)
N = 2              # batch
C_IN = 3           # channels of v1 (split into [1, 1, 1])
C_OUT = 10         # Conv2d out channels
KH = KW = 5        # Conv2d kernel
H = W = 16         # spatial
OH = H - KH + 1    # 12
OW = W - KW + 1    # 12
HW = H * W         # 256  (= 2 full lane groups -> lane dense)
KK = KH * KW       # 25
# Padded row length so every shifted window [d, d + HW), d <= (KH-1)*W+(KW-1)
# = 68, stays in bounds; rounded up to a multiple of 128 lanes.
PAD_W = 384


def _conv_all_kernel(x_ref, w_ref, b_ref, out_ref, rhs_ref):
    """Single invocation: all 3 conv branches x all batches.

    x_ref:   (N*3, PAD_W)        f32 VMEM  -- zero-padded, spatially flattened rows
    w_ref:   (3, C_OUT, KH*KW)   f32 VMEM  -- per-slice weight matrices
    b_ref:   (C_OUT, 1)          f32 VMEM  -- bias column
    out_ref: (N, 3, C_OUT, H*W)  f32 VMEM  -- lane-dense output slab
    rhs_ref: (KH*KW, H*W)        f32 VMEM scratch -- im2col matrix (rebuilt per (s, n))
    """
    n_batch = x_ref.shape[0] // C_IN            # static
    bias = b_ref[...]                           # (C_OUT, 1), hoisted

    for s in range(C_IN):                       # conv branch / split slice
        w_s = w_ref[s]                          # (C_OUT, KK)
        for n in range(n_batch):                # batch
            r = n * C_IN + s
            row = x_ref[r:r + 1, :]             # (1, PAD_W), loaded once
            # im2col via full-width shifted reads: row k = input shifted by
            # (kh, kw). Output position p = oh*W + ow then reads
            # x[oh+kh, ow+kw]; garbage at invalid p (ow >= OW or oh >= OH)
            # is discarded by the wrapper's final slice.
            for kh in range(KH):
                for kw in range(KW):
                    d = kh * W + kw
                    k = kh * KW + kw
                    rhs_ref[k:k + 1, :] = row[:, d:d + HW]
            # One MXU matmul per (slice, batch): (C_OUT, 25) @ (25, 256).
            acc = jnp.dot(w_s, rhs_ref[...],
                          preferred_element_type=jnp.float32)   # (C_OUT, HW)
            out_ref[n, s] = acc + bias          # lane-dense (C_OUT, 256) store


def model_forward(v1, weight, bias):
    """Replicates Model.forward.

    v1:     (N, 3, H, W)  float32
    weight: (10, 3, 5, 5) float32   (Conv2d weight)
    bias:   (10,)         float32   (Conv2d bias)

    Returns (layer_output (N, 30, OH, OW), (split0, split1, split2)).
    """
    n = v1.shape[0]

    # split + cat along dim=1 is an identity on v1; the re-split slices feed
    # the three conv branches.
    splits = (v1[:, 0:1], v1[:, 1:2], v1[:, 2:3])

    # Tiny one-time layout plumbing (few KiB each) so the kernel sees
    # lane-dense operands:
    #   x: (N,3,H,W) -> (N*3, PAD_W) zero-padded flattened rows
    #   w: (10,3,5,5) -> (3, 10, 25)   (branch s uses weight[:, s])
    #   b: (10,)      -> (10, 1)
    x_rows = v1.reshape(n * C_IN, HW)
    x_pad = jnp.pad(x_rows, ((0, 0), (0, PAD_W - HW)))
    w_mat = jnp.transpose(weight, (1, 0, 2, 3)).reshape(C_IN, C_OUT, KK)
    b_col = bias.reshape(C_OUT, 1)

    out = pl.pallas_call(
        _conv_all_kernel,
        out_shape=jax.ShapeDtypeStruct((n, C_IN, C_OUT, HW), jnp.float32),
        in_specs=[
            pl.BlockSpec(memory_space=pltpu.MemorySpace.VMEM),
            pl.BlockSpec(memory_space=pltpu.MemorySpace.VMEM),
            pl.BlockSpec(memory_space=pltpu.MemorySpace.VMEM),
        ],
        out_specs=pl.BlockSpec(memory_space=pltpu.MemorySpace.VMEM),
        scratch_shapes=[pltpu.VMEM((KK, HW), jnp.float32)],
    )(x_pad, w_mat, b_col)

    # (N, 3, C_OUT, 256) -> keep the valid 12x12 window -> (N, 30, OH, OW).
    y = out.reshape(n, C_IN, C_OUT, H, W)[:, :, :, :OH, :OW]
    layer_output = y.reshape(n, C_IN * C_OUT, OH, OW)
    return layer_output, splits


def _reference(v1, weight, bias):
    """Plain-JAX reference (lax conv) matching the kernel's semantics."""
    outs = []
    for i in range(3):
        x_i = v1[:, i:i + 1]                  # (N, 1, H, W)
        w_i = weight[:, i:i + 1]              # (10, 1, 5, 5)
        y = lax.conv_general_dilated(
            x_i, w_i, window_strides=(1, 1), padding="VALID",
            dimension_numbers=("NCHW", "OIHW", "NCHW"))
        outs.append(y + bias[None, :, None, None])
    return jnp.concatenate(outs, axis=1)


if __name__ == "__main__":
    key = jax.random.PRNGKey(0)
    k_x, k_w, k_b = jax.random.split(key, 3)

    v1 = jax.random.normal(k_x, (N, C_IN, H, W), dtype=jnp.float32)
    weight = jax.random.normal(k_w, (C_OUT, C_IN, KH, KW),
                               dtype=jnp.float32) * 0.1
    bias = jax.random.normal(k_b, (C_OUT,), dtype=jnp.float32) * 0.1

    layer_output, split_tensors = model_forward(v1, weight, bias)
    jax.block_until_ready(layer_output)
    for t in split_tensors:
        jax.block_until_ready(t)

    # Correctness check against plain-JAX reference.
    ref = _reference(v1, weight, bias)
    assert layer_output.shape == (N, 3 * C_OUT, OH, OW)
    assert jnp.allclose(layer_output, ref, atol=1e-4, rtol=1e-4)
    assert all(split_tensors[i].shape == (N, 1, H, W) for i in range(3))
    assert jnp.allclose(jnp.concatenate(split_tensors, axis=1), v1)

    print("KERNEL_OK")
</pallas_src>

<mosaic_0001>
module attributes {stable_mosaic.version = 11 : i64} {
  func.func @_conv_all_kernel(%arg0: memref<6x384xf32, #tpu.memory_space<vmem>>, %arg1: memref<3x10x25xf32, #tpu.memory_space<vmem>>, %arg2: memref<10x1xf32, #tpu.memory_space<vmem>>, %arg3: memref<2x3x10x256xf32, #tpu.memory_space<vmem>>, %arg4: memref<25x256xf32, #tpu.memory_space<vmem>>) attributes {dimension_semantics = [], scalar_prefetch = 0 : i64, scratch_operands = 1 : i64, tpu.core_type = #tpu.core_type<tc>} {
    %c0 = arith.constant 0 : index
    %c0_0 = arith.constant 0 : index
    %0 = vector.load %arg2[%c0, %c0_0] : memref<10x1xf32, #tpu.memory_space<vmem>>, vector<10x1xf32>
    %c0_1 = arith.constant 0 : index
    %c0_2 = arith.constant 0 : index
    %c0_3 = arith.constant 0 : index
    %1 = vector.load %arg1[%c0_1, %c0_2, %c0_3] : memref<3x10x25xf32, #tpu.memory_space<vmem>>, vector<1x10x25xf32>
    %2 = vector.shape_cast %1 : vector<1x10x25xf32> to vector<10x25xf32>
    %c0_4 = arith.constant 0 : index
    %c0_5 = arith.constant 0 : index
    %3 = vector.load %arg0[%c0_4, %c0_5] : memref<6x384xf32, #tpu.memory_space<vmem>>, vector<1x384xf32>
    %4 = vector.extract_strided_slice %3 {offsets = [0, 0], sizes = [1, 256], strides = [1, 1]} : vector<1x384xf32> to vector<1x256xf32>
    %c0_6 = arith.constant 0 : index
    %c0_7 = arith.constant 0 : index
    %5 = vector.load %arg4[%c0_6, %c0_7] : memref<25x256xf32, #tpu.memory_space<vmem>>, vector<1x256xf32>
    tpu.vector_store %arg4[%c0_6, %c0_7], %4 {strides = array<i32>} : memref<25x256xf32, #tpu.memory_space<vmem>>, vector<1x256xf32>,
    %6 = vector.extract_strided_slice %3 {offsets = [0, 1], sizes = [1, 256], strides = [1, 1]} : vector<1x384xf32> to vector<1x256xf32>
    %c1 = arith.constant 1 : index
    %c0_8 = arith.constant 0 : index
    %7 = vector.load %arg4[%c1, %c0_8] : memref<25x256xf32, #tpu.memory_space<vmem>>, vector<1x256xf32>
    tpu.vector_store %arg4[%c1, %c0_8], %6 {strides = array<i32>} : memref<25x256xf32, #tpu.memory_space<vmem>>, vector<1x256xf32>,
    %8 = vector.extract_strided_slice %3 {offsets = [0, 2], sizes = [1, 256], strides = [1, 1]} : vector<1x384xf32> to vector<1x256xf32>
    %c2 = arith.constant 2 : index
    %c0_9 = arith.constant 0 : index
    %9 = vector.load %arg4[%c2, %c0_9] : memref<25x256xf32, #tpu.memory_space<vmem>>, vector<1x256xf32>
    tpu.vector_store %arg4[%c2, %c0_9], %8 {strides = array<i32>} : memref<25x256xf32, #tpu.memory_space<vmem>>, vector<1x256xf32>,
    %10 = vector.extract_strided_slice %3 {offsets = [0, 3], sizes = [1, 256], strides = [1, 1]} : vector<1x384xf32> to vector<1x256xf32>
    %c3 = arith.constant 3 : index
    %c0_10 = arith.constant 0 : index
    %11 = vector.load %arg4[%c3, %c0_10] : memref<25x256xf32, #tpu.memory_space<vmem>>, vector<1x256xf32>
    tpu.vector_store %arg4[%c3, %c0_10], %10 {strides = array<i32>} : memref<25x256xf32, #tpu.memory_space<vmem>>, vector<1x256xf32>,
    %12 = vector.extract_strided_slice %3 {offsets = [0, 4], sizes = [1, 256], strides = [1, 1]} : vector<1x384xf32> to vector<1x256xf32>
    %c4 = arith.constant 4 : index
    %c0_11 = arith.constant 0 : index
    %13 = vector.load %arg4[%c4, %c0_11] : memref<25x256xf32, #tpu.memory_space<vmem>>, vector<1x256xf32>
    tpu.vector_store %arg4[%c4, %c0_11], %12 {strides = array<i32>} : memref<25x256xf32, #tpu.memory_space<vmem>>, vector<1x256xf32>,
    %14 = vector.extract_strided_slice %3 {offsets = [0, 16], sizes = [1, 256], strides = [1, 1]} : vector<1x384xf32> to vector<1x256xf32>
    %c5 = arith.constant 5 : index
    %c0_12 = arith.constant 0 : index
    %15 = vector.load %arg4[%c5, %c0_12] : memref<25x256xf32, #tpu.memory_space<vmem>>, vector<1x256xf32>
    tpu.vector_store %arg4[%c5, %c0_12], %14 {strides = array<i32>} : memref<25x256xf32, #tpu.memory_space<vmem>>, vector<1x256xf32>,
    %16 = vector.extract_strided_slice %3 {offsets = [0, 17], sizes = [1, 256], strides = [1, 1]} : vector<1x384xf32> to vector<1x256xf32>
    %c6 = arith.constant 6 : index
    %c0_13 = arith.constant 0 : index
    %17 = vector.load %arg4[%c6, %c0_13] : memref<25x256xf32, #tpu.memory_space<vmem>>, vector<1x256xf32>
    tpu.vector_store %arg4[%c6, %c0_13], %16 {strides = array<i32>} : memref<25x256xf32, #tpu.memory_space<vmem>>, vector<1x256xf32>,
    %18 = vector.extract_strided_slice %3 {offsets = [0, 18], sizes = [1, 256], strides = [1, 1]} : vector<1x384xf32> to vector<1x256xf32>
    %c7 = arith.constant 7 : index
    %c0_14 = arith.constant 0 : index
    %19 = vector.load %arg4[%c7, %c0_14] : memref<25x256xf32, #tpu.memory_space<vmem>>, vector<1x256xf32>
    tpu.vector_store %arg4[%c7, %c0_14], %18 {strides = array<i32>} : memref<25x256xf32, #tpu.memory_space<vmem>>, vector<1x256xf32>,
    %20 = vector.extract_strided_slice %3 {offsets = [0, 19], sizes = [1, 256], strides = [1, 1]} : vector<1x384xf32> to vector<1x256xf32>
    %c8 = arith.constant 8 : index
    %c0_15 = arith.constant 0 : index
    %21 = vector.load %arg4[%c8, %c0_15] : memref<25x256xf32, #tpu.memory_space<vmem>>, vector<1x256xf32>
    tpu.vector_store %arg4[%c8, %c0_15], %20 {strides = array<i32>} : memref<25x256xf32, #tpu.memory_space<vmem>>, vector<1x256xf32>,
    %22 = vector.extract_strided_slice %3 {offsets = [0, 20], sizes = [1, 256], strides = [1, 1]} : vector<1x384xf32> to vector<1x256xf32>
    %c9 = arith.constant 9 : index
    %c0_16 = arith.constant 0 : index
    %23 = vector.load %arg4[%c9, %c0_16] : memref<25x256xf32, #tpu.memory_space<vmem>>, vector<1x256xf32>
    tpu.vector_store %arg4[%c9, %c0_16], %22 {strides = array<i32>} : memref<25x256xf32, #tpu.memory_space<vmem>>, vector<1x256xf32>,
    %24 = vector.extract_strided_slice %3 {offsets = [0, 32], sizes = [1, 256], strides = [1, 1]} : vector<1x384xf32> to vector<1x256xf32>
    %c10 = arith.constant 10 : index
    %c0_17 = arith.constant 0 : index
    %25 = vector.load %arg4[%c10, %c0_17] : memref<25x256xf32, #tpu.memory_space<vmem>>, vector<1x256xf32>
    tpu.vector_store %arg4[%c10, %c0_17], %24 {strides = array<i32>} : memref<25x256xf32, #tpu.memory_space<vmem>>, vector<1x256xf32>,
    %26 = vector.extract_strided_slice %3 {offsets = [0, 33], sizes = [1, 256], strides = [1, 1]} : vector<1x384xf32> to vector<1x256xf32>
    %c11 = arith.constant 11 : index
    %c0_18 = arith.constant 0 : index
    %27 = vector.load %arg4[%c11, %c0_18] : memref<25x256xf32, #tpu.memory_space<vmem>>, vector<1x256xf32>
    tpu.vector_store %arg4[%c11, %c0_18], %26 {strides = array<i32>} : memref<25x256xf32, #tpu.memory_space<vmem>>, vector<1x256xf32>,
    %28 = vector.extract_strided_slice %3 {offsets = [0, 34], sizes = [1, 256], strides = [1, 1]} : vector<1x384xf32> to vector<1x256xf32>
    %c12 = arith.constant 12 : index
    %c0_19 = arith.constant 0 : index
    %29 = vector.load %arg4[%c12, %c0_19] : memref<25x256xf32, #tpu.memory_space<vmem>>, vector<1x256xf32>
    tpu.vector_store %arg4[%c12, %c0_19], %28 {strides = array<i32>} : memref<25x256xf32, #tpu.memory_space<vmem>>, vector<1x256xf32>,
    %30 = vector.extract_strided_slice %3 {offsets = [0, 35], sizes = [1, 256], strides = [1, 1]} : vector<1x384xf32> to vector<1x256xf32>
    %c13 = arith.constant 13 : index
    %c0_20 = arith.constant 0 : index
    %31 = vector.load %arg4[%c13, %c0_20] : memref<25x256xf32, #tpu.memory_space<vmem>>, vector<1x256xf32>
    tpu.vector_store %arg4[%c13, %c0_20], %30 {strides = array<i32>} : memref<25x256xf32, #tpu.memory_space<vmem>>, vector<1x256xf32>,
    %32 = vector.extract_strided_slice %3 {offsets = [0, 36], sizes = [1, 256], strides = [1, 1]} : vector<1x384xf32> to vector<1x256xf32>
    %c14 = arith.constant 14 : index
    %c0_21 = arith.constant 0 : index
    %33 = vector.load %arg4[%c14, %c0_21] : memref<25x256xf32, #tpu.memory_space<vmem>>, vector<1x256xf32>
    tpu.vector_store %arg4[%c14, %c0_21], %32 {strides = array<i32>} : memref<25x256xf32, #tpu.memory_space<vmem>>, vector<1x256xf32>,
    %34 = vector.extract_strided_slice %3 {offsets = [0, 48], sizes = [1, 256], strides = [1, 1]} : vector<1x384xf32> to vector<1x256xf32>
    %c15 = arith.constant 15 : index
    %c0_22 = arith.constant 0 : index
    %35 = vector.load %arg4[%c15, %c0_22] : memref<25x256xf32, #tpu.memory_space<vmem>>, vector<1x256xf32>
    tpu.vector_store %arg4[%c15, %c0_22], %34 {strides = array<i32>} : memref<25x256xf32, #tpu.memory_space<vmem>>, vector<1x256xf32>,
    %36 = vector.extract_strided_slice %3 {offsets = [0, 49], sizes = [1, 256], strides = [1, 1]} : vector<1x384xf32> to vector<1x256xf32>
    %c16 = arith.constant 16 : index
    %c0_23 = arith.constant 0 : index
    %37 = vector.load %arg4[%c16, %c0_23] : memref<25x256xf32, #tpu.memory_space<vmem>>, vector<1x256xf32>
    tpu.vector_store %arg4[%c16, %c0_23], %36 {strides = array<i32>} : memref<25x256xf32, #tpu.memory_space<vmem>>, vector<1x256xf32>,
    %38 = vector.extract_strided_slice %3 {offsets = [0, 50], sizes = [1, 256], strides = [1, 1]} : vector<1x384xf32> to vector<1x256xf32>
    %c17 = arith.constant 17 : index
    %c0_24 = arith.constant 0 : index
    %39 = vector.load %arg4[%c17, %c0_24] : memref<25x256xf32, #tpu.memory_space<vmem>>, vector<1x256xf32>
    tpu.vector_store %arg4[%c17, %c0_24], %38 {strides = array<i32>} : memref<25x256xf32, #tpu.memory_space<vmem>>, vector<1x256xf32>,
    %40 = vector.extract_strided_slice %3 {offsets = [0, 51], sizes = [1, 256], strides = [1, 1]} : vector<1x384xf32> to vector<1x256xf32>
    %c18 = arith.constant 18 : index
    %c0_25 = arith.constant 0 : index
    %41 = vector.load %arg4[%c18, %c0_25] : memref<25x256xf32, #tpu.memory_space<vmem>>, vector<1x256xf32>
    tpu.vector_store %arg4[%c18, %c0_25], %40 {strides = array<i32>} : memref<25x256xf32, #tpu.memory_space<vmem>>, vector<1x256xf32>,
    %42 = vector.extract_strided_slice %3 {offsets = [0, 52], sizes = [1, 256], strides = [1, 1]} : vector<1x384xf32> to vector<1x256xf32>
    %c19 = arith.constant 19 : index
    %c0_26 = arith.constant 0 : index
    %43 = vector.load %arg4[%c19, %c0_26] : memref<25x256xf32, #tpu.memory_space<vmem>>, vector<1x256xf32>
    tpu.vector_store %arg4[%c19, %c0_26], %42 {strides = array<i32>} : memref<25x256xf32, #tpu.memory_space<vmem>>, vector<1x256xf32>,
    %44 = vector.extract_strided_slice %3 {offsets = [0, 64], sizes = [1, 256], strides = [1, 1]} : vector<1x384xf32> to vector<1x256xf32>
    %c20 = arith.constant 20 : index
    %c0_27 = arith.constant 0 : index
    %45 = vector.load %arg4[%c20, %c0_27] : memref<25x256xf32, #tpu.memory_space<vmem>>, vector<1x256xf32>
    tpu.vector_store %arg4[%c20, %c0_27], %44 {strides = array<i32>} : memref<25x256xf32, #tpu.memory_space<vmem>>, vector<1x256xf32>,
    %46 = vector.extract_strided_slice %3 {offsets = [0, 65], sizes = [1, 256], strides = [1, 1]} : vector<1x384xf32> to vector<1x256xf32>
    %c21 = arith.constant 21 : index
    %c0_28 = arith.constant 0 : index
    %47 = vector.load %arg4[%c21, %c0_28] : memref<25x256xf32, #tpu.memory_space<vmem>>, vector<1x256xf32>
    tpu.vector_store %arg4[%c21, %c0_28], %46 {strides = array<i32>} : memref<25x256xf32, #tpu.memory_space<vmem>>, vector<1x256xf32>,
    %48 = vector.extract_strided_slice %3 {offsets = [0, 66], sizes = [1, 256], strides = [1, 1]} : vector<1x384xf32> to vector<1x256xf32>
    %c22 = arith.constant 22 : index
    %c0_29 = arith.constant 0 : index
    %49 = vector.load %arg4[%c22, %c0_29] : memref<25x256xf32, #tpu.memory_space<vmem>>, vector<1x256xf32>
    tpu.vector_store %arg4[%c22, %c0_29], %48 {strides = array<i32>} : memref<25x256xf32, #tpu.memory_space<vmem>>, vector<1x256xf32>,
    %50 = vector.extract_strided_slice %3 {offsets = [0, 67], sizes = [1, 256], strides = [1, 1]} : vector<1x384xf32> to vector<1x256xf32>
    %c23 = arith.constant 23 : index
    %c0_30 = arith.constant 0 : index
    %51 = vector.load %arg4[%c23, %c0_30] : memref<25x256xf32, #tpu.memory_space<vmem>>, vector<1x256xf32>
    tpu.vector_store %arg4[%c23, %c0_30], %50 {strides = array<i32>} : memref<25x256xf32, #tpu.memory_space<vmem>>, vector<1x256xf32>,
    %52 = vector.extract_strided_slice %3 {offsets = [0, 68], sizes = [1, 256], strides = [1, 1]} : vector<1x384xf32> to vector<1x256xf32>
    %c24 = arith.constant 24 : index
    %c0_31 = arith.constant 0 : index
    %53 = vector.load %arg4[%c24, %c0_31] : memref<25x256xf32, #tpu.memory_space<vmem>>, vector<1x256xf32>
    tpu.vector_store %arg4[%c24, %c0_31], %52 {strides = array<i32>} : memref<25x256xf32, #tpu.memory_space<vmem>>, vector<1x256xf32>,
    %c0_32 = arith.constant 0 : index
    %c0_33 = arith.constant 0 : index
    %54 = vector.load %arg4[%c0_32, %c0_33] : memref<25x256xf32, #tpu.memory_space<vmem>>, vector<25x256xf32>
    %cst = arith.constant dense<0.000000e+00> : vector<10x256xf32>
    %55 = tpu.matmul %2, %54, %cst {dimension_numbers = #tpu.dot_dimension_numbers<[1], [0], [0], [1], [0, 0, 1, 1], [], []>} : vector<10x25xf32>, vector<25x256xf32>, vector<10x256xf32> -> vector<10x256xf32>
    %56 = vector.broadcast %0 : vector<10x1xf32> to vector<10x256xf32>
    %57 = arith.addf %55, %56 : vector<10x256xf32>
    %c0_34 = arith.constant 0 : index
    %c0_35 = arith.constant 0 : index
    %c0_36 = arith.constant 0 : index
    %c0_37 = arith.constant 0 : index
    %58 = vector.load %arg3[%c0_34, %c0_35, %c0_36, %c0_37] : memref<2x3x10x256xf32, #tpu.memory_space<vmem>>, vector<1x1x10x256xf32>
    %59 = vector.shape_cast %58 : vector<1x1x10x256xf32> to vector<10x256xf32>
    %60 = vector.shape_cast %57 : vector<10x256xf32> to vector<1x1x10x256xf32>
    tpu.vector_store %arg3[%c0_34, %c0_35, %c0_36, %c0_37], %60 {strides = array<i32>} : memref<2x3x10x256xf32, #tpu.memory_space<vmem>>, vector<1x1x10x256xf32>,
    %c3_38 = arith.constant 3 : index
    %c0_39 = arith.constant 0 : index
    %61 = vector.load %arg0[%c3_38, %c0_39] : memref<6x384xf32, #tpu.memory_space<vmem>>, vector<1x384xf32>
    %62 = vector.extract_strided_slice %61 {offsets = [0, 0], sizes = [1, 256], strides = [1, 1]} : vector<1x384xf32> to vector<1x256xf32>
    %c0_40 = arith.constant 0 : index
    %c0_41 = arith.constant 0 : index
    %63 = vector.load %arg4[%c0_40, %c0_41] : memref<25x256xf32, #tpu.memory_space<vmem>>, vector<1x256xf32>
    tpu.vector_store %arg4[%c0_40, %c0_41], %62 {strides = array<i32>} : memref<25x256xf32, #tpu.memory_space<vmem>>, vector<1x256xf32>,
    %64 = vector.extract_strided_slice %61 {offsets = [0, 1], sizes = [1, 256], strides = [1, 1]} : vector<1x384xf32> to vector<1x256xf32>
    %c1_42 = arith.constant 1 : index
    %c0_43 = arith.constant 0 : index
    %65 = vector.load %arg4[%c1_42, %c0_43] : memref<25x256xf32, #tpu.memory_space<vmem>>, vector<1x256xf32>
    tpu.vector_store %arg4[%c1_42, %c0_43], %64 {strides = array<i32>} : memref<25x256xf32, #tpu.memory_space<vmem>>, vector<1x256xf32>,
    %66 = vector.extract_strided_slice %61 {offsets = [0, 2], sizes = [1, 256], strides = [1, 1]} : vector<1x384xf32> to vector<1x256xf32>
    %c2_44 = arith.constant 2 : index
    %c0_45 = arith.constant 0 : index
    %67 = vector.load %arg4[%c2_44, %c0_45] : memref<25x256xf32, #tpu.memory_space<vmem>>, vector<1x256xf32>
    tpu.vector_store %arg4[%c2_44, %c0_45], %66 {strides = array<i32>} : memref<25x256xf32, #tpu.memory_space<vmem>>, vector<1x256xf32>,
    %68 = vector.extract_strided_slice %61 {offsets = [0, 3], sizes = [1, 256], strides = [1, 1]} : vector<1x384xf32> to vector<1x256xf32>
    %c3_46 = arith.constant 3 : index
    %c0_47 = arith.constant 0 : index
    %69 = vector.load %arg4[%c3_46, %c0_47] : memref<25x256xf32, #tpu.memory_space<vmem>>, vector<1x256xf32>
    tpu.vector_store %arg4[%c3_46, %c0_47], %68 {strides = array<i32>} : memref<25x256xf32, #tpu.memory_space<vmem>>, vector<1x256xf32>,
    %70 = vector.extract_strided_slice %61 {offsets = [0, 4], sizes = [1, 256], strides = [1, 1]} : vector<1x384xf32> to vector<1x256xf32>
    %c4_48 = arith.constant 4 : index
    %c0_49 = arith.constant 0 : index
    %71 = vector.load %arg4[%c4_48, %c0_49] : memref<25x256xf32, #tpu.memory_space<vmem>>, vector<1x256xf32>
    tpu.vector_store %arg4[%c4_48, %c0_49], %70 {strides = array<i32>} : memref<25x256xf32, #tpu.memory_space<vmem>>, vector<1x256xf32>,
    %72 = vector.extract_strided_slice %61 {offsets = [0, 16], sizes = [1, 256], strides = [1, 1]} : vector<1x384xf32> to vector<1x256xf32>
    %c5_50 = arith.constant 5 : index
    %c0_51 = arith.constant 0 : index
    %73 = vector.load %arg4[%c5_50, %c0_51] : memref<25x256xf32, #tpu.memory_space<vmem>>, vector<1x256xf32>
    tpu.vector_store %arg4[%c5_50, %c0_51], %72 {strides = array<i32>} : memref<25x256xf32, #tpu.memory_space<vmem>>, vector<1x256xf32>,
    %74 = vector.extract_strided_slice %61 {offsets = [0, 17], sizes = [1, 256], strides = [1, 1]} : vector<1x384xf32> to vector<1x256xf32>
    %c6_52 = arith.constant 6 : index
    %c0_53 = arith.constant 0 : index
    %75 = vector.load %arg4[%c6_52, %c0_53] : memref<25x256xf32, #tpu.memory_space<vmem>>, vector<1x256xf32>
    tpu.vector_store %arg4[%c6_52, %c0_53], %74 {strides = array<i32>} : memref<25x256xf32, #tpu.memory_space<vmem>>, vector<1x256xf32>,
    %76 = vector.extract_strided_slice %61 {offsets = [0, 18], sizes = [1, 256], strides = [1, 1]} : vector<1x384xf32> to vector<1x256xf32>
    %c7_54 = arith.constant 7 : index
    %c0_55 = arith.constant 0 : index
    %77 = vector.load %arg4[%c7_54, %c0_55] : memref<25x256xf32, #tpu.memory_space<vmem>>, vector<1x256xf32>
    tpu.vector_store %arg4[%c7_54, %c0_55], %76 {strides = array<i32>} : memref<25x256xf32, #tpu.memory_space<vmem>>, vector<1x256xf32>,
    %78 = vector.extract_strided_slice %61 {offsets = [0, 19], sizes = [1, 256], strides = [1, 1]} : vector<1x384xf32> to vector<1x256xf32>
    %c8_56 = arith.constant 8 : index
    %c0_57 = arith.constant 0 : index
    %79 = vector.load %arg4[%c8_56, %c0_57] : memref<25x256xf32, #tpu.memory_space<vmem>>, vector<1x256xf32>
    tpu.vector_store %arg4[%c8_56, %c0_57], %78 {strides = array<i32>} : memref<25x256xf32, #tpu.memory_space<vmem>>, vector<1x256xf32>,
    %80 = vector.extract_strided_slice %61 {offsets = [0, 20], sizes = [1, 256], strides = [1, 1]} : vector<1x384xf32> to vector<1x256xf32>
    %c9_58 = arith.constant 9 : index
    %c0_59 = arith.constant 0 : index
    %81 = vector.load %arg4[%c9_58, %c0_59] : memref<25x256xf32, #tpu.memory_space<vmem>>, vector<1x256xf32>
    tpu.vector_store %arg4[%c9_58, %c0_59], %80 {strides = array<i32>} : memref<25x256xf32, #tpu.memory_space<vmem>>, vector<1x256xf32>,
    %82 = vector.extract_strided_slice %61 {offsets = [0, 32], sizes = [1, 256], strides = [1, 1]} : vector<1x384xf32> to vector<1x256xf32>
    %c10_60 = arith.constant 10 : index
    %c0_61 = arith.constant 0 : index
    %83 = vector.load %arg4[%c10_60, %c0_61] : memref<25x256xf32, #tpu.memory_space<vmem>>, vector<1x256xf32>
    tpu.vector_store %arg4[%c10_60, %c0_61], %82 {strides = array<i32>} : memref<25x256xf32, #tpu.memory_space<vmem>>, vector<1x256xf32>,
    %84 = vector.extract_strided_slice %61 {offsets = [0, 33], sizes = [1, 256], strides = [1, 1]} : vector<1x384xf32> to vector<1x256xf32>
    %c11_62 = arith.constant 11 : index
    %c0_63 = arith.constant 0 : index
    %85 = vector.load %arg4[%c11_62, %c0_63] : memref<25x256xf32, #tpu.memory_space<vmem>>, vector<1x256xf32>
    tpu.vector_store %arg4[%c11_62, %c0_63], %84 {strides = array<i32>} : memref<25x256xf32, #tpu.memory_space<vmem>>, vector<1x256xf32>,
    %86 = vector.extract_strided_slice %61 {offsets = [0, 34], sizes = [1, 256], strides = [1, 1]} : vector<1x384xf32> to vector<1x256xf32>
    %c12_64 = arith.constant 12 : index
    %c0_65 = arith.constant 0 : index
    %87 = vector.load %arg4[%c12_64, %c0_65] : memref<25x256xf32, #tpu.memory_space<vmem>>, vector<1x256xf32>
    tpu.vector_store %arg4[%c12_64, %c0_65], %86 {strides = array<i32>} : memref<25x256xf32, #tpu.memory_space<vmem>>, vector<1x256xf32>,
    %88 = vector.extract_strided_slice %61 {offsets = [0, 35], sizes = [1, 256], strides = [1, 1]} : vector<1x384xf32> to vector<1x256xf32>
    %c13_66 = arith.constant 13 : index
    %c0_67 = arith.constant 0 : index
    %89 = vector.load %arg4[%c13_66, %c0_67] : memref<25x256xf32, #tpu.memory_space<vmem>>, vector<1x256xf32>
    tpu.vector_store %arg4[%c13_66, %c0_67], %88 {strides = array<i32>} : memref<25x256xf32, #tpu.memory_space<vmem>>, vector<1x256xf32>,
    %90 = vector.extract_strided_slice %61 {offsets = [0, 36], sizes = [1, 256], strides = [1, 1]} : vector<1x384xf32> to vector<1x256xf32>
    %c14_68 = arith.constant 14 : index
    %c0_69 = arith.constant 0 : index
    %91 = vector.load %arg4[%c14_68, %c0_69] : memref<25x256xf32, #tpu.memory_space<vmem>>, vector<1x256xf32>
    tpu.vector_store %arg4[%c14_68, %c0_69], %90 {strides = array<i32>} : memref<25x256xf32, #tpu.memory_space<vmem>>, vector<1x256xf32>,
    %92 = vector.extract_strided_slice %61 {offsets = [0, 48], sizes = [1, 256], strides = [1, 1]} : vector<1x384xf32> to vector<1x256xf32>
    %c15_70 = arith.constant 15 : index
    %c0_71 = arith.constant 0 : index
    %93 = vector.load %arg4[%c15_70, %c0_71] : memref<25x256xf32, #tpu.memory_space<vmem>>, vector<1x256xf32>
    tpu.vector_store %arg4[%c15_70, %c0_71], %92 {strides = array<i32>} : memref<25x256xf32, #tpu.memory_space<vmem>>, vector<1x256xf32>,
    %94 = vector.extract_strided_slice %61 {offsets = [0, 49], sizes = [1, 256], strides = [1, 1]} : vector<1x384xf32> to vector<1x256xf32>
    %c16_72 = arith.constant 16 : index
    %c0_73 = arith.constant 0 : index
    %95 = vector.load %arg4[%c16_72, %c0_73] : memref<25x256xf32, #tpu.memory_space<vmem>>, vector<1x256xf32>
    tpu.vector_store %arg4[%c16_72, %c0_73], %94 {strides = array<i32>} : memref<25x256xf32, #tpu.memory_space<vmem>>, vector<1x256xf32>,
    %96 = vector.extract_strided_slice %61 {offsets = [0, 50], sizes = [1, 256], strides = [1, 1]} : vector<1x384xf32> to vector<1x256xf32>
    %c17_74 = arith.constant 17 : index
    %c0_75 = arith.constant 0 : index
    %97 = vector.load %arg4[%c17_74, %c0_75] : memref<25x256xf32, #tpu.memory_space<vmem>>, vector<1x256xf32>
    tpu.vector_store %arg4[%c17_74, %c0_75], %96 {strides = array<i32>} : memref<25x256xf32, #tpu.memory_space<vmem>>, vector<1x256xf32>,
    %98 = vector.extract_strided_slice %61 {offsets = [0, 51], sizes = [1, 256], strides = [1, 1]} : vector<1x384xf32> to vector<1x256xf32>
    %c18_76 = arith.constant 18 : index
    %c0_77 = arith.constant 0 : index
    %99 = vector.load %arg4[%c18_76, %c0_77] : memref<25x256xf32, #tpu.memory_space<vmem>>, vector<1x256xf32>
    tpu.vector_store %arg4[%c18_76, %c0_77], %98 {strides = array<i32>} : memref<25x256xf32, #tpu.memory_space<vmem>>, vector<1x256xf32>,
    %100 = vector.extract_strided_slice %61 {offsets = [0, 52], sizes = [1, 256], strides = [1, 1]} : vector<1x384xf32> to vector<1x256xf32>
    %c19_78 = arith.constant 19 : index
    %c0_79 = arith.constant 0 : index
    %101 = vector.load %arg4[%c19_78, %c0_79] : memref<25x256xf32, #tpu.memory_space<vmem>>, vector<1x256xf32>
    tpu.vector_store %arg4[%c19_78, %c0_79], %100 {strides = array<i32>} : memref<25x256xf32, #tpu.memory_space<vmem>>, vector<1x256xf32>,
    %102 = vector.extract_strided_slice %61 {offsets = [0, 64], sizes = [1, 256], strides = [1, 1]} : vector<1x384xf32> to vector<1x256xf32>
    %c20_80 = arith.constant 20 : index
    %c0_81 = arith.constant 0 : index
    %103 = vector.load %arg4[%c20_80, %c0_81] : memref<25x256xf32, #tpu.memory_space<vmem>>, vector<1x256xf32>
    tpu.vector_store %arg4[%c20_80, %c0_81], %102 {strides = array<i32>} : memref<25x256xf32, #tpu.memory_space<vmem>>, vector<1x256xf32>,
    %104 = vector.extract_strided_slice %61 {offsets = [0, 65], sizes = [1, 256], strides = [1, 1]} : vector<1x384xf32> to vector<1x256xf32>
    %c21_82 = arith.constant 21 : index
    %c0_83 = arith.constant 0 : index
    %105 = vector.load %arg4[%c21_82, %c0_83] : memref<25x256xf32, #tpu.memory_space<vmem>>, vector<1x256xf32>
    tpu.vector_store %arg4[%c21_82, %c0_83], %104 {strides = array<i32>} : memref<25x256xf32, #tpu.memory_space<vmem>>, vector<1x256xf32>,
    %106 = vector.extract_strided_slice %61 {offsets = [0, 66], sizes = [1, 256], strides = [1, 1]} : vector<1x384xf32> to vector<1x256xf32>
    %c22_84 = arith.constant 22 : index
    %c0_85 = arith.constant 0 : index
    %107 = vector.load %arg4[%c22_84, %c0_85] : memref<25x256xf32, #tpu.memory_space<vmem>>, vector<1x256xf32>
    tpu.vector_store %arg4[%c22_84, %c0_85], %106 {strides = array<i32>} : memref<25x256xf32, #tpu.memory_space<vmem>>, vector<1x256xf32>,
    %108 = vector.extract_strided_slice %61 {offsets = [0, 67], sizes = [1, 256], strides = [1, 1]} : vector<1x384xf32> to vector<1x256xf32>
    %c23_86 = arith.constant 23 : index
    %c0_87 = arith.constant 0 : index
    %109 = vector.load %arg4[%c23_86, %c0_87] : memref<25x256xf32, #tpu.memory_space<vmem>>, vector<1x256xf32>
    tpu.vector_store %arg4[%c23_86, %c0_87], %108 {strides = array<i32>} : memref<25x256xf32, #tpu.memory_space<vmem>>, vector<1x256xf32>,
    %110 = vector.extract_strided_slice %61 {offsets = [0, 68], sizes = [1, 256], strides = [1, 1]} : vector<1x384xf32> to vector<1x256xf32>
    %c24_88 = arith.constant 24 : index
    %c0_89 = arith.constant 0 : index
    %111 = vector.load %arg4[%c24_88, %c0_89] : memref<25x256xf32, #tpu.memory_space<vmem>>, vector<1x256xf32>
    tpu.vector_store %arg4[%c24_88, %c0_89], %110 {strides = array<i32>} : memref<25x256xf32, #tpu.memory_space<vmem>>, vector<1x256xf32>,
    %c0_90 = arith.constant 0 : index
    %c0_91 = arith.constant 0 : index
    %112 = vector.load %arg4[%c0_90, %c0_91] : memref<25x256xf32, #tpu.memory_space<vmem>>, vector<25x256xf32>
    %cst_92 = arith.constant dense<0.000000e+00> : vector<10x256xf32>
    %113 = tpu.matmul %2, %112, %cst_92 {dimension_numbers = #tpu.dot_dimension_numbers<[1], [0], [0], [1], [0, 0, 1, 1], [], []>} : vector<10x25xf32>, vector<25x256xf32>, vector<10x256xf32> -> vector<10x256xf32>
    %114 = vector.broadcast %0 : vector<10x1xf32> to vector<10x256xf32>
    %115 = arith.addf %113, %114 : vector<10x256xf32>
    %c1_93 = arith.constant 1 : index
    %c0_94 = arith.constant 0 : index
    %c0_95 = arith.constant 0 : index
    %c0_96 = arith.constant 0 : index
    %116 = vector.load %arg3[%c1_93, %c0_94, %c0_95, %c0_96] : memref<2x3x10x256xf32, #tpu.memory_space<vmem>>, vector<1x1x10x256xf32>
    %117 = vector.shape_cast %116 : vector<1x1x10x256xf32> to vector<10x256xf32>
    %118 = vector.shape_cast %115 : vector<10x256xf32> to vector<1x1x10x256xf32>
    tpu.vector_store %arg3[%c1_93, %c0_94, %c0_95, %c0_96], %118 {strides = array<i32>} : memref<2x3x10x256xf32, #tpu.memory_space<vmem>>, vector<1x1x10x256xf32>,
    %c1_97 = arith.constant 1 : index
    %c0_98 = arith.constant 0 : index
    %c0_99 = arith.constant 0 : index
    %119 = vector.load %arg1[%c1_97, %c0_98, %c0_99] : memref<3x10x25xf32, #tpu.memory_space<vmem>>, vector<1x10x25xf32>
    %120 = vector.shape_cast %119 : vector<1x10x25xf32> to vector<10x25xf32>
    %c1_100 = arith.constant 1 : index
    %c0_101 = arith.constant 0 : index
    %121 = vector.load %arg0[%c1_100, %c0_101] : memref<6x384xf32, #tpu.memory_space<vmem>>, vector<1x384xf32>
    %122 = vector.extract_strided_slice %121 {offsets = [0, 0], sizes = [1, 256], strides = [1, 1]} : vector<1x384xf32> to vector<1x256xf32>
    %c0_102 = arith.constant 0 : index
    %c0_103 = arith.constant 0 : index
    %123 = vector.load %arg4[%c0_102, %c0_103] : memref<25x256xf32, #tpu.memory_space<vmem>>, vector<1x256xf32>
    tpu.vector_store %arg4[%c0_102, %c0_103], %122 {strides = array<i32>} : memref<25x256xf32, #tpu.memory_space<vmem>>, vector<1x256xf32>,
    %124 = vector.extract_strided_slice %121 {offsets = [0, 1], sizes = [1, 256], strides = [1, 1]} : vector<1x384xf32> to vector<1x256xf32>
    %c1_104 = arith.constant 1 : index
    %c0_105 = arith.constant 0 : index
    %125 = vector.load %arg4[%c1_104, %c0_105] : memref<25x256xf32, #tpu.memory_space<vmem>>, vector<1x256xf32>
    tpu.vector_store %arg4[%c1_104, %c0_105], %124 {strides = array<i32>} : memref<25x256xf32, #tpu.memory_space<vmem>>, vector<1x256xf32>,
    %126 = vector.extract_strided_slice %121 {offsets = [0, 2], sizes = [1, 256], strides = [1, 1]} : vector<1x384xf32> to vector<1x256xf32>
    %c2_106 = arith.constant 2 : index
    %c0_107 = arith.constant 0 : index
    %127 = vector.load %arg4[%c2_106, %c0_107] : memref<25x256xf32, #tpu.memory_space<vmem>>, vector<1x256xf32>
    tpu.vector_store %arg4[%c2_106, %c0_107], %126 {strides = array<i32>} : memref<25x256xf32, #tpu.memory_space<vmem>>, vector<1x256xf32>,
    %128 = vector.extract_strided_slice %121 {offsets = [0, 3], sizes = [1, 256], strides = [1, 1]} : vector<1x384xf32> to vector<1x256xf32>
    %c3_108 = arith.constant 3 : index
    %c0_109 = arith.constant 0 : index
    %129 = vector.load %arg4[%c3_108, %c0_109] : memref<25x256xf32, #tpu.memory_space<vmem>>, vector<1x256xf32>
    tpu.vector_store %arg4[%c3_108, %c0_109], %128 {strides = array<i32>} : memref<25x256xf32, #tpu.memory_space<vmem>>, vector<1x256xf32>,
    %130 = vector.extract_strided_slice %121 {offsets = [0, 4], sizes = [1, 256], strides = [1, 1]} : vector<1x384xf32> to vector<1x256xf32>
    %c4_110 = arith.constant 4 : index
    %c0_111 = arith.constant 0 : index
    %131 = vector.load %arg4[%c4_110, %c0_111] : memref<25x256xf32, #tpu.memory_space<vmem>>, vector<1x256xf32>
    tpu.vector_store %arg4[%c4_110, %c0_111], %130 {strides = array<i32>} : memref<25x256xf32, #tpu.memory_space<vmem>>, vector<1x256xf32>,
    %132 = vector.extract_strided_slice %121 {offsets = [0, 16], sizes = [1, 256], strides = [1, 1]} : vector<1x384xf32> to vector<1x256xf32>
    %c5_112 = arith.constant 5 : index
    %c0_113 = arith.constant 0 : index
    %133 = vector.load %arg4[%c5_112, %c0_113] : memref<25x256xf32, #tpu.memory_space<vmem>>, vector<1x256xf32>
    tpu.vector_store %arg4[%c5_112, %c0_113], %132 {strides = array<i32>} : memref<25x256xf32, #tpu.memory_space<vmem>>, vector<1x256xf32>,
    %134 = vector.extract_strided_slice %121 {offsets = [0, 17], sizes = [1, 256], strides = [1, 1]} : vector<1x384xf32> to vector<1x256xf32>
    %c6_114 = arith.constant 6 : index
    %c0_115 = arith.constant 0 : index
    %135 = vector.load %arg4[%c6_114, %c0_115] : memref<25x256xf32, #tpu.memory_space<vmem>>, vector<1x256xf32>
    tpu.vector_store %arg4[%c6_114, %c0_115], %134 {strides = array<i32>} : memref<25x256xf32, #tpu.memory_space<vmem>>, vector<1x256xf32>,
    %136 = vector.extract_strided_slice %121 {offsets = [0, 18], sizes = [1, 256], strides = [1, 1]} : vector<1x384xf32> to vector<1x256xf32>
    %c7_116 = arith.constant 7 : index
    %c0_117 = arith.constant 0 : index
    %137 = vector.load %arg4[%c7_116, %c0_117] : memref<25x256xf32, #tpu.memory_space<vmem>>, vector<1x256xf32>
    tpu.vector_store %arg4[%c7_116, %c0_117], %136 {strides = array<i32>} : memref<25x256xf32, #tpu.memory_space<vmem>>, vector<1x256xf32>,
    %138 = vector.extract_strided_slice %121 {offsets = [0, 19], sizes = [1, 256], strides = [1, 1]} : vector<1x384xf32> to vector<1x256xf32>
    %c8_118 = arith.constant 8 : index
    %c0_119 = arith.constant 0 : index
    %139 = vector.load %arg4[%c8_118, %c0_119] : memref<25x256xf32, #tpu.memory_space<vmem>>, vector<1x256xf32>
    tpu.vector_store %arg4[%c8_118, %c0_119], %138 {strides = array<i32>} : memref<25x256xf32, #tpu.memory_space<vmem>>, vector<1x256xf32>,
    %140 = vector.extract_strided_slice %121 {offsets = [0, 20], sizes = [1, 256], strides = [1, 1]} : vector<1x384xf32> to vector<1x256xf32>
    %c9_120 = arith.constant 9 : index
    %c0_121 = arith.constant 0 : index
    %141 = vector.load %arg4[%c9_120, %c0_121] : memref<25x256xf32, #tpu.memory_space<vmem>>, vector<1x256xf32>
    tpu.vector_store %arg4[%c9_120, %c0_121], %140 {strides = array<i32>} : memref<25x256xf32, #tpu.memory_space<vmem>>, vector<1x256xf32>,
    %142 = vector.extract_strided_slice %121 {offsets = [0, 32], sizes = [1, 256], strides = [1, 1]} : vector<1x384xf32> to vector<1x256xf32>
    %c10_122 = arith.constant 10 : index
    %c0_123 = arith.constant 0 : index
    %143 = vector.load %arg4[%c10_122, %c0_123] : memref<25x256xf32, #tpu.memory_space<vmem>>, vector<1x256xf32>
    tpu.vector_store %arg4[%c10_122, %c0_123], %142 {strides = array<i32>} : memref<25x256xf32, #tpu.memory_space<vmem>>, vector<1x256xf32>,
    %144 = vector.extract_strided_slice %121 {offsets = [0, 33], sizes = [1, 256], strides = [1, 1]} : vector<1x384xf32> to vector<1x256xf32>
    %c11_124 = arith.constant 11 : index
    %c0_125 = arith.constant 0 : index
    %145 = vector.load %arg4[%c11_124, %c0_125] : memref<25x256xf32, #tpu.memory_space<vmem>>, vector<1x256xf32>
    tpu.vector_store %arg4[%c11_124, %c0_125], %144 {strides = array<i32>} : memref<25x256xf32, #tpu.memory_space<vmem>>, vector<1x256xf32>,
    %146 = vector.extract_strided_slice %121 {offsets = [0, 34], sizes = [1, 256], strides = [1, 1]} : vector<1x384xf32> to vector<1x256xf32>
    %c12_126 = arith.constant 12 : index
    %c0_127 = arith.constant 0 : index
    %147 = vector.load %arg4[%c12_126, %c0_127] : memref<25x256xf32, #tpu.memory_space<vmem>>, vector<1x256xf32>
    tpu.vector_store %arg4[%c12_126, %c0_127], %146 {strides = array<i32>} : memref<25x256xf32, #tpu.memory_space<vmem>>, vector<1x256xf32>,
    %148 = vector.extract_strided_slice %121 {offsets = [0, 35], sizes = [1, 256], strides = [1, 1]} : vector<1x384xf32> to vector<1x256xf32>
    %c13_128 = arith.constant 13 : index
    %c0_129 = arith.constant 0 : index
    %149 = vector.load %arg4[%c13_128, %c0_129] : memref<25x256xf32, #tpu.memory_space<vmem>>, vector<1x256xf32>
    tpu.vector_store %arg4[%c13_128, %c0_129], %148 {strides = array<i32>} : memref<25x256xf32, #tpu.memory_space<vmem>>, vector<1x256xf32>,
    %150 = vector.extract_strided_slice %121 {offsets = [0, 36], sizes = [1, 256], strides = [1, 1]} : vector<1x384xf32> to vector<1x256xf32>
    %c14_130 = arith.constant 14 : index
    %c0_131 = arith.constant 0 : index
    %151 = vector.load %arg4[%c14_130, %c0_131] : memref<25x256xf32, #tpu.memory_space<vmem>>, vector<1x256xf32>
    tpu.vector_store %arg4[%c14_130, %c0_131], %150 {strides = array<i32>} : memref<25x256xf32, #tpu.memory_space<vmem>>, vector<1x256xf32>,
    %152 = vector.extract_strided_slice %121 {offsets = [0, 48], sizes = [1, 256], strides = [1, 1]} : vector<1x384xf32> to vector<1x256xf32>
    %c15_132 = arith.constant 15 : index
    %c0_133 = arith.constant 0 : index
    %153 = vector.load %arg4[%c15_132, %c0_133] : memref<25x256xf32, #tpu.memory_space<vmem>>, vector<1x256xf32>
    tpu.vector_store %arg4[%c15_132, %c0_133], %152 {strides = array<i32>} : memref<25x256xf32, #tpu.memory_space<vmem>>, vector<1x256xf32>,
    %154 = vector.extract_strided_slice %121 {offsets = [0, 49], sizes = [1, 256], strides = [1, 1]} : vector<1x384xf32> to vector<1x256xf32>
    %c16_134 = arith.constant 16 : index
    %c0_135 = arith.constant 0 : index
    %155 = vector.load %arg4[%c16_134, %c0_135] : memref<25x256xf32, #tpu.memory_space<vmem>>, vector<1x256xf32>
    tpu.vector_store %arg4[%c16_134, %c0_135], %154 {strides = array<i32>} : memref<25x256xf32, #tpu.memory_space<vmem>>, vector<1x256xf32>,
    %156 = vector.extract_strided_slice %121 {offsets = [0, 50], sizes = [1, 256], strides = [1, 1]} : vector<1x384xf32> to vector<1x256xf32>
    %c17_136 = arith.constant 17 : index
    %c0_137 = arith.constant 0 : index
    %157 = vector.load %arg4[%c17_136, %c0_137] : memref<25x256xf32, #tpu.memory_space<vmem>>, vector<1x256xf32>
    tpu.vector_store %arg4[%c17_136, %c0_137], %156 {strides = array<i32>} : memref<25x256xf32, #tpu.memory_space<vmem>>, vector<1x256xf32>,
    %158 = vector.extract_strided_slice %121 {offsets = [0, 51], sizes = [1, 256], strides = [1, 1]} : vector<1x384xf32> to vector<1x256xf32>
    %c18_138 = arith.constant 18 : index
    %c0_139 = arith.constant 0 : index
    %159 = vector.load %arg4[%c18_138, %c0_139] : memref<25x256xf32, #tpu.memory_space<vmem>>, vector<1x256xf32>
    tpu.vector_store %arg4[%c18_138, %c0_139], %158 {strides = array<i32>} : memref<25x256xf32, #tpu.memory_space<vmem>>, vector<1x256xf32>,
    %160 = vector.extract_strided_slice %121 {offsets = [0, 52], sizes = [1, 256], strides = [1, 1]} : vector<1x384xf32> to vector<1x256xf32>
    %c19_140 = arith.constant 19 : index
    %c0_141 = arith.constant 0 : index
    %161 = vector.load %arg4[%c19_140, %c0_141] : memref<25x256xf32, #tpu.memory_space<vmem>>, vector<1x256xf32>
    tpu.vector_store %arg4[%c19_140, %c0_141], %160 {strides = array<i32>} : memref<25x256xf32, #tpu.memory_space<vmem>>, vector<1x256xf32>,
    %162 = vector.extract_strided_slice %121 {offsets = [0, 64], sizes = [1, 256], strides = [1, 1]} : vector<1x384xf32> to vector<1x256xf32>
    %c20_142 = arith.constant 20 : index
    %c0_143 = arith.constant 0 : index
    %163 = vector.load %arg4[%c20_142, %c0_143] : memref<25x256xf32, #tpu.memory_space<vmem>>, vector<1x256xf32>
    tpu.vector_store %arg4[%c20_142, %c0_143], %162 {strides = array<i32>} : memref<25x256xf32, #tpu.memory_space<vmem>>, vector<1x256xf32>,
    %164 = vector.extract_strided_slice %121 {offsets = [0, 65], sizes = [1, 256], strides = [1, 1]} : vector<1x384xf32> to vector<1x256xf32>
    %c21_144 = arith.constant 21 : index
    %c0_145 = arith.constant 0 : index
    %165 = vector.load %arg4[%c21_144, %c0_145] : memref<25x256xf32, #tpu.memory_space<vmem>>, vector<1x256xf32>
    tpu.vector_store %arg4[%c21_144, %c0_145], %164 {strides = array<i32>} : memref<25x256xf32, #tpu.memory_space<vmem>>, vector<1x256xf32>,
    %166 = vector.extract_strided_slice %121 {offsets = [0, 66], sizes = [1, 256], strides = [1, 1]} : vector<1x384xf32> to vector<1x256xf32>
    %c22_146 = arith.constant 22 : index
    %c0_147 = arith.constant 0 : index
    %167 = vector.load %arg4[%c22_146, %c0_147] : memref<25x256xf32, #tpu.memory_space<vmem>>, vector<1x256xf32>
    tpu.vector_store %arg4[%c22_146, %c0_147], %166 {strides = array<i32>} : memref<25x256xf32, #tpu.memory_space<vmem>>, vector<1x256xf32>,
    %168 = vector.extract_strided_slice %121 {offsets = [0, 67], sizes = [1, 256], strides = [1, 1]} : vector<1x384xf32> to vector<1x256xf32>
    %c23_148 = arith.constant 23 : index
    %c0_149 = arith.constant 0 : index
    %169 = vector.load %arg4[%c23_148, %c0_149] : memref<25x256xf32, #tpu.memory_space<vmem>>, vector<1x256xf32>
    tpu.vector_store %arg4[%c23_148, %c0_149], %168 {strides = array<i32>} : memref<25x256xf32, #tpu.memory_space<vmem>>, vector<1x256xf32>,
    %170 = vector.extract_strided_slice %121 {offsets = [0, 68], sizes = [1, 256], strides = [1, 1]} : vector<1x384xf32> to vector<1x256xf32>
    %c24_150 = arith.constant 24 : index
    %c0_151 = arith.constant 0 : index
    %171 = vector.load %arg4[%c24_150, %c0_151] : memref<25x256xf32, #tpu.memory_space<vmem>>, vector<1x256xf32>
    tpu.vector_store %arg4[%c24_150, %c0_151], %170 {strides = array<i32>} : memref<25x256xf32, #tpu.memory_space<vmem>>, vector<1x256xf32>,
    %c0_152 = arith.constant 0 : index
    %c0_153 = arith.constant 0 : index
    %172 = vector.load %arg4[%c0_152, %c0_153] : memref<25x256xf32, #tpu.memory_space<vmem>>, vector<25x256xf32>
    %cst_154 = arith.constant dense<0.000000e+00> : vector<10x256xf32>
    %173 = tpu.matmul %120, %172, %cst_154 {dimension_numbers = #tpu.dot_dimension_numbers<[1], [0], [0], [1], [0, 0, 1, 1], [], []>} : vector<10x25xf32>, vector<25x256xf32>, vector<10x256xf32> -> vector<10x256xf32>
    %174 = vector.broadcast %0 : vector<10x1xf32> to vector<10x256xf32>
    %175 = arith.addf %173, %174 : vector<10x256xf32>
    %c0_155 = arith.constant 0 : index
    %c1_156 = arith.constant 1 : index
    %c0_157 = arith.constant 0 : index
    %c0_158 = arith.constant 0 : index
    %176 = vector.load %arg3[%c0_155, %c1_156, %c0_157, %c0_158] : memref<2x3x10x256xf32, #tpu.memory_space<vmem>>, vector<1x1x10x256xf32>
    %177 = vector.shape_cast %176 : vector<1x1x10x256xf32> to vector<10x256xf32>
    %178 = vector.shape_cast %175 : vector<10x256xf32> to vector<1x1x10x256xf32>
    tpu.vector_store %arg3[%c0_155, %c1_156, %c0_157, %c0_158], %178 {strides = array<i32>} : memref<2x3x10x256xf32, #tpu.memory_space<vmem>>, vector<1x1x10x256xf32>,
    %c4_159 = arith.constant 4 : index
    %c0_160 = arith.constant 0 : index
    %179 = vector.load %arg0[%c4_159, %c0_160] : memref<6x384xf32, #tpu.memory_space<vmem>>, vector<1x384xf32>
    %180 = vector.extract_strided_slice %179 {offsets = [0, 0], sizes = [1, 256], strides = [1, 1]} : vector<1x384xf32> to vector<1x256xf32>
    %c0_161 = arith.constant 0 : index
    %c0_162 = arith.constant 0 : index
    %181 = vector.load %arg4[%c0_161, %c0_162] : memref<25x256xf32, #tpu.memory_space<vmem>>, vector<1x256xf32>
    tpu.vector_store %arg4[%c0_161, %c0_162], %180 {strides = array<i32>} : memref<25x256xf32, #tpu.memory_space<vmem>>, vector<1x256xf32>,
    %182 = vector.extract_strided_slice %179 {offsets = [0, 1], sizes = [1, 256], strides = [1, 1]} : vector<1x384xf32> to vector<1x256xf32>
    %c1_163 = arith.constant 1 : index
    %c0_164 = arith.constant 0 : index
    %183 = vector.load %arg4[%c1_163, %c0_164] : memref<25x256xf32, #tpu.memory_space<vmem>>, vector<1x256xf32>
    tpu.vector_store %arg4[%c1_163, %c0_164], %182 {strides = array<i32>} : memref<25x256xf32, #tpu.memory_space<vmem>>, vector<1x256xf32>,
    %184 = vector.extract_strided_slice %179 {offsets = [0, 2], sizes = [1, 256], strides = [1, 1]} : vector<1x384xf32> to vector<1x256xf32>
    %c2_165 = arith.constant 2 : index
    %c0_166 = arith.constant 0 : index
    %185 = vector.load %arg4[%c2_165, %c0_166] : memref<25x256xf32, #tpu.memory_space<vmem>>, vector<1x256xf32>
    tpu.vector_store %arg4[%c2_165, %c0_166], %184 {strides = array<i32>} : memref<25x256xf32, #tpu.memory_space<vmem>>, vector<1x256xf32>,
    %186 = vector.extract_strided_slice %179 {offsets = [0, 3], sizes = [1, 256], strides = [1, 1]} : vector<1x384xf32> to vector<1x256xf32>
    %c3_167 = arith.constant 3 : index
    %c0_168 = arith.constant 0 : index
    %187 = vector.load %arg4[%c3_167, %c0_168] : memref<25x256xf32, #tpu.memory_space<vmem>>, vector<1x256xf32>
    tpu.vector_store %arg4[%c3_167, %c0_168], %186 {strides = array<i32>} : memref<25x256xf32, #tpu.memory_space<vmem>>, vector<1x256xf32>,
    %188 = vector.extract_strided_slice %179 {offsets = [0, 4], sizes = [1, 256], strides = [1, 1]} : vector<1x384xf32> to vector<1x256xf32>
    %c4_169 = arith.constant 4 : index
    %c0_170 = arith.constant 0 : index
    %189 = vector.load %arg4[%c4_169, %c0_170] : memref<25x256xf32, #tpu.memory_space<vmem>>, vector<1x256xf32>
    tpu.vector_store %arg4[%c4_169, %c0_170], %188 {strides = array<i32>} : memref<25x256xf32, #tpu.memory_space<vmem>>, vector<1x256xf32>,
    %190 = vector.extract_strided_slice %179 {offsets = [0, 16], sizes = [1, 256], strides = [1, 1]} : vector<1x384xf32> to vector<1x256xf32>
    %c5_171 = arith.constant 5 : index
    %c0_172 = arith.constant 0 : index
    %191 = vector.load %arg4[%c5_171, %c0_172] : memref<25x256xf32, #tpu.memory_space<vmem>>, vector<1x256xf32>
    tpu.vector_store %arg4[%c5_171, %c0_172], %190 {strides = array<i32>} : memref<25x256xf32, #tpu.memory_space<vmem>>, vector<1x256xf32>,
    %192 = vector.extract_strided_slice %179 {offsets = [0, 17], sizes = [1, 256], strides = [1, 1]} : vector<1x384xf32> to vector<1x256xf32>
    %c6_173 = arith.constant 6 : index
    %c0_174 = arith.constant 0 : index
    %193 = vector.load %arg4[%c6_173, %c0_174] : memref<25x256xf32, #tpu.memory_space<vmem>>, vector<1x256xf32>
    tpu.vector_store %arg4[%c6_173, %c0_174], %192 {strides = array<i32>} : memref<25x256xf32, #tpu.memory_space<vmem>>, vector<1x256xf32>,
    %194 = vector.extract_strided_slice %179 {offsets = [0, 18], sizes = [1, 256], strides = [1, 1]} : vector<1x384xf32> to vector<1x256xf32>
    %c7_175 = arith.constant 7 : index
    %c0_176 = arith.constant 0 : index
    %195 = vector.load %arg4[%c7_175, %c0_176] : memref<25x256xf32, #tpu.memory_space<vmem>>, vector<1x256xf32>
    tpu.vector_store %arg4[%c7_175, %c0_176], %194 {strides = array<i32>} : memref<25x256xf32, #tpu.memory_space<vmem>>, vector<1x256xf32>,
    %196 = vector.extract_strided_slice %179 {offsets = [0, 19], sizes = [1, 256], strides = [1, 1]} : vector<1x384xf32> to vector<1x256xf32>
    %c8_177 = arith.constant 8 : index
    %c0_178 = arith.constant 0 : index
    %197 = vector.load %arg4[%c8_177, %c0_178] : memref<25x256xf32, #tpu.memory_space<vmem>>, vector<1x256xf32>
    tpu.vector_store %arg4[%c8_177, %c0_178], %196 {strides = array<i32>} : memref<25x256xf32, #tpu.memory_space<vmem>>, vector<1x256xf32>,
    %198 = vector.extract_strided_slice %179 {offsets = [0, 20], sizes = [1, 256], strides = [1, 1]} : vector<1x384xf32> to vector<1x256xf32>
    %c9_179 = arith.constant 9 : index
    %c0_180 = arith.constant 0 : index
    %199 = vector.load %arg4[%c9_179, %c0_180] : memref<25x256xf32, #tpu.memory_space<vmem>>, vector<1x256xf32>
    tpu.vector_store %arg4[%c9_179, %c0_180], %198 {strides = array<i32>} : memref<25x256xf32, #tpu.memory_space<vmem>>, vector<1x256xf32>,
    %200 = vector.extract_strided_slice %179 {offsets = [0, 32], sizes = [1, 256], strides = [1, 1]} : vector<1x384xf32> to vector<1x256xf32>
    %c10_181 = arith.constant 10 : index
    %c0_182 = arith.constant 0 : index
    %201 = vector.load %arg4[%c10_181, %c0_182] : memref<25x256xf32, #tpu.memory_space<vmem>>, vector<1x256xf32>
    tpu.vector_store %arg4[%c10_181, %c0_182], %200 {strides = array<i32>} : memref<25x256xf32, #tpu.memory_space<vmem>>, vector<1x256xf32>,
    %202 = vector.extract_strided_slice %179 {offsets = [0, 33], sizes = [1, 256], strides = [1, 1]} : vector<1x384xf32> to vector<1x256xf32>
    %c11_183 = arith.constant 11 : index
    %c0_184 = arith.constant 0 : index
    %203 = vector.load %arg4[%c11_183, %c0_184] : memref<25x256xf32, #tpu.memory_space<vmem>>, vector<1x256xf32>
    tpu.vector_store %arg4[%c11_183, %c0_184], %202 {strides = array<i32>} : memref<25x256xf32, #tpu.memory_space<vmem>>, vector<1x256xf32>,
    %204 = vector.extract_strided_slice %179 {offsets = [0, 34], sizes = [1, 256], strides = [1, 1]} : vector<1x384xf32> to vector<1x256xf32>
    %c12_185 = arith.constant 12 : index
    %c0_186 = arith.constant 0 : index
    %205 = vector.load %arg4[%c12_185, %c0_186] : memref<25x256xf32, #tpu.memory_space<vmem>>, vector<1x256xf32>
    tpu.vector_store %arg4[%c12_185, %c0_186], %204 {strides = array<i32>} : memref<25x256xf32, #tpu.memory_space<vmem>>, vector<1x256xf32>,
    %206 = vector.extract_strided_slice %179 {offsets = [0, 35], sizes = [1, 256], strides = [1, 1]} : vector<1x384xf32> to vector<1x256xf32>
    %c13_187 = arith.constant 13 : index
    %c0_188 = arith.constant 0 : index
    %207 = vector.load %arg4[%c13_187, %c0_188] : memref<25x256xf32, #tpu.memory_space<vmem>>, vector<1x256xf32>
    tpu.vector_store %arg4[%c13_187, %c0_188], %206 {strides = array<i32>} : memref<25x256xf32, #tpu.memory_space<vmem>>, vector<1x256xf32>,
    %208 = vector.extract_strided_slice %179 {offsets = [0, 36], sizes = [1, 256], strides = [1, 1]} : vector<1x384xf32> to vector<1x256xf32>
    %c14_189 = arith.constant 14 : index
    %c0_190 = arith.constant 0 : index
    %209 = vector.load %arg4[%c14_189, %c0_190] : memref<25x256xf32, #tpu.memory_space<vmem>>, vector<1x256xf32>
    tpu.vector_store %arg4[%c14_189, %c0_190], %208 {strides = array<i32>} : memref<25x256xf32, #tpu.memory_space<vmem>>, vector<1x256xf32>,
    %210 = vector.extract_strided_slice %179 {offsets = [0, 48], sizes = [1, 256], strides = [1, 1]} : vector<1x384xf32> to vector<1x256xf32>
    %c15_191 = arith.constant 15 : index
    %c0_192 = arith.constant 0 : index
    %211 = vector.load %arg4[%c15_191, %c0_192] : memref<25x256xf32, #tpu.memory_space<vmem>>, vector<1x256xf32>
    tpu.vector_store %arg4[%c15_191, %c0_192], %210 {strides = array<i32>} : memref<25x256xf32, #tpu.memory_space<vmem>>, vector<1x256xf32>,
    %212 = vector.extract_strided_slice %179 {offsets = [0, 49], sizes = [1, 256], strides = [1, 1]} : vector<1x384xf32> to vector<1x256xf32>
    %c16_193 = arith.constant 16 : index
    %c0_194 = arith.constant 0 : index
    %213 = vector.load %arg4[%c16_193, %c0_194] : memref<25x256xf32, #tpu.memory_space<vmem>>, vector<1x256xf32>
    tpu.vector_store %arg4[%c16_193, %c0_194], %212 {strides = array<i32>} : memref<25x256xf32, #tpu.memory_space<vmem>>, vector<1x256xf32>,
    %214 = vector.extract_strided_slice %179 {offsets = [0, 50], sizes = [1, 256], strides = [1, 1]} : vector<1x384xf32> to vector<1x256xf32>
    %c17_195 = arith.constant 17 : index
    %c0_196 = arith.constant 0 : index
    %215 = vector.load %arg4[%c17_195, %c0_196] : memref<25x256xf32, #tpu.memory_space<vmem>>, vector<1x256xf32>
    tpu.vector_store %arg4[%c17_195, %c0_196], %214 {strides = array<i32>} : memref<25x256xf32, #tpu.memory_space<vmem>>, vector<1x256xf32>,
    %216 = vector.extract_strided_slice %179 {offsets = [0, 51], sizes = [1, 256], strides = [1, 1]} : vector<1x384xf32> to vector<1x256xf32>
    %c18_197 = arith.constant 18 : index
    %c0_198 = arith.constant 0 : index
    %217 = vector.load %arg4[%c18_197, %c0_198] : memref<25x256xf32, #tpu.memory_space<vmem>>, vector<1x256xf32>
    tpu.vector_store %arg4[%c18_197, %c0_198], %216 {strides = array<i32>} : memref<25x256xf32, #tpu.memory_space<vmem>>, vector<1x256xf32>,
    %218 = vector.extract_strided_slice %179 {offsets = [0, 52], sizes = [1, 256], strides = [1, 1]} : vector<1x384xf32> to vector<1x256xf32>
    %c19_199 = arith.constant 19 : index
    %c0_200 = arith.constant 0 : index
    %219 = vector.load %arg4[%c19_199, %c0_200] : memref<25x256xf32, #tpu.memory_space<vmem>>, vector<1x256xf32>
    tpu.vector_store %arg4[%c19_199, %c0_200], %218 {strides = array<i32>} : memref<25x256xf32, #tpu.memory_space<vmem>>, vector<1x256xf32>,
    %220 = vector.extract_strided_slice %179 {offsets = [0, 64], sizes = [1, 256], strides = [1, 1]} : vector<1x384xf32> to vector<1x256xf32>
    %c20_201 = arith.constant 20 : index
    %c0_202 = arith.constant 0 : index
    %221 = vector.load %arg4[%c20_201, %c0_202] : memref<25x256xf32, #tpu.memory_space<vmem>>, vector<1x256xf32>
    tpu.vector_store %arg4[%c20_201, %c0_202], %220 {strides = array<i32>} : memref<25x256xf32, #tpu.memory_space<vmem>>, vector<1x256xf32>,
    %222 = vector.extract_strided_slice %179 {offsets = [0, 65], sizes = [1, 256], strides = [1, 1]} : vector<1x384xf32> to vector<1x256xf32>
    %c21_203 = arith.constant 21 : index
    %c0_204 = arith.constant 0 : index
    %223 = vector.load %arg4[%c21_203, %c0_204] : memref<25x256xf32, #tpu.memory_space<vmem>>, vector<1x256xf32>
    tpu.vector_store %arg4[%c21_203, %c0_204], %222 {strides = array<i32>} : memref<25x256xf32, #tpu.memory_space<vmem>>, vector<1x256xf32>,
    %224 = vector.extract_strided_slice %179 {offsets = [0, 66], sizes = [1, 256], strides = [1, 1]} : vector<1x384xf32> to vector<1x256xf32>
    %c22_205 = arith.constant 22 : index
    %c0_206 = arith.constant 0 : index
    %225 = vector.load %arg4[%c22_205, %c0_206] : memref<25x256xf32, #tpu.memory_space<vmem>>, vector<1x256xf32>
    tpu.vector_store %arg4[%c22_205, %c0_206], %224 {strides = array<i32>} : memref<25x256xf32, #tpu.memory_space<vmem>>, vector<1x256xf32>,
    %226 = vector.extract_strided_slice %179 {offsets = [0, 67], sizes = [1, 256], strides = [1, 1]} : vector<1x384xf32> to vector<1x256xf32>
    %c23_207 = arith.constant 23 : index
    %c0_208 = arith.constant 0 : index
    %227 = vector.load %arg4[%c23_207, %c0_208] : memref<25x256xf32, #tpu.memory_space<vmem>>, vector<1x256xf32>
    tpu.vector_store %arg4[%c23_207, %c0_208], %226 {strides = array<i32>} : memref<25x256xf32, #tpu.memory_space<vmem>>, vector<1x256xf32>,
    %228 = vector.extract_strided_slice %179 {offsets = [0, 68], sizes = [1, 256], strides = [1, 1]} : vector<1x384xf32> to vector<1x256xf32>
    %c24_209 = arith.constant 24 : index
    %c0_210 = arith.constant 0 : index
    %229 = vector.load %arg4[%c24_209, %c0_210] : memref<25x256xf32, #tpu.memory_space<vmem>>, vector<1x256xf32>
    tpu.vector_store %arg4[%c24_209, %c0_210], %228 {strides = array<i32>} : memref<25x256xf32, #tpu.memory_space<vmem>>, vector<1x256xf32>,
    %c0_211 = arith.constant 0 : index
    %c0_212 = arith.constant 0 : index
    %230 = vector.load %arg4[%c0_211, %c0_212] : memref<25x256xf32, #tpu.memory_space<vmem>>, vector<25x256xf32>
    %cst_213 = arith.constant dense<0.000000e+00> : vector<10x256xf32>
    %231 = tpu.matmul %120, %230, %cst_213 {dimension_numbers = #tpu.dot_dimension_numbers<[1], [0], [0], [1], [0, 0, 1, 1], [], []>} : vector<10x25xf32>, vector<25x256xf32>, vector<10x256xf32> -> vector<10x256xf32>
    %232 = vector.broadcast %0 : vector<10x1xf32> to vector<10x256xf32>
    %233 = arith.addf %231, %232 : vector<10x256xf32>
    %c1_214 = arith.constant 1 : index
    %c1_215 = arith.constant 1 : index
    %c0_216 = arith.constant 0 : index
    %c0_217 = arith.constant 0 : index
    %234 = vector.load %arg3[%c1_214, %c1_215, %c0_216, %c0_217] : memref<2x3x10x256xf32, #tpu.memory_space<vmem>>, vector<1x1x10x256xf32>
    %235 = vector.shape_cast %234 : vector<1x1x10x256xf32> to vector<10x256xf32>
    %236 = vector.shape_cast %233 : vector<10x256xf32> to vector<1x1x10x256xf32>
    tpu.vector_store %arg3[%c1_214, %c1_215, %c0_216, %c0_217], %236 {strides = array<i32>} : memref<2x3x10x256xf32, #tpu.memory_space<vmem>>, vector<1x1x10x256xf32>,
    %c2_218 = arith.constant 2 : index
    %c0_219 = arith.constant 0 : index
    %c0_220 = arith.constant 0 : index
    %237 = vector.load %arg1[%c2_218, %c0_219, %c0_220] : memref<3x10x25xf32, #tpu.memory_space<vmem>>, vector<1x10x25xf32>
    %238 = vector.shape_cast %237 : vector<1x10x25xf32> to vector<10x25xf32>
    %c2_221 = arith.constant 2 : index
    %c0_222 = arith.constant 0 : index
    %239 = vector.load %arg0[%c2_221, %c0_222] : memref<6x384xf32, #tpu.memory_space<vmem>>, vector<1x384xf32>
    %240 = vector.extract_strided_slice %239 {offsets = [0, 0], sizes = [1, 256], strides = [1, 1]} : vector<1x384xf32> to vector<1x256xf32>
    %c0_223 = arith.constant 0 : index
    %c0_224 = arith.constant 0 : index
    %241 = vector.load %arg4[%c0_223, %c0_224] : memref<25x256xf32, #tpu.memory_space<vmem>>, vector<1x256xf32>
    tpu.vector_store %arg4[%c0_223, %c0_224], %240 {strides = array<i32>} : memref<25x256xf32, #tpu.memory_space<vmem>>, vector<1x256xf32>,
    %242 = vector.extract_strided_slice %239 {offsets = [0, 1], sizes = [1, 256], strides = [1, 1]} : vector<1x384xf32> to vector<1x256xf32>
    %c1_225 = arith.constant 1 : index
    %c0_226 = arith.constant 0 : index
    %243 = vector.load %arg4[%c1_225, %c0_226] : memref<25x256xf32, #tpu.memory_space<vmem>>, vector<1x256xf32>
    tpu.vector_store %arg4[%c1_225, %c0_226], %242 {strides = array<i32>} : memref<25x256xf32, #tpu.memory_space<vmem>>, vector<1x256xf32>,
    %244 = vector.extract_strided_slice %239 {offsets = [0, 2], sizes = [1, 256], strides = [1, 1]} : vector<1x384xf32> to vector<1x256xf32>
    %c2_227 = arith.constant 2 : index
    %c0_228 = arith.constant 0 : index
    %245 = vector.load %arg4[%c2_227, %c0_228] : memref<25x256xf32, #tpu.memory_space<vmem>>, vector<1x256xf32>
    tpu.vector_store %arg4[%c2_227, %c0_228], %244 {strides = array<i32>} : memref<25x256xf32, #tpu.memory_space<vmem>>, vector<1x256xf32>,
    %246 = vector.extract_strided_slice %239 {offsets = [0, 3], sizes = [1, 256], strides = [1, 1]} : vector<1x384xf32> to vector<1x256xf32>
    %c3_229 = arith.constant 3 : index
    %c0_230 = arith.constant 0 : index
    %247 = vector.load %arg4[%c3_229, %c0_230] : memref<25x256xf32, #tpu.memory_space<vmem>>, vector<1x256xf32>
    tpu.vector_store %arg4[%c3_229, %c0_230], %246 {strides = array<i32>} : memref<25x256xf32, #tpu.memory_space<vmem>>, vector<1x256xf32>,
    %248 = vector.extract_strided_slice %239 {offsets = [0, 4], sizes = [1, 256], strides = [1, 1]} : vector<1x384xf32> to vector<1x256xf32>
    %c4_231 = arith.constant 4 : index
    %c0_232 = arith.constant 0 : index
    %249 = vector.load %arg4[%c4_231, %c0_232] : memref<25x256xf32, #tpu.memory_space<vmem>>, vector<1x256xf32>
    tpu.vector_store %arg4[%c4_231, %c0_232], %248 {strides = array<i32>} : memref<25x256xf32, #tpu.memory_space<vmem>>, vector<1x256xf32>,
    %250 = vector.extract_strided_slice %239 {offsets = [0, 16], sizes = [1, 256], strides = [1, 1]} : vector<1x384xf32> to vector<1x256xf32>
    %c5_233 = arith.constant 5 : index
    %c0_234 = arith.constant 0 : index
    %251 = vector.load %arg4[%c5_233, %c0_234] : memref<25x256xf32, #tpu.memory_space<vmem>>, vector<1x256xf32>
    tpu.vector_store %arg4[%c5_233, %c0_234], %250 {strides = array<i32>} : memref<25x256xf32, #tpu.memory_space<vmem>>, vector<1x256xf32>,
    %252 = vector.extract_strided_slice %239 {offsets = [0, 17], sizes = [1, 256], strides = [1, 1]} : vector<1x384xf32> to vector<1x256xf32>
    %c6_235 = arith.constant 6 : index
    %c0_236 = arith.constant 0 : index
    %253 = vector.load %arg4[%c6_235, %c0_236] : memref<25x256xf32, #tpu.memory_space<vmem>>, vector<1x256xf32>
    tpu.vector_store %arg4[%c6_235, %c0_236], %252 {strides = array<i32>} : memref<25x256xf32, #tpu.memory_space<vmem>>, vector<1x256xf32>,
    %254 = vector.extract_strided_slice %239 {offsets = [0, 18], sizes = [1, 256], strides = [1, 1]} : vector<1x384xf32> to vector<1x256xf32>
    %c7_237 = arith.constant 7 : index
    %c0_238 = arith.constant 0 : index
    %255 = vector.load %arg4[%c7_237, %c0_238] : memref<25x256xf32, #tpu.memory_space<vmem>>, vector<1x256xf32>
    tpu.vector_store %arg4[%c7_237, %c0_238], %254 {strides = array<i32>} : memref<25x256xf32, #tpu.memory_space<vmem>>, vector<1x256xf32>,
    %256 = vector.extract_strided_slice %239 {offsets = [0, 19], sizes = [1, 256], strides = [1, 1]} : vector<1x384xf32> to vector<1x256xf32>
    %c8_239 = arith.constant 8 : index
    %c0_240 = arith.constant 0 : index
    %257 = vector.load %arg4[%c8_239, %c0_240] : memref<25x256xf32, #tpu.memory_space<vmem>>, vector<1x256xf32>
    tpu.vector_store %arg4[%c8_239, %c0_240], %256 {strides = array<i32>} : memref<25x256xf32, #tpu.memory_space<vmem>>, vector<1x256xf32>,
    %258 = vector.extract_strided_slice %239 {offsets = [0, 20], sizes = [1, 256], strides = [1, 1]} : vector<1x384xf32> to vector<1x256xf32>
    %c9_241 = arith.constant 9 : index
    %c0_242 = arith.constant 0 : index
    %259 = vector.load %arg4[%c9_241, %c0_242] : memref<25x256xf32, #tpu.memory_space<vmem>>, vector<1x256xf32>
    tpu.vector_store %arg4[%c9_241, %c0_242], %258 {strides = array<i32>} : memref<25x256xf32, #tpu.memory_space<vmem>>, vector<1x256xf32>,
    %260 = vector.extract_strided_slice %239 {offsets = [0, 32], sizes = [1, 256], strides = [1, 1]} : vector<1x384xf32> to vector<1x256xf32>
    %c10_243 = arith.constant 10 : index
    %c0_244 = arith.constant 0 : index
    %261 = vector.load %arg4[%c10_243, %c0_244] : memref<25x256xf32, #tpu.memory_space<vmem>>, vector<1x256xf32>
    tpu.vector_store %arg4[%c10_243, %c0_244], %260 {strides = array<i32>} : memref<25x256xf32, #tpu.memory_space<vmem>>, vector<1x256xf32>,
    %262 = vector.extract_strided_slice %239 {offsets = [0, 33], sizes = [1, 256], strides = [1, 1]} : vector<1x384xf32> to vector<1x256xf32>
    %c11_245 = arith.constant 11 : index
    %c0_246 = arith.constant 0 : index
    %263 = vector.load %arg4[%c11_245, %c0_246] : memref<25x256xf32, #tpu.memory_space<vmem>>, vector<1x256xf32>
    tpu.vector_store %arg4[%c11_245, %c0_246], %262 {strides = array<i32>} : memref<25x256xf32, #tpu.memory_space<vmem>>, vector<1x256xf32>,
    %264 = vector.extract_strided_slice %239 {offsets = [0, 34], sizes = [1, 256], strides = [1, 1]} : vector<1x384xf32> to vector<1x256xf32>
    %c12_247 = arith.constant 12 : index
    %c0_248 = arith.constant 0 : index
    %265 = vector.load %arg4[%c12_247, %c0_248] : memref<25x256xf32, #tpu.memory_space<vmem>>, vector<1x256xf32>
    tpu.vector_store %arg4[%c12_247, %c0_248], %264 {strides = array<i32>} : memref<25x256xf32, #tpu.memory_space<vmem>>, vector<1x256xf32>,
    %266 = vector.extract_strided_slice %239 {offsets = [0, 35], sizes = [1, 256], strides = [1, 1]} : vector<1x384xf32> to vector<1x256xf32>
    %c13_249 = arith.constant 13 : index
    %c0_250 = arith.constant 0 : index
    %267 = vector.load %arg4[%c13_249, %c0_250] : memref<25x256xf32, #tpu.memory_space<vmem>>, vector<1x256xf32>
    tpu.vector_store %arg4[%c13_249, %c0_250], %266 {strides = array<i32>} : memref<25x256xf32, #tpu.memory_space<vmem>>, vector<1x256xf32>,
    %268 = vector.extract_strided_slice %239 {offsets = [0, 36], sizes = [1, 256], strides = [1, 1]} : vector<1x384xf32> to vector<1x256xf32>
    %c14_251 = arith.constant 14 : index
    %c0_252 = arith.constant 0 : index
    %269 = vector.load %arg4[%c14_251, %c0_252] : memref<25x256xf32, #tpu.memory_space<vmem>>, vector<1x256xf32>
    tpu.vector_store %arg4[%c14_251, %c0_252], %268 {strides = array<i32>} : memref<25x256xf32, #tpu.memory_space<vmem>>, vector<1x256xf32>,
    %270 = vector.extract_strided_slice %239 {offsets = [0, 48], sizes = [1, 256], strides = [1, 1]} : vector<1x384xf32> to vector<1x256xf32>
    %c15_253 = arith.constant 15 : index
    %c0_254 = arith.constant 0 : index
    %271 = vector.load %arg4[%c15_253, %c0_254] : memref<25x256xf32, #tpu.memory_space<vmem>>, vector<1x256xf32>
    tpu.vector_store %arg4[%c15_253, %c0_254], %270 {strides = array<i32>} : memref<25x256xf32, #tpu.memory_space<vmem>>, vector<1x256xf32>,
    %272 = vector.extract_strided_slice %239 {offsets = [0, 49], sizes = [1, 256], strides = [1, 1]} : vector<1x384xf32> to vector<1x256xf32>
    %c16_255 = arith.constant 16 : index
    %c0_256 = arith.constant 0 : index
    %273 = vector.load %arg4[%c16_255, %c0_256] : memref<25x256xf32, #tpu.memory_space<vmem>>, vector<1x256xf32>
    tpu.vector_store %arg4[%c16_255, %c0_256], %272 {strides = array<i32>} : memref<25x256xf32, #tpu.memory_space<vmem>>, vector<1x256xf32>,
    %274 = vector.extract_strided_slice %239 {offsets = [0, 50], sizes = [1, 256], strides = [1, 1]} : vector<1x384xf32> to vector<1x256xf32>
    %c17_257 = arith.constant 17 : index
    %c0_258 = arith.constant 0 : index
    %275 = vector.load %arg4[%c17_257, %c0_258] : memref<25x256xf32, #tpu.memory_space<vmem>>, vector<1x256xf32>
    tpu.vector_store %arg4[%c17_257, %c0_258], %274 {strides = array<i32>} : memref<25x256xf32, #tpu.memory_space<vmem>>, vector<1x256xf32>,
    %276 = vector.extract_strided_slice %239 {offsets = [0, 51], sizes = [1, 256], strides = [1, 1]} : vector<1x384xf32> to vector<1x256xf32>
    %c18_259 = arith.constant 18 : index
    %c0_260 = arith.constant 0 : index
    %277 = vector.load %arg4[%c18_259, %c0_260] : memref<25x256xf32, #tpu.memory_space<vmem>>, vector<1x256xf32>
    tpu.vector_store %arg4[%c18_259, %c0_260], %276 {strides = array<i32>} : memref<25x256xf32, #tpu.memory_space<vmem>>, vector<1x256xf32>,
    %278 = vector.extract_strided_slice %239 {offsets = [0, 52], sizes = [1, 256], strides = [1, 1]} : vector<1x384xf32> to vector<1x256xf32>
    %c19_261 = arith.constant 19 : index
    %c0_262 = arith.constant 0 : index
    %279 = vector.load %arg4[%c19_261, %c0_262] : memref<25x256xf32, #tpu.memory_space<vmem>>, vector<1x256xf32>
    tpu.vector_store %arg4[%c19_261, %c0_262], %278 {strides = array<i32>} : memref<25x256xf32, #tpu.memory_space<vmem>>, vector<1x256xf32>,
    %280 = vector.extract_strided_slice %239 {offsets = [0, 64], sizes = [1, 256], strides = [1, 1]} : vector<1x384xf32> to vector<1x256xf32>
    %c20_263 = arith.constant 20 : index
    %c0_264 = arith.constant 0 : index
    %281 = vector.load %arg4[%c20_263, %c0_264] : memref<25x256xf32, #tpu.memory_space<vmem>>, vector<1x256xf32>
    tpu.vector_store %arg4[%c20_263, %c0_264], %280 {strides = array<i32>} : memref<25x256xf32, #tpu.memory_space<vmem>>, vector<1x256xf32>,
    %282 = vector.extract_strided_slice %239 {offsets = [0, 65], sizes = [1, 256], strides = [1, 1]} : vector<1x384xf32> to vector<1x256xf32>
    %c21_265 = arith.constant 21 : index
    %c0_266 = arith.constant 0 : index
    %283 = vector.load %arg4[%c21_265, %c0_266] : memref<25x256xf32, #tpu.memory_space<vmem>>, vector<1x256xf32>
    tpu.vector_store %arg4[%c21_265, %c0_266], %282 {strides = array<i32>} : memref<25x256xf32, #tpu.memory_space<vmem>>, vector<1x256xf32>,
    %284 = vector.extract_strided_slice %239 {offsets = [0, 66], sizes = [1, 256], strides = [1, 1]} : vector<1x384xf32> to vector<1x256xf32>
    %c22_267 = arith.constant 22 : index
    %c0_268 = arith.constant 0 : index
    %285 = vector.load %arg4[%c22_267, %c0_268] : memref<25x256xf32, #tpu.memory_space<vmem>>, vector<1x256xf32>
    tpu.vector_store %arg4[%c22_267, %c0_268], %284 {strides = array<i32>} : memref<25x256xf32, #tpu.memory_space<vmem>>, vector<1x256xf32>,
    %286 = vector.extract_strided_slice %239 {offsets = [0, 67], sizes = [1, 256], strides = [1, 1]} : vector<1x384xf32> to vector<1x256xf32>
    %c23_269 = arith.constant 23 : index
    %c0_270 = arith.constant 0 : index
    %287 = vector.load %arg4[%c23_269, %c0_270] : memref<25x256xf32, #tpu.memory_space<vmem>>, vector<1x256xf32>
    tpu.vector_store %arg4[%c23_269, %c0_270], %286 {strides = array<i32>} : memref<25x256xf32, #tpu.memory_space<vmem>>, vector<1x256xf32>,
    %288 = vector.extract_strided_slice %239 {offsets = [0, 68], sizes = [1, 256], strides = [1, 1]} : vector<1x384xf32> to vector<1x256xf32>
    %c24_271 = arith.constant 24 : index
    %c0_272 = arith.constant 0 : index
    %289 = vector.load %arg4[%c24_271, %c0_272] : memref<25x256xf32, #tpu.memory_space<vmem>>, vector<1x256xf32>
    tpu.vector_store %arg4[%c24_271, %c0_272], %288 {strides = array<i32>} : memref<25x256xf32, #tpu.memory_space<vmem>>, vector<1x256xf32>,
    %c0_273 = arith.constant 0 : index
    %c0_274 = arith.constant 0 : index
    %290 = vector.load %arg4[%c0_273, %c0_274] : memref<25x256xf32, #tpu.memory_space<vmem>>, vector<25x256xf32>
    %cst_275 = arith.constant dense<0.000000e+00> : vector<10x256xf32>
    %291 = tpu.matmul %238, %290, %cst_275 {dimension_numbers = #tpu.dot_dimension_numbers<[1], [0], [0], [1], [0, 0, 1, 1], [], []>} : vector<10x25xf32>, vector<25x256xf32>, vector<10x256xf32> -> vector<10x256xf32>
    %292 = vector.broadcast %0 : vector<10x1xf32> to vector<10x256xf32>
    %293 = arith.addf %291, %292 : vector<10x256xf32>
    %c0_276 = arith.constant 0 : index
    %c2_277 = arith.constant 2 : index
    %c0_278 = arith.constant 0 : index
    %c0_279 = arith.constant 0 : index
    %294 = vector.load %arg3[%c0_276, %c2_277, %c0_278, %c0_279] : memref<2x3x10x256xf32, #tpu.memory_space<vmem>>, vector<1x1x10x256xf32>
    %295 = vector.shape_cast %294 : vector<1x1x10x256xf32> to vector<10x256xf32>
    %296 = vector.shape_cast %293 : vector<10x256xf32> to vector<1x1x10x256xf32>
    tpu.vector_store %arg3[%c0_276, %c2_277, %c0_278, %c0_279], %296 {strides = array<i32>} : memref<2x3x10x256xf32, #tpu.memory_space<vmem>>, vector<1x1x10x256xf32>,
    %c5_280 = arith.constant 5 : index
    %c0_281 = arith.constant 0 : index
    %297 = vector.load %arg0[%c5_280, %c0_281] : memref<6x384xf32, #tpu.memory_space<vmem>>, vector<1x384xf32>
    %298 = vector.extract_strided_slice %297 {offsets = [0, 0], sizes = [1, 256], strides = [1, 1]} : vector<1x384xf32> to vector<1x256xf32>
    %c0_282 = arith.constant 0 : index
    %c0_283 = arith.constant 0 : index
    %299 = vector.load %arg4[%c0_282, %c0_283] : memref<25x256xf32, #tpu.memory_space<vmem>>, vector<1x256xf32>
    tpu.vector_store %arg4[%c0_282, %c0_283], %298 {strides = array<i32>} : memref<25x256xf32, #tpu.memory_space<vmem>>, vector<1x256xf32>,
    %300 = vector.extract_strided_slice %297 {offsets = [0, 1], sizes = [1, 256], strides = [1, 1]} : vector<1x384xf32> to vector<1x256xf32>
    %c1_284 = arith.constant 1 : index
    %c0_285 = arith.constant 0 : index
    %301 = vector.load %arg4[%c1_284, %c0_285] : memref<25x256xf32, #tpu.memory_space<vmem>>, vector<1x256xf32>
    tpu.vector_store %arg4[%c1_284, %c0_285], %300 {strides = array<i32>} : memref<25x256xf32, #tpu.memory_space<vmem>>, vector<1x256xf32>,
    %302 = vector.extract_strided_slice %297 {offsets = [0, 2], sizes = [1, 256], strides = [1, 1]} : vector<1x384xf32> to vector<1x256xf32>
    %c2_286 = arith.constant 2 : index
    %c0_287 = arith.constant 0 : index
    %303 = vector.load %arg4[%c2_286, %c0_287] : memref<25x256xf32, #tpu.memory_space<vmem>>, vector<1x256xf32>
    tpu.vector_store %arg4[%c2_286, %c0_287], %302 {strides = array<i32>} : memref<25x256xf32, #tpu.memory_space<vmem>>, vector<1x256xf32>,
    %304 = vector.extract_strided_slice %297 {offsets = [0, 3], sizes = [1, 256], strides = [1, 1]} : vector<1x384xf32> to vector<1x256xf32>
    %c3_288 = arith.constant 3 : index
    %c0_289 = arith.constant 0 : index
    %305 = vector.load %arg4[%c3_288, %c0_289] : memref<25x256xf32, #tpu.memory_space<vmem>>, vector<1x256xf32>
    tpu.vector_store %arg4[%c3_288, %c0_289], %304 {strides = array<i32>} : memref<25x256xf32, #tpu.memory_space<vmem>>, vector<1x256xf32>,
    %306 = vector.extract_strided_slice %297 {offsets = [0, 4], sizes = [1, 256], strides = [1, 1]} : vector<1x384xf32> to vector<1x256xf32>
    %c4_290 = arith.constant 4 : index
    %c0_291 = arith.constant 0 : index
    %307 = vector.load %arg4[%c4_290, %c0_291] : memref<25x256xf32, #tpu.memory_space<vmem>>, vector<1x256xf32>
    tpu.vector_store %arg4[%c4_290, %c0_291], %306 {strides = array<i32>} : memref<25x256xf32, #tpu.memory_space<vmem>>, vector<1x256xf32>,
    %308 = vector.extract_strided_slice %297 {offsets = [0, 16], sizes = [1, 256], strides = [1, 1]} : vector<1x384xf32> to vector<1x256xf32>
    %c5_292 = arith.constant 5 : index
    %c0_293 = arith.constant 0 : index
    %309 = vector.load %arg4[%c5_292, %c0_293] : memref<25x256xf32, #tpu.memory_space<vmem>>, vector<1x256xf32>
    tpu.vector_store %arg4[%c5_292, %c0_293], %308 {strides = array<i32>} : memref<25x256xf32, #tpu.memory_space<vmem>>, vector<1x256xf32>,
    %310 = vector.extract_strided_slice %297 {offsets = [0, 17], sizes = [1, 256], strides = [1, 1]} : vector<1x384xf32> to vector<1x256xf32>
    %c6_294 = arith.constant 6 : index
    %c0_295 = arith.constant 0 : index
    %311 = vector.load %arg4[%c6_294, %c0_295] : memref<25x256xf32, #tpu.memory_space<vmem>>, vector<1x256xf32>
    tpu.vector_store %arg4[%c6_294, %c0_295], %310 {strides = array<i32>} : memref<25x256xf32, #tpu.memory_space<vmem>>, vector<1x256xf32>,
    %312 = vector.extract_strided_slice %297 {offsets = [0, 18], sizes = [1, 256], strides = [1, 1]} : vector<1x384xf32> to vector<1x256xf32>
    %c7_296 = arith.constant 7 : index
    %c0_297 = arith.constant 0 : index
    %313 = vector.load %arg4[%c7_296, %c0_297] : memref<25x256xf32, #tpu.memory_space<vmem>>, vector<1x256xf32>
    tpu.vector_store %arg4[%c7_296, %c0_297], %312 {strides = array<i32>} : memref<25x256xf32, #tpu.memory_space<vmem>>, vector<1x256xf32>,
    %314 = vector.extract_strided_slice %297 {offsets = [0, 19], sizes = [1, 256], strides = [1, 1]} : vector<1x384xf32> to vector<1x256xf32>
    %c8_298 = arith.constant 8 : index
    %c0_299 = arith.constant 0 : index
    %315 = vector.load %arg4[%c8_298, %c0_299] : memref<25x256xf32, #tpu.memory_space<vmem>>, vector<1x256xf32>
    tpu.vector_store %arg4[%c8_298, %c0_299], %314 {strides = array<i32>} : memref<25x256xf32, #tpu.memory_space<vmem>>, vector<1x256xf32>,
    %316 = vector.extract_strided_slice %297 {offsets = [0, 20], sizes = [1, 256], strides = [1, 1]} : vector<1x384xf32> to vector<1x256xf32>
    %c9_300 = arith.constant 9 : index
    %c0_301 = arith.constant 0 : index
    %317 = vector.load %arg4[%c9_300, %c0_301] : memref<25x256xf32, #tpu.memory_space<vmem>>, vector<1x256xf32>
    tpu.vector_store %arg4[%c9_300, %c0_301], %316 {strides = array<i32>} : memref<25x256xf32, #tpu.memory_space<vmem>>, vector<1x256xf32>,
    %318 = vector.extract_strided_slice %297 {offsets = [0, 32], sizes = [1, 256], strides = [1, 1]} : vector<1x384xf32> to vector<1x256xf32>
    %c10_302 = arith.constant 10 : index
    %c0_303 = arith.constant 0 : index
    %319 = vector.load %arg4[%c10_302, %c0_303] : memref<25x256xf32, #tpu.memory_space<vmem>>, vector<1x256xf32>
    tpu.vector_store %arg4[%c10_302, %c0_303], %318 {strides = array<i32>} : memref<25x256xf32, #tpu.memory_space<vmem>>, vector<1x256xf32>,
    %320 = vector.extract_strided_slice %297 {offsets = [0, 33], sizes = [1, 256], strides = [1, 1]} : vector<1x384xf32> to vector<1x256xf32>
    %c11_304 = arith.constant 11 : index
    %c0_305 = arith.constant 0 : index
    %321 = vector.load %arg4[%c11_304, %c0_305] : memref<25x256xf32, #tpu.memory_space<vmem>>, vector<1x256xf32>
    tpu.vector_store %arg4[%c11_304, %c0_305], %320 {strides = array<i32>} : memref<25x256xf32, #tpu.memory_space<vmem>>, vector<1x256xf32>,
    %322 = vector.extract_strided_slice %297 {offsets = [0, 34], sizes = [1, 256], strides = [1, 1]} : vector<1x384xf32> to vector<1x256xf32>
    %c12_306 = arith.constant 12 : index
    %c0_307 = arith.constant 0 : index
    %323 = vector.load %arg4[%c12_306, %c0_307] : memref<25x256xf32, #tpu.memory_space<vmem>>, vector<1x256xf32>
    tpu.vector_store %arg4[%c12_306, %c0_307], %322 {strides = array<i32>} : memref<25x256xf32, #tpu.memory_space<vmem>>, vector<1x256xf32>,
    %324 = vector.extract_strided_slice %297 {offsets = [0, 35], sizes = [1, 256], strides = [1, 1]} : vector<1x384xf32> to vector<1x256xf32>
    %c13_308 = arith.constant 13 : index
    %c0_309 = arith.constant 0 : index
    %325 = vector.load %arg4[%c13_308, %c0_309] : memref<25x256xf32, #tpu.memory_space<vmem>>, vector<1x256xf32>
    tpu.vector_store %arg4[%c13_308, %c0_309], %324 {strides = array<i32>} : memref<25x256xf32, #tpu.memory_space<vmem>>, vector<1x256xf32>,
    %326 = vector.extract_strided_slice %297 {offsets = [0, 36], sizes = [1, 256], strides = [1, 1]} : vector<1x384xf32> to vector<1x256xf32>
    %c14_310 = arith.constant 14 : index
    %c0_311 = arith.constant 0 : index
    %327 = vector.load %arg4[%c14_310, %c0_311] : memref<25x256xf32, #tpu.memory_space<vmem>>, vector<1x256xf32>
    tpu.vector_store %arg4[%c14_310, %c0_311], %326 {strides = array<i32>} : memref<25x256xf32, #tpu.memory_space<vmem>>, vector<1x256xf32>,
    %328 = vector.extract_strided_slice %297 {offsets = [0, 48], sizes = [1, 256], strides = [1, 1]} : vector<1x384xf32> to vector<1x256xf32>
    %c15_312 = arith.constant 15 : index
    %c0_313 = arith.constant 0 : index
    %329 = vector.load %arg4[%c15_312, %c0_313] : memref<25x256xf32, #tpu.memory_space<vmem>>, vector<1x256xf32>
    tpu.vector_store %arg4[%c15_312, %c0_313], %328 {strides = array<i32>} : memref<25x256xf32, #tpu.memory_space<vmem>>, vector<1x256xf32>,
    %330 = vector.extract_strided_slice %297 {offsets = [0, 49], sizes = [1, 256], strides = [1, 1]} : vector<1x384xf32> to vector<1x256xf32>
    %c16_314 = arith.constant 16 : index
    %c0_315 = arith.constant 0 : index
    %331 = vector.load %arg4[%c16_314, %c0_315] : memref<25x256xf32, #tpu.memory_space<vmem>>, vector<1x256xf32>
    tpu.vector_store %arg4[%c16_314, %c0_315], %330 {strides = array<i32>} : memref<25x256xf32, #tpu.memory_space<vmem>>, vector<1x256xf32>,
    %332 = vector.extract_strided_slice %297 {offsets = [0, 50], sizes = [1, 256], strides = [1, 1]} : vector<1x384xf32> to vector<1x256xf32>
    %c17_316 = arith.constant 17 : index
    %c0_317 = arith.constant 0 : index
    %333 = vector.load %arg4[%c17_316, %c0_317] : memref<25x256xf32, #tpu.memory_space<vmem>>, vector<1x256xf32>
    tpu.vector_store %arg4[%c17_316, %c0_317], %332 {strides = array<i32>} : memref<25x256xf32, #tpu.memory_space<vmem>>, vector<1x256xf32>,
    %334 = vector.extract_strided_slice %297 {offsets = [0, 51], sizes = [1, 256], strides = [1, 1]} : vector<1x384xf32> to vector<1x256xf32>
    %c18_318 = arith.constant 18 : index
    %c0_319 = arith.constant 0 : index
    %335 = vector.load %arg4[%c18_318, %c0_319] : memref<25x256xf32, #tpu.memory_space<vmem>>, vector<1x256xf32>
    tpu.vector_store %arg4[%c18_318, %c0_319], %334 {strides = array<i32>} : memref<25x256xf32, #tpu.memory_space<vmem>>, vector<1x256xf32>,
    %336 = vector.extract_strided_slice %297 {offsets = [0, 52], sizes = [1, 256], strides = [1, 1]} : vector<1x384xf32> to vector<1x256xf32>
    %c19_320 = arith.constant 19 : index
    %c0_321 = arith.constant 0 : index
    %337 = vector.load %arg4[%c19_320, %c0_321] : memref<25x256xf32, #tpu.memory_space<vmem>>, vector<1x256xf32>
    tpu.vector_store %arg4[%c19_320, %c0_321], %336 {strides = array<i32>} : memref<25x256xf32, #tpu.memory_space<vmem>>, vector<1x256xf32>,
    %338 = vector.extract_strided_slice %297 {offsets = [0, 64], sizes = [1, 256], strides = [1, 1]} : vector<1x384xf32> to vector<1x256xf32>
    %c20_322 = arith.constant 20 : index
    %c0_323 = arith.constant 0 : index
    %339 = vector.load %arg4[%c20_322, %c0_323] : memref<25x256xf32, #tpu.memory_space<vmem>>, vector<1x256xf32>
    tpu.vector_store %arg4[%c20_322, %c0_323], %338 {strides = array<i32>} : memref<25x256xf32, #tpu.memory_space<vmem>>, vector<1x256xf32>,
    %340 = vector.extract_strided_slice %297 {offsets = [0, 65], sizes = [1, 256], strides = [1, 1]} : vector<1x384xf32> to vector<1x256xf32>
    %c21_324 = arith.constant 21 : index
    %c0_325 = arith.constant 0 : index
    %341 = vector.load %arg4[%c21_324, %c0_325] : memref<25x256xf32, #tpu.memory_space<vmem>>, vector<1x256xf32>
    tpu.vector_store %arg4[%c21_324, %c0_325], %340 {strides = array<i32>} : memref<25x256xf32, #tpu.memory_space<vmem>>, vector<1x256xf32>,
    %342 = vector.extract_strided_slice %297 {offsets = [0, 66], sizes = [1, 256], strides = [1, 1]} : vector<1x384xf32> to vector<1x256xf32>
    %c22_326 = arith.constant 22 : index
    %c0_327 = arith.constant 0 : index
    %343 = vector.load %arg4[%c22_326, %c0_327] : memref<25x256xf32, #tpu.memory_space<vmem>>, vector<1x256xf32>
    tpu.vector_store %arg4[%c22_326, %c0_327], %342 {strides = array<i32>} : memref<25x256xf32, #tpu.memory_space<vmem>>, vector<1x256xf32>,
    %344 = vector.extract_strided_slice %297 {offsets = [0, 67], sizes = [1, 256], strides = [1, 1]} : vector<1x384xf32> to vector<1x256xf32>
    %c23_328 = arith.constant 23 : index
    %c0_329 = arith.constant 0 : index
    %345 = vector.load %arg4[%c23_328, %c0_329] : memref<25x256xf32, #tpu.memory_space<vmem>>, vector<1x256xf32>
    tpu.vector_store %arg4[%c23_328, %c0_329], %344 {strides = array<i32>} : memref<25x256xf32, #tpu.memory_space<vmem>>, vector<1x256xf32>,
    %346 = vector.extract_strided_slice %297 {offsets = [0, 68], sizes = [1, 256], strides = [1, 1]} : vector<1x384xf32> to vector<1x256xf32>
    %c24_330 = arith.constant 24 : index
    %c0_331 = arith.constant 0 : index
    %347 = vector.load %arg4[%c24_330, %c0_331] : memref<25x256xf32, #tpu.memory_space<vmem>>, vector<1x256xf32>
    tpu.vector_store %arg4[%c24_330, %c0_331], %346 {strides = array<i32>} : memref<25x256xf32, #tpu.memory_space<vmem>>, vector<1x256xf32>,
    %c0_332 = arith.constant 0 : index
    %c0_333 = arith.constant 0 : index
    %348 = vector.load %arg4[%c0_332, %c0_333] : memref<25x256xf32, #tpu.memory_space<vmem>>, vector<25x256xf32>
    %cst_334 = arith.constant dense<0.000000e+00> : vector<10x256xf32>
    %349 = tpu.matmul %238, %348, %cst_334 {dimension_numbers = #tpu.dot_dimension_numbers<[1], [0], [0], [1], [0, 0, 1, 1], [], []>} : vector<10x25xf32>, vector<25x256xf32>, vector<10x256xf32> -> vector<10x256xf32>
    %350 = vector.broadcast %0 : vector<10x1xf32> to vector<10x256xf32>
    %351 = arith.addf %349, %350 : vector<10x256xf32>
    %c1_335 = arith.constant 1 : index
    %c2_336 = arith.constant 2 : index
    %c0_337 = arith.constant 0 : index
    %c0_338 = arith.constant 0 : index
    %352 = vector.load %arg3[%c1_335, %c2_336, %c0_337, %c0_338] : memref<2x3x10x256xf32, #tpu.memory_space<vmem>>, vector<1x1x10x256xf32>
    %353 = vector.shape_cast %352 : vector<1x1x10x256xf32> to vector<10x256xf32>
    %354 = vector.shape_cast %351 : vector<10x256xf32> to vector<1x1x10x256xf32>
    tpu.vector_store %arg3[%c1_335, %c2_336, %c0_337, %c0_338], %354 {strides = array<i32>} : memref<2x3x10x256xf32, #tpu.memory_space<vmem>>, vector<1x1x10x256xf32>,
    return
  }
}

</mosaic_0001>

<llo_original>
// kernel: tpu_custom_call.1
$region0: #{tpu_custom_call.1}
  #allocation0 [shape = 'u32[]', space=smem, size = 0x4, offset = 0x4, fixed_abs, tag = 'smem constant byte address 0x4 - core index']
  #allocation1 [shape = 'u32[144,128]{1,0:T(1,128)}', space=vmem, size = 0x12000, scoped, tag = 'internal scratch']
  #allocation2 [shape = 'f32[25,256]{1,0:T(8,128)}', space=vmem, size = 0x8000, scoped, tag = 'scratch operand']
  %s0 = inlined_call_operand.vmem [shape: f32[6,384], index: 0, kind: input, shape index: {}]
  %s1 = inlined_call_operand.vmem [shape: f32[3,10,25], index: 1, kind: input, shape index: {}]
  %s2 = inlined_call_operand.vmem [shape: f32[10,1], index: 2, kind: input, shape index: {}]
  %s3 = inlined_call_operand.vmem [shape: f32[2,3,10,256], index: 3, kind: output, shape index: {}]
  %s4 = sld [smem:[#allocation0]]
  $region22: #{tpu_custom_call.1} parent=0
    _
  %s6 = ssub.s32 1, %s4
  %s7 = scalar_select 0, %s6, %s4
  // Predicated region
  $region2: #{tpu_custom_call.1} parent=0 // pred_check
    _
  $region3: #{tpu_custom_call.1} parent=0 // pred_check_branch
    %9 = sbr.rel (0) target = $region5
  $region4: #{tpu_custom_call.1} parent=0 // pred_region
    _
  $region5: #{tpu_custom_call.1} parent=0 // pred_fallthru
    _
  // Predicated region
  $region6: #{tpu_custom_call.1} parent=0 // pred_check
    _
  $region7: #{tpu_custom_call.1} parent=0 // pred_check_branch
    %11 = sbr.rel (0) target = $region9
  $region8: #{tpu_custom_call.1} parent=0 // pred_region
    _
  $region9: #{tpu_custom_call.1} parent=0 // pred_fallthru
    _
  // Predicated region
  $region10: #{tpu_custom_call.1} parent=0 // pred_check
    _
  $region11: #{tpu_custom_call.1} parent=0 // pred_check_branch
    %13 = sbr.rel (0) target = $region13
  $region12: #{tpu_custom_call.1} parent=0 // pred_region
    _
  $region13: #{tpu_custom_call.1} parent=0 // pred_fallthru
    _
  %v14 = vld [vmem:[%s2] sm:$0xff]
  %v15 = vld [vmem:[%s2 + $0x8] sm:$0x3]
  %v16 = vld [vmem:[%s1] sm:$0xff]
  %v17 = vld [vmem:[%s1 + $0x8] sm:$0x3]
  %v18 = vld [vmem:[%s0] ss:$8 sm:$0x7]
  %v19 = vlaneseq
  %vm20 = vcmp.ge.s32.totalorder %v19, 0
  %vm21 = vcmp.lt.s32.totalorder %v19, 256
  %vm22 = vmand %vm20, %vm21
  %23 = vst.msk [vmem:[#allocation2] ss:$8 sm:$0x3] %vm22, %v18
  %24 = vst.msk [vmem:[#allocation2] ss:$8 sm:$0x0] %vm22, %v18
  %26 = vrot.lane.b32.xlu0 %v18, 127
  %v27 = vpop.permute.xlu0 %26
  %v28 = vrot.slane %v27, 1
  %vm29 = vcmask 1039360
  %v30 = vsel %vm29, %v27, %v28
  %s32 = scalar_lea.vmem [#allocation2], 1
  %33 = vst.msk [vmem:[%s32] ss:$8 sm:$0x3] %vm22, %v30
  %34 = vst.msk [vmem:[%s32] ss:$8 sm:$0x0] %vm22, %v30
  %35 = vrot.lane.b32.xlu0 %v18, 126
  %v36 = vpop.permute.xlu0 %35
  %v37 = vrot.slane %v36, 1
  %vm38 = vcmask 1031168
  %v39 = vsel %vm38, %v36, %v37
  %s41 = scalar_lea.vmem [#allocation2], 2
  %42 = vst.msk [vmem:[%s41] ss:$8 sm:$0x3] %vm22, %v39
  %43 = vst.msk [vmem:[%s41] ss:$8 sm:$0x0] %vm22, %v39
  %44 = vrot.lane.b32.xlu0 %v18, 125
  %v45 = vpop.permute.xlu0 %44
  %v46 = vrot.slane %v45, 1
  %vm47 = vcmask 1022976
  %v48 = vsel %vm47, %v45, %v46
  %s50 = scalar_lea.vmem [#allocation2], 3
  %51 = vst.msk [vmem:[%s50] ss:$8 sm:$0x3] %vm22, %v48
  %52 = vst.msk [vmem:[%s50] ss:$8 sm:$0x0] %vm22, %v48
  %53 = vrot.lane.b32.xlu0 %v18, 124
  %v54 = vpop.permute.xlu0 %53
  %v55 = vrot.slane %v54, 1
  %vm56 = vcmask 1014784
  %v57 = vsel %vm56, %v54, %v55
  %s59 = scalar_lea.vmem [#allocation2], 4
  %60 = vst.msk [vmem:[%s59] ss:$8 sm:$0x3] %vm22, %v57
  %61 = vst.msk [vmem:[%s59] ss:$8 sm:$0x0] %vm22, %v57
  %62 = vrot.lane.b32.xlu0 %v18, 112
  %v63 = vpop.permute.xlu0 %62
  %v64 = vrot.slane %v63, 1
  %vm65 = vcmask 916480
  %v66 = vsel %vm65, %v63, %v64
  %s68 = scalar_lea.vmem [#allocation2], 5
  %69 = vst.msk [vmem:[%s68] ss:$8 sm:$0x3] %vm22, %v66
  %70 = vst.msk [vmem:[%s68] ss:$8 sm:$0x0] %vm22, %v66
  %71 = vrot.lane.b32.xlu0 %v18, 111
  %v72 = vpop.permute.xlu0 %71
  %v73 = vrot.slane %v72, 1
  %vm74 = vcmask 908288
  %v75 = vsel %vm74, %v72, %v73
  %s77 = scalar_lea.vmem [#allocation2], 6
  %78 = vst.msk [vmem:[%s77] ss:$8 sm:$0x3] %vm22, %v75
  %79 = vst.msk [vmem:[%s77] ss:$8 sm:$0x0] %vm22, %v75
  %80 = vrot.lane.b32.xlu0 %v18, 110
  %v81 = vpop.permute.xlu0 %80
  %v82 = vrot.slane %v81, 1
  %vm83 = vcmask 900096
  %v84 = vsel %vm83, %v81, %v82
  %s86 = scalar_lea.vmem [#allocation2], 7
  %87 = vst.msk [vmem:[%s86] ss:$8 sm:$0x3] %vm22, %v84
  %88 = vst.msk [vmem:[%s86] ss:$8 sm:$0x0] %vm22, %v84
  %89 = vrot.lane.b32.xlu0 %v18, 109
  %v90 = vpop.permute.xlu0 %89
  %v91 = vrot.slane %v90, 1
  %vm92 = vcmask 891904
  %v93 = vsel %vm92, %v90, %v91
  %s95 = scalar_lea.vmem [#allocation2], 16
  %96 = vst.msk [vmem:[%s95] ss:$8 sm:$0x3] %vm22, %v93
  %97 = vst.msk [vmem:[%s95] ss:$8 sm:$0x0] %vm22, %v93
  %98 = vrot.lane.b32.xlu0 %v18, 108
  %v99 = vpop.permute.xlu0 %98
  %v100 = vrot.slane %v99, 1
  %vm101 = vcmask 883712
  %v102 = vsel %vm101, %v99, %v100
  %s104 = scalar_lea.vmem [#allocation2], 17
  %105 = vst.msk [vmem:[%s104] ss:$8 sm:$0x3] %vm22, %v102
  %106 = vst.msk [vmem:[%s104] ss:$8 sm:$0x0] %vm22, %v102
  %107 = vrot.lane.b32.xlu0 %v18, 96
  %v108 = vpop.permute.xlu0 %107
  %v109 = vrot.slane %v108, 1
  %vm110 = vcmask 785408
  %v111 = vsel %vm110, %v108, %v109
  %s113 = scalar_lea.vmem [#allocation2], 18
  %114 = vst.msk [vmem:[%s113] ss:$8 sm:$0x3] %vm22, %v111
  %115 = vst.msk [vmem:[%s113] ss:$8 sm:$0x0] %vm22, %v111
  %116 = vrot.lane.b32.xlu0 %v18, 95
  %v117 = vpop.permute.xlu0 %116
  %v118 = vrot.slane %v117, 1
  %vm119 = vcmask 777216
  %v120 = vsel %vm119, %v117, %v118
  %s122 = scalar_lea.vmem [#allocation2], 19
  %123 = vst.msk [vmem:[%s122] ss:$8 sm:$0x3] %vm22, %v120
  %124 = vst.msk [vmem:[%s122] ss:$8 sm:$0x0] %vm22, %v120
  %125 = vrot.lane.b32.xlu0 %v18, 94
  %v126 = vpop.permute.xlu0 %125
  %v127 = vrot.slane %v126, 1
  %vm128 = vcmask 769024
  %v129 = vsel %vm128, %v126, %v127
  %s131 = scalar_lea.vmem [#allocation2], 20
  %132 = vst.msk [vmem:[%s131] ss:$8 sm:$0x3] %vm22, %v129
  %133 = vst.msk [vmem:[%s131] ss:$8 sm:$0x0] %vm22, %v129
  %134 = vrot.lane.b32.xlu0 %v18, 93
  %v135 = vpop.permute.xlu0 %134
  %v136 = vrot.slane %v135, 1
  %vm137 = vcmask 760832
  %v138 = vsel %vm137, %v135, %v136
  %s140 = scalar_lea.vmem [#allocation2], 21
  %141 = vst.msk [vmem:[%s140] ss:$8 sm:$0x3] %vm22, %v138
  %142 = vst.msk [vmem:[%s140] ss:$8 sm:$0x0] %vm22, %v138
  %143 = vrot.lane.b32.xlu0 %v18, 92
  %v144 = vpop.permute.xlu0 %143
  %v145 = vrot.slane %v144, 1
  %vm146 = vcmask 752640
  %v147 = vsel %vm146, %v144, %v145
  %s149 = scalar_lea.vmem [#allocation2], 22
  %150 = vst.msk [vmem:[%s149] ss:$8 sm:$0x3] %vm22, %v147
  %151 = vst.msk [vmem:[%s149] ss:$8 sm:$0x0] %vm22, %v147
  %152 = vrot.lane.b32.xlu0 %v18, 80
  %v153 = vpop.permute.xlu0 %152
  %v154 = vrot.slane %v153, 1
  %vm155 = vcmask 654336
  %v156 = vsel %vm155, %v153, %v154
  %s158 = scalar_lea.vmem [#allocation2], 23
  %159 = vst.msk [vmem:[%s158] ss:$8 sm:$0x3] %vm22, %v156
  %160 = vst.msk [vmem:[%s158] ss:$8 sm:$0x0] %vm22, %v156
  %161 = vrot.lane.b32.xlu0 %v18, 79
  %v162 = vpop.permute.xlu0 %161
  %v163 = vrot.slane %v162, 1
  %vm164 = vcmask 646144
  %v165 = vsel %vm164, %v162, %v163
  %s167 = scalar_lea.vmem [#allocation2], 32
  %168 = vst.msk [vmem:[%s167] ss:$8 sm:$0x3] %vm22, %v165
  %169 = vst.msk [vmem:[%s167] ss:$8 sm:$0x0] %vm22, %v165
  %170 = vrot.lane.b32.xlu0 %v18, 78
  %v171 = vpop.permute.xlu0 %170
  %v172 = vrot.slane %v171, 1
  %vm173 = vcmask 637952
  %v174 = vsel %vm173, %v171, %v172
  %s176 = scalar_lea.vmem [#allocation2], 33
  %177 = vst.msk [vmem:[%s176] ss:$8 sm:$0x3] %vm22, %v174
  %178 = vst.msk [vmem:[%s176] ss:$8 sm:$0x0] %vm22, %v174
  %179 = vrot.lane.b32.xlu0 %v18, 77
  %v180 = vpop.permute.xlu0 %179
  %v181 = vrot.slane %v180, 1
  %vm182 = vcmask 629760
  %v183 = vsel %vm182, %v180, %v181
  %s185 = scalar_lea.vmem [#allocation2], 34
  %186 = vst.msk [vmem:[%s185] ss:$8 sm:$0x3] %vm22, %v183
  %187 = vst.msk [vmem:[%s185] ss:$8 sm:$0x0] %vm22, %v183
  %188 = vrot.lane.b32.xlu0 %v18, 76
  %v189 = vpop.permute.xlu0 %188
  %v190 = vrot.slane %v189, 1
  %vm191 = vcmask 621568
  %v192 = vsel %vm191, %v189, %v190
  %s194 = scalar_lea.vmem [#allocation2], 35
  %195 = vst.msk [vmem:[%s194] ss:$8 sm:$0x3] %vm22, %v192
  %196 = vst.msk [vmem:[%s194] ss:$8 sm:$0x0] %vm22, %v192
  %197 = vrot.lane.b32.xlu0 %v18, 64
  %v198 = vpop.permute.xlu0 %197
  %v199 = vrot.slane %v198, 1
  %vm200 = vcmask 523264
  %v201 = vsel %vm200, %v198, %v199
  %s203 = scalar_lea.vmem [#allocation2], 36
  %204 = vst.msk [vmem:[%s203] ss:$8 sm:$0x3] %vm22, %v201
  %205 = vst.msk [vmem:[%s203] ss:$8 sm:$0x0] %vm22, %v201
  %206 = vrot.lane.b32.xlu0 %v18, 63
  %v207 = vpop.permute.xlu0 %206
  %v208 = vrot.slane %v207, 1
  %vm209 = vcmask 515072
  %v210 = vsel %vm209, %v207, %v208
  %s212 = scalar_lea.vmem [#allocation2], 37
  %213 = vst.msk [vmem:[%s212] ss:$8 sm:$0x3] %vm22, %v210
  %214 = vst.msk [vmem:[%s212] ss:$8 sm:$0x0] %vm22, %v210
  %215 = vrot.lane.b32.xlu0 %v18, 62
  %v216 = vpop.permute.xlu0 %215
  %v217 = vrot.slane %v216, 1
  %vm218 = vcmask 506880
  %v219 = vsel %vm218, %v216, %v217
  %s221 = scalar_lea.vmem [#allocation2], 38
  %222 = vst.msk [vmem:[%s221] ss:$8 sm:$0x3] %vm22, %v219
  %223 = vst.msk [vmem:[%s221] ss:$8 sm:$0x0] %vm22, %v219
  %224 = vrot.lane.b32.xlu0 %v18, 61
  %v225 = vpop.permute.xlu0 %224
  %v226 = vrot.slane %v225, 1
  %vm227 = vcmask 498688
  %v228 = vsel %vm227, %v225, %v226
  %s230 = scalar_lea.vmem [#allocation2], 39
  %231 = vst.msk [vmem:[%s230] ss:$8 sm:$0x3] %vm22, %v228
  %232 = vst.msk [vmem:[%s230] ss:$8 sm:$0x0] %vm22, %v228
  %233 = vrot.lane.b32.xlu0 %v18, 60
  %v234 = vpop.permute.xlu0 %233
  %v235 = vrot.slane %v234, 1
  %vm236 = vcmask 490496
  %v237 = vsel %vm236, %v234, %v235
  %s239 = scalar_lea.vmem [#allocation2], 48
  %240 = vst.msk [vmem:[%s239] ss:$8 sm:$0x3] %vm22, %v237
  %241 = vst.msk [vmem:[%s239] ss:$8 sm:$0x0] %vm22, %v237
  %v242 = vld [vmem:[#allocation2] sm:$0xff]
  %v243 = vld [vmem:[#allocation2 + $0x8] sm:$0xff]
  %v244 = vld [vmem:[#allocation2 + $0x10] sm:$0xff]
  %v245 = vld [vmem:[#allocation2 + $0x18] sm:$0xff]
  %v246 = vld [vmem:[#allocation2 + $0x20] sm:$0xff]
  %v247 = vld [vmem:[#allocation2 + $0x28] sm:$0xff]
  %v248 = vld [vmem:[#allocation2 + $0x30] sm:$0x1]
  %v249 = vld [vmem:[#allocation2 + $0x38] sm:$0x1]
  %251 = vset.pattern.permute.xlu0 0
  %252 = vperm.xlu0 %251, %v14
  %v253 = vpop.permute.xlu0 %252
  %256 = vset.pattern.permute.xlu0 0
  %257 = vperm.xlu0 %256, %v15
  %v258 = vpop.permute.xlu0 %257
  %vm260 = vcmask 203776
  %v262 = vsel %vm260, %v16, 0
  %v265 = vsel %vm260, %v17, 0
  %vm267 = vcmask 1040384
  %v269 = vsel %vm267, %v248, 0
  %v272 = vsel %vm267, %v249, 0
  %274 = vmatprep.subr.mxu0 0.0
  %275 = vmatpush1.msra.mxu0 0.0
  %276 = vmatprep.subr.mxu0 0.0
  %277 = vmatpush1.msra.mxu0 0.0
  %278 = vmatprep.subr.mxu0 0.0
  %279 = vmatpush1.msra.mxu0 0.0
  %280 = vmatprep.subr.mxu0 0.0
  %281 = vmatpush1.msra.mxu0 0.0
  %282 = vmatprep.subr.mxu0 0.0
  %283 = vmatpush1.msra.mxu0 0.0
  %284 = vmatprep.subr.mxu0 0.0
  %285 = vmatpush1.msra.mxu0 0.0
  %286 = vmatprep.subr.mxu0 0.0
  %287 = vmatpush1.msra.mxu0 0.0
  %288 = vmatprep.subr.mxu0 0.0
  %289 = vmatpush1.msra.mxu0 0.0
  %290 = vmatprep.subr.mxu0 0.0
  %291 = vmatpush1.msra.mxu0 0.0
  %292 = vmatprep.subr.mxu0 0.0
  %293 = vmatpush1.msra.mxu0 0.0
  %294 = vmatprep.subr.mxu0 0.0
  %295 = vmatpush1.msra.mxu0 0.0
  %296 = vmatprep.subr.mxu0 0.0
  %297 = vmatpush1.msra.mxu0 0.0
  %298 = vmatprep.subr.mxu0 %v272
  %299 = vmatpush1.msra.mxu0 %v269
  %300 = vmatprep.subr.mxu0 %v247
  %301 = vmatpush1.msra.mxu0 %v246
  %302 = vmatprep.subr.mxu0 %v245
  %303 = vmatpush1.msra.mxu0 %v244
  %304 = vmatprep.subr.mxu0 %v243
  %305 = vmatpush1.msra.mxu0 %v242
  %306 = vmatprep.subr.mxu0 0.0
  %307 = vmatpush2.msra.mxu0 0.0
  %308 = vmatprep.subr.mxu0 0.0
  %309 = vmatpush2.msra.mxu0 0.0
  %310 = vmatprep.subr.mxu0 0.0
  %311 = vmatpush2.msra.mxu0 0.0
  %312 = vmatprep.subr.mxu0 0.0
  %313 = vmatpush2.msra.mxu0 0.0
  %314 = vmatprep.subr.mxu0 0.0
  %315 = vmatpush2.msra.mxu0 0.0
  %316 = vmatprep.subr.mxu0 0.0
  %317 = vmatpush2.msra.mxu0 0.0
  %318 = vmatprep.subr.mxu0 0.0
  %319 = vmatpush2.msra.mxu0 0.0
  %320 = vmatprep.subr.mxu0 0.0
  %321 = vmatpush2.msra.mxu0 0.0
  %322 = vmatprep.subr.mxu0 0.0
  %323 = vmatpush2.msra.mxu0 0.0
  %324 = vmatprep.subr.mxu0 0.0
  %325 = vmatpush2.msra.mxu0 0.0
  %326 = vmatprep.subr.mxu0 0.0
  %327 = vmatpush2.msra.mxu0 0.0
  %328 = vmatprep.subr.mxu0 0.0
  %329 = vmatpush2.msra.mxu0 0.0
  %330 = vmatprep.subr.mxu0 0.0
  %331 = vmatpush2.msra.mxu0 0.0
  %332 = vmatprep.subr.mxu0 0.0
  %333 = vmatpush2.msra.mxu0 0.0
  %334 = vmatprep.subr.mxu0 0.0
  %335 = vmatpush2.msra.mxu0 0.0
  %336 = vmatprep.subr.mxu0 0.0
  %337 = vmatpush2.msra.mxu0 0.0
  %338 = vmatprep.mubr.f32.mxu0 0.0
  %339 = vmatmul.mubr.f32.gmra.mxu0 %v262
  %v340 = vpop.f32.mrf.mxu0
  %v341 = vadd.f32 %v253, %v340
  %v342 = vpop.f32.mrf.mxu0
  %v343 = vadd.f32 %v253, %v342
  %344 = vmatprep.mubr.f32.mxu0 0.0
  %345 = vmatmul.mubr.f32.gmra.mxu0 %v265
  %v346 = vpop.f32.mrf.mxu0
  %v347 = vadd.f32 %v258, %v346
  %v348 = vpop.f32.mrf.mxu0
  %v349 = vadd.f32 %v258, %v348
  %350 = vdwg.mxu0
  %351 = vst [vmem:[%s3] sm:$0xff] %v341
  %352 = vst [vmem:[%s3 + $0x8] sm:$0xff] %v343
  %353 = vst [vmem:[%s3 + $0x10] sm:$0x3] %v347
  %354 = vst [vmem:[%s3 + $0x18] sm:$0x3] %v349
  %s355 = scalar_lea.vmem %s0, 3
  %v356 = vld [vmem:[%s355] ss:$8 sm:$0x7]
  %357 = vst.msk [vmem:[#allocation2] ss:$8 sm:$0x3] %vm22, %v356
  %358 = vst.msk [vmem:[#allocation2] ss:$8 sm:$0x0] %vm22, %v356
  %360 = vrot.lane.b32.xlu0 %v356, 127
  %v361 = vpop.permute.xlu0 %360
  %v362 = vrot.slane %v361, 1
  %v363 = vsel %vm29, %v361, %v362
  %365 = vst.msk [vmem:[%s32] ss:$8 sm:$0x3] %vm22, %v363
  %366 = vst.msk [vmem:[%s32] ss:$8 sm:$0x0] %vm22, %v363
  %367 = vrot.lane.b32.xlu0 %v356, 126
  %v368 = vpop.permute.xlu0 %367
  %v369 = vrot.slane %v368, 1
  %v370 = vsel %vm38, %v368, %v369
  %372 = vst.msk [vmem:[%s41] ss:$8 sm:$0x3] %vm22, %v370
  %373 = vst.msk [vmem:[%s41] ss:$8 sm:$0x0] %vm22, %v370
  %374 = vrot.lane.b32.xlu0 %v356, 125
  %v375 = vpop.permute.xlu0 %374
  %v376 = vrot.slane %v375, 1
  %v377 = vsel %vm47, %v375, %v376
  %379 = vst.msk [vmem:[%s50] ss:$8 sm:$0x3] %vm22, %v377
  %380 = vst.msk [vmem:[%s50] ss:$8 sm:$0x0] %vm22, %v377
  %381 = vrot.lane.b32.xlu0 %v356, 124
  %v382 = vpop.permute.xlu0 %381
  %v383 = vrot.slane %v382, 1
  %v384 = vsel %vm56, %v382, %v383
  %386 = vst.msk [vmem:[%s59] ss:$8 sm:$0x3] %vm22, %v384
  %387 = vst.msk [vmem:[%s59] ss:$8 sm:$0x0] %vm22, %v384
  %388 = vrot.lane.b32.xlu0 %v356, 112
  %v389 = vpop.permute.xlu0 %388
  %v390 = vrot.slane %v389, 1
  %v391 = vsel %vm65, %v389, %v390
  %393 = vst.msk [vmem:[%s68] ss:$8 sm:$0x3] %vm22, %v391
  %394 = vst.msk [vmem:[%s68] ss:$8 sm:$0x0] %vm22, %v391
  %395 = vrot.lane.b32.xlu0 %v356, 111
  %v396 = vpop.permute.xlu0 %395
  %v397 = vrot.slane %v396, 1
  %v398 = vsel %vm74, %v396, %v397
  %400 = vst.msk [vmem:[%s77] ss:$8 sm:$0x3] %vm22, %v398
  %401 = vst.msk [vmem:[%s77] ss:$8 sm:$0x0] %vm22, %v398
  %402 = vrot.lane.b32.xlu0 %v356, 110
  %v403 = vpop.permute.xlu0 %402
  %v404 = vrot.slane %v403, 1
  %v405 = vsel %vm83, %v403, %v404
  %407 = vst.msk [vmem:[%s86] ss:$8 sm:$0x3] %vm22, %v405
  %408 = vst.msk [vmem:[%s86] ss:$8 sm:$0x0] %vm22, %v405
  %409 = vrot.lane.b32.xlu0 %v356, 109
  %v410 = vpop.permute.xlu0 %409
  %v411 = vrot.slane %v410, 1
  %v412 = vsel %vm92, %v410, %v411
  %414 = vst.msk [vmem:[%s95] ss:$8 sm:$0x3] %vm22, %v412
  %415 = vst.msk [vmem:[%s95] ss:$8 sm:$0x0] %vm22, %v412
  %416 = vrot.lane.b32.xlu0 %v356, 108
  %v417 = vpop.permute.xlu0 %416
  %v418 = vrot.slane %v417, 1
  %v419 = vsel %vm101, %v417, %v418
  %421 = vst.msk [vmem:[%s104] ss:$8 sm:$0x3] %vm22, %v419
  %422 = vst.msk [vmem:[%s104] ss:$8 sm:$0x0] %vm22, %v419
  %423 = vrot.lane.b32.xlu0 %v356, 96
  %v424 = vpop.permute.xlu0 %423
  %v425 = vrot.slane %v424, 1
  %v426 = vsel %vm110, %v424, %v425
  %428 = vst.msk [vmem:[%s113] ss:$8 sm:$0x3] %vm22, %v426
  %429 = vst.msk [vmem:[%s113] ss:$8 sm:$0x0] %vm22, %v426
  %430 = vrot.lane.b32.xlu0 %v356, 95
  %v431 = vpop.permute.xlu0 %430
  %v432 = vrot.slane %v431, 1
  %v433 = vsel %vm119, %v431, %v432
  %435 = vst.msk [vmem:[%s122] ss:$8 sm:$0x3] %vm22, %v433
  %436 = vst.msk [vmem:[%s122] ss:$8 sm:$0x0] %vm22, %v433
  %437 = vrot.lane.b32.xlu0 %v356, 94
  %v438 = vpop.permute.xlu0 %437
  %v439 = vrot.slane %v438, 1
  %v440 = vsel %vm128, %v438, %v439
  %442 = vst.msk [vmem:[%s131] ss:$8 sm:$0x3] %vm22, %v440
  %443 = vst.msk [vmem:[%s131] ss:$8 sm:$0x0] %vm22, %v440
  %444 = vrot.lane.b32.xlu0 %v356, 93
  %v445 = vpop.permute.xlu0 %444
  %v446 = vrot.slane %v445, 1
  %v447 = vsel %vm137, %v445, %v446
  %449 = vst.msk [vmem:[%s140] ss:$8 sm:$0x3] %vm22, %v447
  %450 = vst.msk [vmem:[%s140] ss:$8 sm:$0x0] %vm22, %v447
  %451 = vrot.lane.b32.xlu0 %v356, 92
  %v452 = vpop.permute.xlu0 %451
  %v453 = vrot.slane %v452, 1
  %v454 = vsel %vm146, %v452, %v453
  %456 = vst.msk [vmem:[%s149] ss:$8 sm:$0x3] %vm22, %v454
  %457 = vst.msk [vmem:[%s149] ss:$8 sm:$0x0] %vm22, %v454
  %458 = vrot.lane.b32.xlu0 %v356, 80
  %v459 = vpop.permute.xlu0 %458
  %v460 = vrot.slane %v459, 1
  %v461 = vsel %vm155, %v459, %v460
  %463 = vst.msk [vmem:[%s158] ss:$8 sm:$0x3] %vm22, %v461
  %464 = vst.msk [vmem:[%s158] ss:$8 sm:$0x0] %vm22, %v461
  %465 = vrot.lane.b32.xlu0 %v356, 79
  %v466 = vpop.permute.xlu0 %465
  %v467 = vrot.slane %v466, 1
  %v468 = vsel %vm164, %v466, %v467
  %470 = vst.msk [vmem:[%s167] ss:$8 sm:$0x3] %vm22, %v468
  %471 = vst.msk [vmem:[%s167] ss:$8 sm:$0x0] %vm22, %v468
  %472 = vrot.lane.b32.xlu0 %v356, 78
  %v473 = vpop.permute.xlu0 %472
  %v474 = vrot.slane %v473, 1
  %v475 = vsel %vm173, %v473, %v474
  %477 = vst.msk [vmem:[%s176] ss:$8 sm:$0x3] %vm22, %v475
  %478 = vst.msk [vmem:[%s176] ss:$8 sm:$0x0] %vm22, %v475
  %479 = vrot.lane.b32.xlu0 %v356, 77
  %v480 = vpop.permute.xlu0 %479
  %v481 = vrot.slane %v480, 1
  %v482 = vsel %vm182, %v480, %v481
  %484 = vst.msk [vmem:[%s185] ss:$8 sm:$0x3] %vm22, %v482
  %485 = vst.msk [vmem:[%s185] ss:$8 sm:$0x0] %vm22, %v482
  %486 = vrot.lane.b32.xlu0 %v356, 76
  %v487 = vpop.permute.xlu0 %486
  %v488 = vrot.slane %v487, 1
  %v489 = vsel %vm191, %v487, %v488
  %491 = vst.msk [vmem:[%s194] ss:$8 sm:$0x3] %vm22, %v489
  %492 = vst.msk [vmem:[%s194] ss:$8 sm:$0x0] %vm22, %v489
  %493 = vrot.lane.b32.xlu0 %v356, 64
  %v494 = vpop.permute.xlu0 %493
  %v495 = vrot.slane %v494, 1
  %v496 = vsel %vm200, %v494, %v495
  %498 = vst.msk [vmem:[%s203] ss:$8 sm:$0x3] %vm22, %v496
  %499 = vst.msk [vmem:[%s203] ss:$8 sm:$0x0] %vm22, %v496
  %500 = vrot.lane.b32.xlu0 %v356, 63
  %v501 = vpop.permute.xlu0 %500
  %v502 = vrot.slane %v501, 1
  %v503 = vsel %vm209, %v501, %v502
  %505 = vst.msk [vmem:[%s212] ss:$8 sm:$0x3] %vm22, %v503
  %506 = vst.msk [vmem:[%s212] ss:$8 sm:$0x0] %vm22, %v503
  %507 = vrot.lane.b32.xlu0 %v356, 62
  %v508 = vpop.permute.xlu0 %507
  %v509 = vrot.slane %v508, 1
  %v510 = vsel %vm218, %v508, %v509
  %512 = vst.msk [vmem:[%s221] ss:$8 sm:$0x3] %vm22, %v510
  %513 = vst.msk [vmem:[%s221] ss:$8 sm:$0x0] %vm22, %v510
  %514 = vrot.lane.b32.xlu0 %v356, 61
  %v515 = vpop.permute.xlu0 %514
  %v516 = vrot.slane %v515, 1
  %v517 = vsel %vm227, %v515, %v516
  %519 = vst.msk [vmem:[%s230] ss:$8 sm:$0x3] %vm22, %v517
  %520 = vst.msk [vmem:[%s230] ss:$8 sm:$0x0] %vm22, %v517
  %521 = vrot.lane.b32.xlu0 %v356, 60
  %v522 = vpop.permute.xlu0 %521
  %v523 = vrot.slane %v522, 1
  %v524 = vsel %vm236, %v522, %v523
  %526 = vst.msk [vmem:[%s239] ss:$8 sm:$0x3] %vm22, %v524
  %527 = vst.msk [vmem:[%s239] ss:$8 sm:$0x0] %vm22, %v524
  %v528 = vld [vmem:[#allocation2] sm:$0xff]
  %v529 = vld [vmem:[#allocation2 + $0x8] sm:$0xff]
  %v530 = vld [vmem:[#allocation2 + $0x10] sm:$0xff]
  %v531 = vld [vmem:[#allocation2 + $0x18] sm:$0xff]
  %v532 = vld [vmem:[#allocation2 + $0x20] sm:$0xff]
  %v533 = vld [vmem:[#allocation2 + $0x28] sm:$0xff]
  %v534 = vld [vmem:[#allocation2 + $0x30] sm:$0x1]
  %v535 = vld [vmem:[#allocation2 + $0x38] sm:$0x1]
  %v537 = vsel %vm267, %v534, 0
  %v540 = vsel %vm267, %v535, 0
  %542 = vmatprep.subr.mxu0 0.0
  %543 = vmatpush1.msra.mxu0 0.0
  %544 = vmatprep.subr.mxu0 0.0
  %545 = vmatpush1.msra.mxu0 0.0
  %546 = vmatprep.subr.mxu0 0.0
  %547 = vmatpush1.msra.mxu0 0.0
  %548 = vmatprep.subr.mxu0 0.0
  %549 = vmatpush1.msra.mxu0 0.0
  %550 = vmatprep.subr.mxu0 0.0
  %551 = vmatpush1.msra.mxu0 0.0
  %552 = vmatprep.subr.mxu0 0.0
  %553 = vmatpush1.msra.mxu0 0.0
  %554 = vmatprep.subr.mxu0 0.0
  %555 = vmatpush1.msra.mxu0 0.0
  %556 = vmatprep.subr.mxu0 0.0
  %557 = vmatpush1.msra.mxu0 0.0
  %558 = vmatprep.subr.mxu0 0.0
  %559 = vmatpush1.msra.mxu0 0.0
  %560 = vmatprep.subr.mxu0 0.0
  %561 = vmatpush1.msra.mxu0 0.0
  %562 = vmatprep.subr.mxu0 0.0
  %563 = vmatpush1.msra.mxu0 0.0
  %564 = vmatprep.subr.mxu0 0.0
  %565 = vmatpush1.msra.mxu0 0.0
  %566 = vmatprep.subr.mxu0 %v540
  %567 = vmatpush1.msra.mxu0 %v537
  %568 = vmatprep.subr.mxu0 %v533
  %569 = vmatpush1.msra.mxu0 %v532
  %570 = vmatprep.subr.mxu0 %v531
  %571 = vmatpush1.msra.mxu0 %v530
  %572 = vmatprep.subr.mxu0 %v529
  %573 = vmatpush1.msra.mxu0 %v528
  %574 = vmatprep.subr.mxu0 0.0
  %575 = vmatpush2.msra.mxu0 0.0
  %576 = vmatprep.subr.mxu0 0.0
  %577 = vmatpush2.msra.mxu0 0.0
  %578 = vmatprep.subr.mxu0 0.0
  %579 = vmatpush2.msra.mxu0 0.0
  %580 = vmatprep.subr.mxu0 0.0
  %581 = vmatpush2.msra.mxu0 0.0
  %582 = vmatprep.subr.mxu0 0.0
  %583 = vmatpush2.msra.mxu0 0.0
  %584 = vmatprep.subr.mxu0 0.0
  %585 = vmatpush2.msra.mxu0 0.0
  %586 = vmatprep.subr.mxu0 0.0
  %587 = vmatpush2.msra.mxu0 0.0
  %588 = vmatprep.subr.mxu0 0.0
  %589 = vmatpush2.msra.mxu0 0.0
  %590 = vmatprep.subr.mxu0 0.0
  %591 = vmatpush2.msra.mxu0 0.0
  %592 = vmatprep.subr.mxu0 0.0
  %593 = vmatpush2.msra.mxu0 0.0
  %594 = vmatprep.subr.mxu0 0.0
  %595 = vmatpush2.msra.mxu0 0.0
  %596 = vmatprep.subr.mxu0 0.0
  %597 = vmatpush2.msra.mxu0 0.0
  %598 = vmatprep.subr.mxu0 0.0
  %599 = vmatpush2.msra.mxu0 0.0
  %600 = vmatprep.subr.mxu0 0.0
  %601 = vmatpush2.msra.mxu0 0.0
  %602 = vmatprep.subr.mxu0 0.0
  %603 = vmatpush2.msra.mxu0 0.0
  %604 = vmatprep.subr.mxu0 0.0
  %605 = vmatpush2.msra.mxu0 0.0
  %606 = vmatprep.mubr.f32.mxu0 0.0
  %607 = vmatmul.mubr.f32.gmra.mxu0 %v262
  %v608 = vpop.f32.mrf.mxu0
  %v609 = vadd.f32 %v253, %v608
  %v610 = vpop.f32.mrf.mxu0
  %v611 = vadd.f32 %v253, %v610
  %612 = vmatprep.mubr.f32.mxu0 0.0
  %613 = vmatmul.mubr.f32.gmra.mxu0 %v265
  %v614 = vpop.f32.mrf.mxu0
  %v615 = vadd.f32 %v258, %v614
  %v616 = vpop.f32.mrf.mxu0
  %v617 = vadd.f32 %v258, %v616
  %618 = vdwg.mxu0
  %s619 = scalar_lea.vmem %s3, 96
  %620 = vst [vmem:[%s619] sm:$0xff] %v609
  %621 = vst [vmem:[%s619 + $0x8] sm:$0xff] %v611
  %622 = vst [vmem:[%s619 + $0x10] sm:$0x3] %v615
  %623 = vst [vmem:[%s619 + $0x18] sm:$0x3] %v617
  %s624 = scalar_lea.vmem %s1, 16
  %v625 = vld [vmem:[%s624] sm:$0xff]
  %v626 = vld [vmem:[%s624 + $0x8] sm:$0x3]
  %s627 = scalar_lea.vmem %s0, 1
  %v628 = vld [vmem:[%s627] ss:$8 sm:$0x7]
  %629 = vst.msk [vmem:[#allocation2] ss:$8 sm:$0x3] %vm22, %v628
  %630 = vst.msk [vmem:[#allocation2] ss:$8 sm:$0x0] %vm22, %v628
  %632 = vrot.lane.b32.xlu0 %v628, 127
  %v633 = vpop.permute.xlu0 %632
  %v634 = vrot.slane %v633, 1
  %v635 = vsel %vm29, %v633, %v634
  %637 = vst.msk [vmem:[%s32] ss:$8 sm:$0x3] %vm22, %v635
  %638 = vst.msk [vmem:[%s32] ss:$8 sm:$0x0] %vm22, %v635
  %639 = vrot.lane.b32.xlu0 %v628, 126
  %v640 = vpop.permute.xlu0 %639
  %v641 = vrot.slane %v640, 1
  %v642 = vsel %vm38, %v640, %v641
  %644 = vst.msk [vmem:[%s41] ss:$8 sm:$0x3] %vm22, %v642
  %645 = vst.msk [vmem:[%s41] ss:$8 sm:$0x0] %vm22, %v642
  %646 = vrot.lane.b32.xlu0 %v628, 125
  %v647 = vpop.permute.xlu0 %646
  %v648 = vrot.slane %v647, 1
  %v649 = vsel %vm47, %v647, %v648
  %651 = vst.msk [vmem:[%s50] ss:$8 sm:$0x3] %vm22, %v649
  %652 = vst.msk [vmem:[%s50] ss:$8 sm:$0x0] %vm22, %v649
  %653 = vrot.lane.b32.xlu0 %v628, 124
  %v654 = vpop.permute.xlu0 %653
  %v655 = vrot.slane %v654, 1
  %v656 = vsel %vm56, %v654, %v655
  %658 = vst.msk [vmem:[%s59] ss:$8 sm:$0x3] %vm22, %v656
  %659 = vst.msk [vmem:[%s59] ss:$8 sm:$0x0] %vm22, %v656
  %660 = vrot.lane.b32.xlu0 %v628, 112
  %v661 = vpop.permute.xlu0 %660
  %v662 = vrot.slane %v661, 1
  %v663 = vsel %vm65, %v661, %v662
  %665 = vst.msk [vmem:[%s68] ss:$8 sm:$0x3] %vm22, %v663
  %666 = vst.msk [vmem:[%s68] ss:$8 sm:$0x0] %vm22, %v663
  %667 = vrot.lane.b32.xlu0 %v628, 111
  %v668 = vpop.permute.xlu0 %667
  %v669 = vrot.slane %v668, 1
  %v670 = vsel %vm74, %v668, %v669
  %672 = vst.msk [vmem:[%s77] ss:$8 sm:$0x3] %vm22, %v670
  %673 = vst.msk [vmem:[%s77] ss:$8 sm:$0x0] %vm22, %v670
  %674 = vrot.lane.b32.xlu0 %v628, 110
  %v675 = vpop.permute.xlu0 %674
  %v676 = vrot.slane %v675, 1
  %v677 = vsel %vm83, %v675, %v676
  %679 = vst.msk [vmem:[%s86] ss:$8 sm:$0x3] %vm22, %v677
  %680 = vst.msk [vmem:[%s86] ss:$8 sm:$0x0] %vm22, %v677
  %681 = vrot.lane.b32.xlu0 %v628, 109
  %v682 = vpop.permute.xlu0 %681
  %v683 = vrot.slane %v682, 1
  %v684 = vsel %vm92, %v682, %v683
  %686 = vst.msk [vmem:[%s95] ss:$8 sm:$0x3] %vm22, %v684
  %687 = vst.msk [vmem:[%s95] ss:$8 sm:$0x0] %vm22, %v684
  %688 = vrot.lane.b32.xlu0 %v628, 108
  %v689 = vpop.permute.xlu0 %688
  %v690 = vrot.slane %v689, 1
  %v691 = vsel %vm101, %v689, %v690
  %693 = vst.msk [vmem:[%s104] ss:$8 sm:$0x3] %vm22, %v691
  %694 = vst.msk [vmem:[%s104] ss:$8 sm:$0x0] %vm22, %v691
  %695 = vrot.lane.b32.xlu0 %v628, 96
  %v696 = vpop.permute.xlu0 %695
  %v697 = vrot.slane %v696, 1
  %v698 = vsel %vm110, %v696, %v697
  %700 = vst.msk [vmem:[%s113] ss:$8 sm:$0x3] %vm22, %v698
  %701 = vst.msk [vmem:[%s113] ss:$8 sm:$0x0] %vm22, %v698
  %702 = vrot.lane.b32.xlu0 %v628, 95
  %v703 = vpop.permute.xlu0 %702
  %v704 = vrot.slane %v703, 1
  %v705 = vsel %vm119, %v703, %v704
  %707 = vst.msk [vmem:[%s122] ss:$8 sm:$0x3] %vm22, %v705
  %708 = vst.msk [vmem:[%s122] ss:$8 sm:$0x0] %vm22, %v705
  %709 = vrot.lane.b32.xlu0 %v628, 94
  %v710 = vpop.permute.xlu0 %709
  %v711 = vrot.slane %v710, 1
  %v712 = vsel %vm128, %v710, %v711
  %714 = vst.msk [vmem:[%s131] ss:$8 sm:$0x3] %vm22, %v712
  %715 = vst.msk [vmem:[%s131] ss:$8 sm:$0x0] %vm22, %v712
  %716 = vrot.lane.b32.xlu0 %v628, 93
  %v717 = vpop.permute.xlu0 %716
  %v718 = vrot.slane %v717, 1
  %v719 = vsel %vm137, %v717, %v718
  %721 = vst.msk [vmem:[%s140] ss:$8 sm:$0x3] %vm22, %v719
  %722 = vst.msk [vmem:[%s140] ss:$8 sm:$0x0] %vm22, %v719
  %723 = vrot.lane.b32.xlu0 %v628, 92
  %v724 = vpop.permute.xlu0 %723
  %v725 = vrot.slane %v724, 1
  %v726 = vsel %vm146, %v724, %v725
  %728 = vst.msk [vmem:[%s149] ss:$8 sm:$0x3] %vm22, %v726
  %729 = vst.msk [vmem:[%s149] ss:$8 sm:$0x0] %vm22, %v726
  %730 = vrot.lane.b32.xlu0 %v628, 80
  %v731 = vpop.permute.xlu0 %730
  %v732 = vrot.slane %v731, 1
  %v733 = vsel %vm155, %v731, %v732
  %735 = vst.msk [vmem:[%s158] ss:$8 sm:$0x3] %vm22, %v733
  %736 = vst.msk [vmem:[%s158] ss:$8 sm:$0x0] %vm22, %v733
  %737 = vrot.lane.b32.xlu0 %v628, 79
  %v738 = vpop.permute.xlu0 %737
  %v739 = vrot.slane %v738, 1
  %v740 = vsel %vm164, %v738, %v739
  %742 = vst.msk [vmem:[%s167] ss:$8 sm:$0x3] %vm22, %v740
  %743 = vst.msk [vmem:[%s167] ss:$8 sm:$0x0] %vm22, %v740
  %744 = vrot.lane.b32.xlu0 %v628, 78
  %v745 = vpop.permute.xlu0 %744
  %v746 = vrot.slane %v745, 1
  %v747 = vsel %vm173, %v745, %v746
  %749 = vst.msk [vmem:[%s176] ss:$8 sm:$0x3] %vm22, %v747
  %750 = vst.msk [vmem:[%s176] ss:$8 sm:$0x0] %vm22, %v747
  %751 = vrot.lane.b32.xlu0 %v628, 77
  %v752 = vpop.permute.xlu0 %751
  %v753 = vrot.slane %v752, 1
  %v754 = vsel %vm182, %v752, %v753
  %756 = vst.msk [vmem:[%s185] ss:$8 sm:$0x3] %vm22, %v754
  %757 = vst.msk [vmem:[%s185] ss:$8 sm:$0x0] %vm22, %v754
  %758 = vrot.lane.b32.xlu0 %v628, 76
  %v759 = vpop.permute.xlu0 %758
  %v760 = vrot.slane %v759, 1
  %v761 = vsel %vm191, %v759, %v760
  %763 = vst.msk [vmem:[%s194] ss:$8 sm:$0x3] %vm22, %v761
  %764 = vst.msk [vmem:[%s194] ss:$8 sm:$0x0] %vm22, %v761
  %765 = vrot.lane.b32.xlu0 %v628, 64
  %v766 = vpop.permute.xlu0 %765
  %v767 = vrot.slane %v766, 1
  %v768 = vsel %vm200, %v766, %v767
  %770 = vst.msk [vmem:[%s203] ss:$8 sm:$0x3] %vm22, %v768
  %771 = vst.msk [vmem:[%s203] ss:$8 sm:$0x0] %vm22, %v768
  %772 = vrot.lane.b32.xlu0 %v628, 63
  %v773 = vpop.permute.xlu0 %772
  %v774 = vrot.slane %v773, 1
  %v775 = vsel %vm209, %v773, %v774
  %777 = vst.msk [vmem:[%s212] ss:$8 sm:$0x3] %vm22, %v775
  %778 = vst.msk [vmem:[%s212] ss:$8 sm:$0x0] %vm22, %v775
  %779 = vrot.lane.b32.xlu0 %v628, 62
  %v780 = vpop.permute.xlu0 %779
  %v781 = vrot.slane %v780, 1
  %v782 = vsel %vm218, %v780, %v781
  %784 = vst.msk [vmem:[%s221] ss:$8 sm:$0x3] %vm22, %v782
  %785 = vst.msk [vmem:[%s221] ss:$8 sm:$0x0] %vm22, %v782
  %786 = vrot.lane.b32.xlu0 %v628, 61
  %v787 = vpop.permute.xlu0 %786
  %v788 = vrot.slane %v787, 1
  %v789 = vsel %vm227, %v787, %v788
  %791 = vst.msk [vmem:[%s230] ss:$8 sm:$0x3] %vm22, %v789
  %792 = vst.msk [vmem:[%s230] ss:$8 sm:$0x0] %vm22, %v789
  %793 = vrot.lane.b32.xlu0 %v628, 60
  %v794 = vpop.permute.xlu0 %793
  %v795 = vrot.slane %v794, 1
  %v796 = vsel %vm236, %v794, %v795
  %798 = vst.msk [vmem:[%s239] ss:$8 sm:$0x3] %vm22, %v796
  %799 = vst.msk [vmem:[%s239] ss:$8 sm:$0x0] %vm22, %v796
  %v800 = vld [vmem:[#allocation2] sm:$0xff]
  %v801 = vld [vmem:[#allocation2 + $0x8] sm:$0xff]
  %v802 = vld [vmem:[#allocation2 + $0x10] sm:$0xff]
  %v803 = vld [vmem:[#allocation2 + $0x18] sm:$0xff]
  %v804 = vld [vmem:[#allocation2 + $0x20] sm:$0xff]
  %v805 = vld [vmem:[#allocation2 + $0x28] sm:$0xff]
  %v806 = vld [vmem:[#allocation2 + $0x30] sm:$0x1]
  %v807 = vld [vmem:[#allocation2 + $0x38] sm:$0x1]
  %v809 = vsel %vm260, %v625, 0
  %v812 = vsel %vm260, %v626, 0
  %v815 = vsel %vm267, %v806, 0
  %v818 = vsel %vm267, %v807, 0
  %820 = vmatprep.subr.mxu0 0.0
  %821 = vmatpush1.msra.mxu0 0.0
  %822 = vmatprep.subr.mxu0 0.0
  %823 = vmatpush1.msra.mxu0 0.0
  %824 = vmatprep.subr.mxu0 0.0
  %825 = vmatpush1.msra.mxu0 0.0
  %826 = vmatprep.subr.mxu0 0.0
  %827 = vmatpush1.msra.mxu0 0.0
  %828 = vmatprep.subr.mxu0 0.0
  %829 = vmatpush1.msra.mxu0 0.0
  %830 = vmatprep.subr.mxu0 0.0
  %831 = vmatpush1.msra.mxu0 0.0
  %832 = vmatprep.subr.mxu0 0.0
  %833 = vmatpush1.msra.mxu0 0.0
  %834 = vmatprep.subr.mxu0 0.0
  %835 = vmatpush1.msra.mxu0 0.0
  %836 = vmatprep.subr.mxu0 0.0
  %837 = vmatpush1.msra.mxu0 0.0
  %838 = vmatprep.subr.mxu0 0.0
  %839 = vmatpush1.msra.mxu0 0.0
  %840 = vmatprep.subr.mxu0 0.0
  %841 = vmatpush1.msra.mxu0 0.0
  %842 = vmatprep.subr.mxu0 0.0
  %843 = vmatpush1.msra.mxu0 0.0
  %844 = vmatprep.subr.mxu0 %v818
  %845 = vmatpush1.msra.mxu0 %v815
  %846 = vmatprep.subr.mxu0 %v805
  %847 = vmatpush1.msra.mxu0 %v804
  %848 = vmatprep.subr.mxu0 %v803
  %849 = vmatpush1.msra.mxu0 %v802
  %850 = vmatprep.subr.mxu0 %v801
  %851 = vmatpush1.msra.mxu0 %v800
  %852 = vmatprep.subr.mxu0 0.0
  %853 = vmatpush2.msra.mxu0 0.0
  %854 = vmatprep.subr.mxu0 0.0
  %855 = vmatpush2.msra.mxu0 0.0
  %856 = vmatprep.subr.mxu0 0.0
  %857 = vmatpush2.msra.mxu0 0.0
  %858 = vmatprep.subr.mxu0 0.0
  %859 = vmatpush2.msra.mxu0 0.0
  %860 = vmatprep.subr.mxu0 0.0
  %861 = vmatpush2.msra.mxu0 0.0
  %862 = vmatprep.subr.mxu0 0.0
  %863 = vmatpush2.msra.mxu0 0.0
  %864 = vmatprep.subr.mxu0 0.0
  %865 = vmatpush2.msra.mxu0 0.0
  %866 = vmatprep.subr.mxu0 0.0
  %867 = vmatpush2.msra.mxu0 0.0
  %868 = vmatprep.subr.mxu0 0.0
  %869 = vmatpush2.msra.mxu0 0.0
  %870 = vmatprep.subr.mxu0 0.0
  %871 = vmatpush2.msra.mxu0 0.0
  %872 = vmatprep.subr.mxu0 0.0
  %873 = vmatpush2.msra.mxu0 0.0
  %874 = vmatprep.subr.mxu0 0.0
  %875 = vmatpush2.msra.mxu0 0.0
  %876 = vmatprep.subr.mxu0 0.0
  %877 = vmatpush2.msra.mxu0 0.0
  %878 = vmatprep.subr.mxu0 0.0
  %879 = vmatpush2.msra.mxu0 0.0
  %880 = vmatprep.subr.mxu0 0.0
  %881 = vmatpush2.msra.mxu0 0.0
  %882 = vmatprep.subr.mxu0 0.0
  %883 = vmatpush2.msra.mxu0 0.0
  %884 = vmatprep.mubr.f32.mxu0 0.0
  %885 = vmatmul.mubr.f32.gmra.mxu0 %v809
  %v886 = vpop.f32.mrf.mxu0
  %v887 = vadd.f32 %v253, %v886
  %v888 = vpop.f32.mrf.mxu0
  %v889 = vadd.f32 %v253, %v888
  %890 = vmatprep.mubr.f32.mxu0 0.0
  %891 = vmatmul.mubr.f32.gmra.mxu0 %v812
  %v892 = vpop.f32.mrf.mxu0
  %v893 = vadd.f32 %v258, %v892
  %v894 = vpop.f32.mrf.mxu0
  %v895 = vadd.f32 %v258, %v894
  %896 = vdwg.mxu0
  %s897 = scalar_lea.vmem %s3, 32
  %898 = vst [vmem:[%s897] sm:$0xff] %v887
  %899 = vst [vmem:[%s897 + $0x8] sm:$0xff] %v889
  %900 = vst [vmem:[%s897 + $0x10] sm:$0x3] %v893
  %901 = vst [vmem:[%s897 + $0x18] sm:$0x3] %v895
  %s902 = scalar_lea.vmem %s0, 4
  %v903 = vld [vmem:[%s902] ss:$8 sm:$0x7]
  %904 = vst.msk [vmem:[#allocation2] ss:$8 sm:$0x3] %vm22, %v903
  %905 = vst.msk [vmem:[#allocation2] ss:$8 sm:$0x0] %vm22, %v903
  %907 = vrot.lane.b32.xlu0 %v903, 127
  %v908 = vpop.permute.xlu0 %907
  %v909 = vrot.slane %v908, 1
  %v910 = vsel %vm29, %v908, %v909
  %912 = vst.msk [vmem:[%s32] ss:$8 sm:$0x3] %vm22, %v910
  %913 = vst.msk [vmem:[%s32] ss:$8 sm:$0x0] %vm22, %v910
  %914 = vrot.lane.b32.xlu0 %v903, 126
  %v915 = vpop.permute.xlu0 %914
  %v916 = vrot.slane %v915, 1
  %v917 = vsel %vm38, %v915, %v916
  %919 = vst.msk [vmem:[%s41] ss:$8 sm:$0x3] %vm22, %v917
  %920 = vst.msk [vmem:[%s41] ss:$8 sm:$0x0] %vm22, %v917
  %921 = vrot.lane.b32.xlu0 %v903, 125
  %v922 = vpop.permute.xlu0 %921
  %v923 = vrot.slane %v922, 1
  %v924 = vsel %vm47, %v922, %v923
  %926 = vst.msk [vmem:[%s50] ss:$8 sm:$0x3] %vm22, %v924
  %927 = vst.msk [vmem:[%s50] ss:$8 sm:$0x0] %vm22, %v924
  %928 = vrot.lane.b32.xlu0 %v903, 124
  %v929 = vpop.permute.xlu0 %928
  %v930 = vrot.slane %v929, 1
  %v931 = vsel %vm56, %v929, %v930
  %933 = vst.msk [vmem:[%s59] ss:$8 sm:$0x3] %vm22, %v931
  %934 = vst.msk [vmem:[%s59] ss:$8 sm:$0x0] %vm22, %v931
  %935 = vrot.lane.b32.xlu0 %v903, 112
  %v936 = vpop.permute.xlu0 %935
  %v937 = vrot.slane %v936, 1
  %v938 = vsel %vm65, %v936, %v937
  %940 = vst.msk [vmem:[%s68] ss:$8 sm:$0x3] %vm22, %v938
  %941 = vst.msk [vmem:[%s68] ss:$8 sm:$0x0] %vm22, %v938
  %942 = vrot.lane.b32.xlu0 %v903, 111
  %v943 = vpop.permute.xlu0 %942
  %v944 = vrot.slane %v943, 1
  %v945 = vsel %vm74, %v943, %v944
  %947 = vst.msk [vmem:[%s77] ss:$8 sm:$0x3] %vm22, %v945
  %948 = vst.msk [vmem:[%s77] ss:$8 sm:$0x0] %vm22, %v945
  %949 = vrot.lane.b32.xlu0 %v903, 110
  %v950 = vpop.permute.xlu0 %949
  %v951 = vrot.slane %v950, 1
  %v952 = vsel %vm83, %v950, %v951
  %954 = vst.msk [vmem:[%s86] ss:$8 sm:$0x3] %vm22, %v952
  %955 = vst.msk [vmem:[%s86] ss:$8 sm:$0x0] %vm22, %v952
  %956 = vrot.lane.b32.xlu0 %v903, 109
  %v957 = vpop.permute.xlu0 %956
  %v958 = vrot.slane %v957, 1
  %v959 = vsel %vm92, %v957, %v958
  %961 = vst.msk [vmem:[%s95] ss:$8 sm:$0x3] %vm22, %v959
  %962 = vst.msk [vmem:[%s95] ss:$8 sm:$0x0] %vm22, %v959
  %963 = vrot.lane.b32.xlu0 %v903, 108
  %v964 = vpop.permute.xlu0 %963
  %v965 = vrot.slane %v964, 1
  %v966 = vsel %vm101, %v964, %v965
  %968 = vst.msk [vmem:[%s104] ss:$8 sm:$0x3] %vm22, %v966
  %969 = vst.msk [vmem:[%s104] ss:$8 sm:$0x0] %vm22, %v966
  %970 = vrot.lane.b32.xlu0 %v903, 96
  %v971 = vpop.permute.xlu0 %970
  %v972 = vrot.slane %v971, 1
  %v973 = vsel %vm110, %v971, %v972
  %975 = vst.msk [vmem:[%s113] ss:$8 sm:$0x3] %vm22, %v973
  %976 = vst.msk [vmem:[%s113] ss:$8 sm:$0x0] %vm22, %v973
  %977 = vrot.lane.b32.xlu0 %v903, 95
  %v978 = vpop.permute.xlu0 %977
  %v979 = vrot.slane %v978, 1
  %v980 = vsel %vm119, %v978, %v979
  %982 = vst.msk [vmem:[%s122] ss:$8 sm:$0x3] %vm22, %v980
  %983 = vst.msk [vmem:[%s122] ss:$8 sm:$0x0] %vm22, %v980
  %984 = vrot.lane.b32.xlu0 %v903, 94
  %v985 = vpop.permute.xlu0 %984
  %v986 = vrot.slane %v985, 1
  %v987 = vsel %vm128, %v985, %v986
  %989 = vst.msk [vmem:[%s131] ss:$8 sm:$0x3] %vm22, %v987
  %990 = vst.msk [vmem:[%s131] ss:$8 sm:$0x0] %vm22, %v987
  %991 = vrot.lane.b32.xlu0 %v903, 93
  %v992 = vpop.permute.xlu0 %991
  %v993 = vrot.slane %v992, 1
  %v994 = vsel %vm137, %v992, %v993
  %996 = vst.msk [vmem:[%s140] ss:$8 sm:$0x3] %vm22, %v994
  %997 = vst.msk [vmem:[%s140] ss:$8 sm:$0x0] %vm22, %v994
  %998 = vrot.lane.b32.xlu0 %v903, 92
  %v999 = vpop.permute.xlu0 %998
  %v1000 = vrot.slane %v999, 1
  %v1001 = vsel %vm146, %v999, %v1000
  %1003 = vst.msk [vmem:[%s149] ss:$8 sm:$0x3] %vm22, %v1001
  %1004 = vst.msk [vmem:[%s149] ss:$8 sm:$0x0] %vm22, %v1001
  %1005 = vrot.lane.b32.xlu0 %v903, 80
  %v1006 = vpop.permute.xlu0 %1005
  %v1007 = vrot.slane %v1006, 1
  %v1008 = vsel %vm155, %v1006, %v1007
  %1010 = vst.msk [vmem:[%s158] ss:$8 sm:$0x3] %vm22, %v1008
  %1011 = vst.msk [vmem:[%s158] ss:$8 sm:$0x0] %vm22, %v1008
  %1012 = vrot.lane.b32.xlu0 %v903, 79
  %v1013 = vpop.permute.xlu0 %1012
  %v1014 = vrot.slane %v1013, 1
  %v1015 = vsel %vm164, %v1013, %v1014
  %1017 = vst.msk [vmem:[%s167] ss:$8 sm:$0x3] %vm22, %v1015
  %1018 = vst.msk [vmem:[%s167] ss:$8 sm:$0x0] %vm22, %v1015
  %1019 = vrot.lane.b32.xlu0 %v903, 78
  %v1020 = vpop.permute.xlu0 %1019
  %v1021 = vrot.slane %v1020, 1
  %v1022 = vsel %vm173, %v1020, %v1021
  %1024 = vst.msk [vmem:[%s176] ss:$8 sm:$0x3] %vm22, %v1022
  %1025 = vst.msk [vmem:[%s176] ss:$8 sm:$0x0] %vm22, %v1022
  %1026 = vrot.lane.b32.xlu0 %v903, 77
  %v1027 = vpop.permute.xlu0 %1026
  %v1028 = vrot.slane %v1027, 1
  %v1029 = vsel %vm182, %v1027, %v1028
  %1031 = vst.msk [vmem:[%s185] ss:$8 sm:$0x3] %vm22, %v1029
  %1032 = vst.msk [vmem:[%s185] ss:$8 sm:$0x0] %vm22, %v1029
  %1033 = vrot.lane.b32.xlu0 %v903, 76
  %v1034 = vpop.permute.xlu0 %1033
  %v1035 = vrot.slane %v1034, 1
  %v1036 = vsel %vm191, %v1034, %v1035
  %1038 = vst.msk [vmem:[%s194] ss:$8 sm:$0x3] %vm22, %v1036
  %1039 = vst.msk [vmem:[%s194] ss:$8 sm:$0x0] %vm22, %v1036
  %1040 = vrot.lane.b32.xlu0 %v903, 64
  %v1041 = vpop.permute.xlu0 %1040
  %v1042 = vrot.slane %v1041, 1
  %v1043 = vsel %vm200, %v1041, %v1042
  %1045 = vst.msk [vmem:[%s203] ss:$8 sm:$0x3] %vm22, %v1043
  %1046 = vst.msk [vmem:[%s203] ss:$8 sm:$0x0] %vm22, %v1043
  %1047 = vrot.lane.b32.xlu0 %v903, 63
  %v1048 = vpop.permute.xlu0 %1047
  %v1049 = vrot.slane %v1048, 1
  %v1050 = vsel %vm209, %v1048, %v1049
  %1052 = vst.msk [vmem:[%s212] ss:$8 sm:$0x3] %vm22, %v1050
  %1053 = vst.msk [vmem:[%s212] ss:$8 sm:$0x0] %vm22, %v1050
  %1054 = vrot.lane.b32.xlu0 %v903, 62
  %v1055 = vpop.permute.xlu0 %1054
  %v1056 = vrot.slane %v1055, 1
  %v1057 = vsel %vm218, %v1055, %v1056
  %1059 = vst.msk [vmem:[%s221] ss:$8 sm:$0x3] %vm22, %v1057
  %1060 = vst.msk [vmem:[%s221] ss:$8 sm:$0x0] %vm22, %v1057
  %1061 = vrot.lane.b32.xlu0 %v903, 61
  %v1062 = vpop.permute.xlu0 %1061
  %v1063 = vrot.slane %v1062, 1
  %v1064 = vsel %vm227, %v1062, %v1063
  %1066 = vst.msk [vmem:[%s230] ss:$8 sm:$0x3] %vm22, %v1064
  %1067 = vst.msk [vmem:[%s230] ss:$8 sm:$0x0] %vm22, %v1064
  %1068 = vrot.lane.b32.xlu0 %v903, 60
  %v1069 = vpop.permute.xlu0 %1068
  %v1070 = vrot.slane %v1069, 1
  %v1071 = vsel %vm236, %v1069, %v1070
  %1073 = vst.msk [vmem:[%s239] ss:$8 sm:$0x3] %vm22, %v1071
  %1074 = vst.msk [vmem:[%s239] ss:$8 sm:$0x0] %vm22, %v1071
  %v1075 = vld [vmem:[#allocation2] sm:$0xff]
  %v1076 = vld [vmem:[#allocation2 + $0x8] sm:$0xff]
  %v1077 = vld [vmem:[#allocation2 + $0x10] sm:$0xff]
  %v1078 = vld [vmem:[#allocation2 + $0x18] sm:$0xff]
  %v1079 = vld [vmem:[#allocation2 + $0x20] sm:$0xff]
  %v1080 = vld [vmem:[#allocation2 + $0x28] sm:$0xff]
  %v1081 = vld [vmem:[#allocation2 + $0x30] sm:$0x1]
  %v1082 = vld [vmem:[#allocation2 + $0x38] sm:$0x1]
  %v1084 = vsel %vm267, %v1081, 0
  %v1087 = vsel %vm267, %v1082, 0
  %1089 = vmatprep.subr.mxu0 0.0
  %1090 = vmatpush1.msra.mxu0 0.0
  %1091 = vmatprep.subr.mxu0 0.0
  %1092 = vmatpush1.msra.mxu0 0.0
  %1093 = vmatprep.subr.mxu0 0.0
  %1094 = vmatpush1.msra.mxu0 0.0
  %1095 = vmatprep.subr.mxu0 0.0
  %1096 = vmatpush1.msra.mxu0 0.0
  %1097 = vmatprep.subr.mxu0 0.0
  %1098 = vmatpush1.msra.mxu0 0.0
  %1099 = vmatprep.subr.mxu0 0.0
  %1100 = vmatpush1.msra.mxu0 0.0
  %1101 = vmatprep.subr.mxu0 0.0
  %1102 = vmatpush1.msra.mxu0 0.0
  %1103 = vmatprep.subr.mxu0 0.0
  %1104 = vmatpush1.msra.mxu0 0.0
  %1105 = vmatprep.subr.mxu0 0.0
  %1106 = vmatpush1.msra.mxu0 0.0
  %1107 = vmatprep.subr.mxu0 0.0
  %1108 = vmatpush1.msra.mxu0 0.0
  %1109 = vmatprep.subr.mxu0 0.0
  %1110 = vmatpush1.msra.mxu0 0.0
  %1111 = vmatprep.subr.mxu0 0.0
  %1112 = vmatpush1.msra.mxu0 0.0
  %1113 = vmatprep.subr.mxu0 %v1087
  %1114 = vmatpush1.msra.mxu0 %v1084
  %1115 = vmatprep.subr.mxu0 %v1080
  %1116 = vmatpush1.msra.mxu0 %v1079
  %1117 = vmatprep.subr.mxu0 %v1078
  %1118 = vmatpush1.msra.mxu0 %v1077
  %1119 = vmatprep.subr.mxu0 %v1076
  %1120 = vmatpush1.msra.mxu0 %v1075
  %1121 = vmatprep.subr.mxu0 0.0
  %1122 = vmatpush2.msra.mxu0 0.0
  %1123 = vmatprep.subr.mxu0 0.0
  %1124 = vmatpush2.msra.mxu0 0.0
  %1125 = vmatprep.subr.mxu0 0.0
  %1126 = vmatpush2.msra.mxu0 0.0
  %1127 = vmatprep.subr.mxu0 0.0
  %1128 = vmatpush2.msra.mxu0 0.0
  %1129 = vmatprep.subr.mxu0 0.0
  %1130 = vmatpush2.msra.mxu0 0.0
  %1131 = vmatprep.subr.mxu0 0.0
  %1132 = vmatpush2.msra.mxu0 0.0
  %1133 = vmatprep.subr.mxu0 0.0
  %1134 = vmatpush2.msra.mxu0 0.0
  %1135 = vmatprep.subr.mxu0 0.0
  %1136 = vmatpush2.msra.mxu0 0.0
  %1137 = vmatprep.subr.mxu0 0.0
  %1138 = vmatpush2.msra.mxu0 0.0
  %1139 = vmatprep.subr.mxu0 0.0
  %1140 = vmatpush2.msra.mxu0 0.0
  %1141 = vmatprep.subr.mxu0 0.0
  %1142 = vmatpush2.msra.mxu0 0.0
  %1143 = vmatprep.subr.mxu0 0.0
  %1144 = vmatpush2.msra.mxu0 0.0
  %1145 = vmatprep.subr.mxu0 0.0
  %1146 = vmatpush2.msra.mxu0 0.0
  %1147 = vmatprep.subr.mxu0 0.0
  %1148 = vmatpush2.msra.mxu0 0.0
  %1149 = vmatprep.subr.mxu0 0.0
  %1150 = vmatpush2.msra.mxu0 0.0
  %1151 = vmatprep.subr.mxu0 0.0
  %1152 = vmatpush2.msra.mxu0 0.0
  %1153 = vmatprep.mubr.f32.mxu0 0.0
  %1154 = vmatmul.mubr.f32.gmra.mxu0 %v809
  %v1155 = vpop.f32.mrf.mxu0
  %v1156 = vadd.f32 %v253, %v1155
  %v1157 = vpop.f32.mrf.mxu0
  %v1158 = vadd.f32 %v253, %v1157
  %1159 = vmatprep.mubr.f32.mxu0 0.0
  %1160 = vmatmul.mubr.f32.gmra.mxu0 %v812
  %v1161 = vpop.f32.mrf.mxu0
  %v1162 = vadd.f32 %v258, %v1161
  %v1163 = vpop.f32.mrf.mxu0
  %v1164 = vadd.f32 %v258, %v1163
  %1165 = vdwg.mxu0
  %s1166 = scalar_lea.vmem %s3, 128
  %1167 = vst [vmem:[%s1166] sm:$0xff] %v1156
  %1168 = vst [vmem:[%s1166 + $0x8] sm:$0xff] %v1158
  %1169 = vst [vmem:[%s1166 + $0x10] sm:$0x3] %v1162
  %1170 = vst [vmem:[%s1166 + $0x18] sm:$0x3] %v1164
  %s1171 = scalar_lea.vmem %s1, 32
  %v1172 = vld [vmem:[%s1171] sm:$0xff]
  %v1173 = vld [vmem:[%s1171 + $0x8] sm:$0x3]
  %s1174 = scalar_lea.vmem %s0, 2
  %v1175 = vld [vmem:[%s1174] ss:$8 sm:$0x7]
  %1176 = vst.msk [vmem:[#allocation2] ss:$8 sm:$0x3] %vm22, %v1175
  %1177 = vst.msk [vmem:[#allocation2] ss:$8 sm:$0x0] %vm22, %v1175
  %1179 = vrot.lane.b32.xlu0 %v1175, 127
  %v1180 = vpop.permute.xlu0 %1179
  %v1181 = vrot.slane %v1180, 1
  %v1182 = vsel %vm29, %v1180, %v1181
  %1184 = vst.msk [vmem:[%s32] ss:$8 sm:$0x3] %vm22, %v1182
  %1185 = vst.msk [vmem:[%s32] ss:$8 sm:$0x0] %vm22, %v1182
  %1186 = vrot.lane.b32.xlu0 %v1175, 126
  %v1187 = vpop.permute.xlu0 %1186
  %v1188 = vrot.slane %v1187, 1
  %v1189 = vsel %vm38, %v1187, %v1188
  %1191 = vst.msk [vmem:[%s41] ss:$8 sm:$0x3] %vm22, %v1189
  %1192 = vst.msk [vmem:[%s41] ss:$8 sm:$0x0] %vm22, %v1189
  %1193 = vrot.lane.b32.xlu0 %v1175, 125
  %v1194 = vpop.permute.xlu0 %1193
  %v1195 = vrot.slane %v1194, 1
  %v1196 = vsel %vm47, %v1194, %v1195
  %1198 = vst.msk [vmem:[%s50] ss:$8 sm:$0x3] %vm22, %v1196
  %1199 = vst.msk [vmem:[%s50] ss:$8 sm:$0x0] %vm22, %v1196
  %1200 = vrot.lane.b32.xlu0 %v1175, 124
  %v1201 = vpop.permute.xlu0 %1200
  %v1202 = vrot.slane %v1201, 1
  %v1203 = vsel %vm56, %v1201, %v1202
  %1205 = vst.msk [vmem:[%s59] ss:$8 sm:$0x3] %vm22, %v1203
  %1206 = vst.msk [vmem:[%s59] ss:$8 sm:$0x0] %vm22, %v1203
  %1207 = vrot.lane.b32.xlu0 %v1175, 112
  %v1208 = vpop.permute.xlu0 %1207
  %v1209 = vrot.slane %v1208, 1
  %v1210 = vsel %vm65, %v1208, %v1209
  %1212 = vst.msk [vmem:[%s68] ss:$8 sm:$0x3] %vm22, %v1210
  %1213 = vst.msk [vmem:[%s68] ss:$8 sm:$0x0] %vm22, %v1210
  %1214 = vrot.lane.b32.xlu0 %v1175, 111
  %v1215 = vpop.permute.xlu0 %1214
  %v1216 = vrot.slane %v1215, 1
  %v1217 = vsel %vm74, %v1215, %v1216
  %1219 = vst.msk [vmem:[%s77] ss:$8 sm:$0x3] %vm22, %v1217
  %1220 = vst.msk [vmem:[%s77] ss:$8 sm:$0x0] %vm22, %v1217
  %1221 = vrot.lane.b32.xlu0 %v1175, 110
  %v1222 = vpop.permute.xlu0 %1221
  %v1223 = vrot.slane %v1222, 1
  %v1224 = vsel %vm83, %v1222, %v1223
  %1226 = vst.msk [vmem:[%s86] ss:$8 sm:$0x3] %vm22, %v1224
  %1227 = vst.msk [vmem:[%s86] ss:$8 sm:$0x0] %vm22, %v1224
  %1228 = vrot.lane.b32.xlu0 %v1175, 109
  %v1229 = vpop.permute.xlu0 %1228
  %v1230 = vrot.slane %v1229, 1
  %v1231 = vsel %vm92, %v1229, %v1230
  %1233 = vst.msk [vmem:[%s95] ss:$8 sm:$0x3] %vm22, %v1231
  %1234 = vst.msk [vmem:[%s95] ss:$8 sm:$0x0] %vm22, %v1231
  %1235 = vrot.lane.b32.xlu0 %v1175, 108
  %v1236 = vpop.permute.xlu0 %1235
  %v1237 = vrot.slane %v1236, 1
  %v1238 = vsel %vm101, %v1236, %v1237
  %1240 = vst.msk [vmem:[%s104] ss:$8 sm:$0x3] %vm22, %v1238
  %1241 = vst.msk [vmem:[%s104] ss:$8 sm:$0x0] %vm22, %v1238
  %1242 = vrot.lane.b32.xlu0 %v1175, 96
  %v1243 = vpop.permute.xlu0 %1242
  %v1244 = vrot.slane %v1243, 1
  %v1245 = vsel %vm110, %v1243, %v1244
  %1247 = vst.msk [vmem:[%s113] ss:$8 sm:$0x3] %vm22, %v1245
  %1248 = vst.msk [vmem:[%s113] ss:$8 sm:$0x0] %vm22, %v1245
  %1249 = vrot.lane.b32.xlu0 %v1175, 95
  %v1250 = vpop.permute.xlu0 %1249
  %v1251 = vrot.slane %v1250, 1
  %v1252 = vsel %vm119, %v1250, %v1251
  %1254 = vst.msk [vmem:[%s122] ss:$8 sm:$0x3] %vm22, %v1252
  %1255 = vst.msk [vmem:[%s122] ss:$8 sm:$0x0] %vm22, %v1252
  %1256 = vrot.lane.b32.xlu0 %v1175, 94
  %v1257 = vpop.permute.xlu0 %1256
  %v1258 = vrot.slane %v1257, 1
  %v1259 = vsel %vm128, %v1257, %v1258
  %1261 = vst.msk [vmem:[%s131] ss:$8 sm:$0x3] %vm22, %v1259
  %1262 = vst.msk [vmem:[%s131] ss:$8 sm:$0x0] %vm22, %v1259
  %1263 = vrot.lane.b32.xlu0 %v1175, 93
  %v1264 = vpop.permute.xlu0 %1263
  %v1265 = vrot.slane %v1264, 1
  %v1266 = vsel %vm137, %v1264, %v1265
  %1268 = vst.msk [vmem:[%s140] ss:$8 sm:$0x3] %vm22, %v1266
  %1269 = vst.msk [vmem:[%s140] ss:$8 sm:$0x0] %vm22, %v1266
  %1270 = vrot.lane.b32.xlu0 %v1175, 92
  %v1271 = vpop.permute.xlu0 %1270
  %v1272 = vrot.slane %v1271, 1
  %v1273 = vsel %vm146, %v1271, %v1272
  %1275 = vst.msk [vmem:[%s149] ss:$8 sm:$0x3] %vm22, %v1273
  %1276 = vst.msk [vmem:[%s149] ss:$8 sm:$0x0] %vm22, %v1273
  %1277 = vrot.lane.b32.xlu0 %v1175, 80
  %v1278 = vpop.permute.xlu0 %1277
  %v1279 = vrot.slane %v1278, 1
  %v1280 = vsel %vm155, %v1278, %v1279
  %1282 = vst.msk [vmem:[%s158] ss:$8 sm:$0x3] %vm22, %v1280
  %1283 = vst.msk [vmem:[%s158] ss:$8 sm:$0x0] %vm22, %v1280
  %1284 = vrot.lane.b32.xlu0 %v1175, 79
  %v1285 = vpop.permute.xlu0 %1284
  %v1286 = vrot.slane %v1285, 1
  %v1287 = vsel %vm164, %v1285, %v1286
  %1289 = vst.msk [vmem:[%s167] ss:$8 sm:$0x3] %vm22, %v1287
  %1290 = vst.msk [vmem:[%s167] ss:$8 sm:$0x0] %vm22, %v1287
  %1291 = vrot.lane.b32.xlu0 %v1175, 78
  %v1292 = vpop.permute.xlu0 %1291
  %v1293 = vrot.slane %v1292, 1
  %v1294 = vsel %vm173, %v1292, %v1293
  %1296 = vst.msk [vmem:[%s176] ss:$8 sm:$0x3] %vm22, %v1294
  %1297 = vst.msk [vmem:[%s176] ss:$8 sm:$0x0] %vm22, %v1294
  %1298 = vrot.lane.b32.xlu0 %v1175, 77
  %v1299 = vpop.permute.xlu0 %1298
  %v1300 = vrot.slane %v1299, 1
  %v1301 = vsel %vm182, %v1299, %v1300
  %1303 = vst.msk [vmem:[%s185] ss:$8 sm:$0x3] %vm22, %v1301
  %1304 = vst.msk [vmem:[%s185] ss:$8 sm:$0x0] %vm22, %v1301
  %1305 = vrot.lane.b32.xlu0 %v1175, 76
  %v1306 = vpop.permute.xlu0 %1305
  %v1307 = vrot.slane %v1306, 1
  %v1308 = vsel %vm191, %v1306, %v1307
  %1310 = vst.msk [vmem:[%s194] ss:$8 sm:$0x3] %vm22, %v1308
  %1311 = vst.msk [vmem:[%s194] ss:$8 sm:$0x0] %vm22, %v1308
  %1312 = vrot.lane.b32.xlu0 %v1175, 64
  %v1313 = vpop.permute.xlu0 %1312
  %v1314 = vrot.slane %v1313, 1
  %v1315 = vsel %vm200, %v1313, %v1314
  %1317 = vst.msk [vmem:[%s203] ss:$8 sm:$0x3] %vm22, %v1315
  %1318 = vst.msk [vmem:[%s203] ss:$8 sm:$0x0] %vm22, %v1315
  %1319 = vrot.lane.b32.xlu0 %v1175, 63
  %v1320 = vpop.permute.xlu0 %1319
  %v1321 = vrot.slane %v1320, 1
  %v1322 = vsel %vm209, %v1320, %v1321
  %1324 = vst.msk [vmem:[%s212] ss:$8 sm:$0x3] %vm22, %v1322
  %1325 = vst.msk [vmem:[%s212] ss:$8 sm:$0x0] %vm22, %v1322
  %1326 = vrot.lane.b32.xlu0 %v1175, 62
  %v1327 = vpop.permute.xlu0 %1326
  %v1328 = vrot.slane %v1327, 1
  %v1329 = vsel %vm218, %v1327, %v1328
  %1331 = vst.msk [vmem:[%s221] ss:$8 sm:$0x3] %vm22, %v1329
  %1332 = vst.msk [vmem:[%s221] ss:$8 sm:$0x0] %vm22, %v1329
  %1333 = vrot.lane.b32.xlu0 %v1175, 61
  %v1334 = vpop.permute.xlu0 %1333
  %v1335 = vrot.slane %v1334, 1
  %v1336 = vsel %vm227, %v1334, %v1335
  %1338 = vst.msk [vmem:[%s230] ss:$8 sm:$0x3] %vm22, %v1336
  %1339 = vst.msk [vmem:[%s230] ss:$8 sm:$0x0] %vm22, %v1336
  %1340 = vrot.lane.b32.xlu0 %v1175, 60
  %v1341 = vpop.permute.xlu0 %1340
  %v1342 = vrot.slane %v1341, 1
  %v1343 = vsel %vm236, %v1341, %v1342
  %1345 = vst.msk [vmem:[%s239] ss:$8 sm:$0x3] %vm22, %v1343
  %1346 = vst.msk [vmem:[%s239] ss:$8 sm:$0x0] %vm22, %v1343
  %v1347 = vld [vmem:[#allocation2] sm:$0xff]
  %v1348 = vld [vmem:[#allocation2 + $0x8] sm:$0xff]
  %v1349 = vld [vmem:[#allocation2 + $0x10] sm:$0xff]
  %v1350 = vld [vmem:[#allocation2 + $0x18] sm:$0xff]
  %v1351 = vld [vmem:[#allocation2 + $0x20] sm:$0xff]
  %v1352 = vld [vmem:[#allocation2 + $0x28] sm:$0xff]
  %v1353 = vld [vmem:[#allocation2 + $0x30] sm:$0x1]
  %v1354 = vld [vmem:[#allocation2 + $0x38] sm:$0x1]
  %v1356 = vsel %vm260, %v1172, 0
  %v1359 = vsel %vm260, %v1173, 0
  %v1362 = vsel %vm267, %v1353, 0
  %v1365 = vsel %vm267, %v1354, 0
  %1367 = vmatprep.subr.mxu0 0.0
  %1368 = vmatpush1.msra.mxu0 0.0
  %1369 = vmatprep.subr.mxu0 0.0
  %1370 = vmatpush1.msra.mxu0 0.0
  %1371 = vmatprep.subr.mxu0 0.0
  %1372 = vmatpush1.msra.mxu0 0.0
  %1373 = vmatprep.subr.mxu0 0.0
  %1374 = vmatpush1.msra.mxu0 0.0
  %1375 = vmatprep.subr.mxu0 0.0
  %1376 = vmatpush1.msra.mxu0 0.0
  %1377 = vmatprep.subr.mxu0 0.0
  %1378 = vmatpush1.msra.mxu0 0.0
  %1379 = vmatprep.subr.mxu0 0.0
  %1380 = vmatpush1.msra.mxu0 0.0
  %1381 = vmatprep.subr.mxu0 0.0
  %1382 = vmatpush1.msra.mxu0 0.0
  %1383 = vmatprep.subr.mxu0 0.0
  %1384 = vmatpush1.msra.mxu0 0.0
  %1385 = vmatprep.subr.mxu0 0.0
  %1386 = vmatpush1.msra.mxu0 0.0
  %1387 = vmatprep.subr.mxu0 0.0
  %1388 = vmatpush1.msra.mxu0 0.0
  %1389 = vmatprep.subr.mxu0 0.0
  %1390 = vmatpush1.msra.mxu0 0.0
  %1391 = vmatprep.subr.mxu0 %v1365
  %1392 = vmatpush1.msra.mxu0 %v1362
  %1393 = vmatprep.subr.mxu0 %v1352
  %1394 = vmatpush1.msra.mxu0 %v1351
  %1395 = vmatprep.subr.mxu0 %v1350
  %1396 = vmatpush1.msra.mxu0 %v1349
  %1397 = vmatprep.subr.mxu0 %v1348
  %1398 = vmatpush1.msra.mxu0 %v1347
  %1399 = vmatprep.subr.mxu0 0.0
  %1400 = vmatpush2.msra.mxu0 0.0
  %1401 = vmatprep.subr.mxu0 0.0
  %1402 = vmatpush2.msra.mxu0 0.0
  %1403 = vmatprep.subr.mxu0 0.0
  %1404 = vmatpush2.msra.mxu0 0.0
  %1405 = vmatprep.subr.mxu0 0.0
  %1406 = vmatpush2.msra.mxu0 0.0
  %1407 = vmatprep.subr.mxu0 0.0
  %1408 = vmatpush2.msra.mxu0 0.0
  %1409 = vmatprep.subr.mxu0 0.0
  %1410 = vmatpush2.msra.mxu0 0.0
  %1411 = vmatprep.subr.mxu0 0.0
  %1412 = vmatpush2.msra.mxu0 0.0
  %1413 = vmatprep.subr.mxu0 0.0
  %1414 = vmatpush2.msra.mxu0 0.0
  %1415 = vmatprep.subr.mxu0 0.0
  %1416 = vmatpush2.msra.mxu0 0.0
  %1417 = vmatprep.subr.mxu0 0.0
  %1418 = vmatpush2.msra.mxu0 0.0
  %1419 = vmatprep.subr.mxu0 0.0
  %1420 = vmatpush2.msra.mxu0 0.0
  %1421 = vmatprep.subr.mxu0 0.0
  %1422 = vmatpush2.msra.mxu0 0.0
  %1423 = vmatprep.subr.mxu0 0.0
  %1424 = vmatpush2.msra.mxu0 0.0
  %1425 = vmatprep.subr.mxu0 0.0
  %1426 = vmatpush2.msra.mxu0 0.0
  %1427 = vmatprep.subr.mxu0 0.0
  %1428 = vmatpush2.msra.mxu0 0.0
  %1429 = vmatprep.subr.mxu0 0.0
  %1430 = vmatpush2.msra.mxu0 0.0
  %1431 = vmatprep.mubr.f32.mxu0 0.0
  %1432 = vmatmul.mubr.f32.gmra.mxu0 %v1356
  %v1433 = vpop.f32.mrf.mxu0
  %v1434 = vadd.f32 %v253, %v1433
  %v1435 = vpop.f32.mrf.mxu0
  %v1436 = vadd.f32 %v253, %v1435
  %1437 = vmatprep.mubr.f32.mxu0 0.0
  %1438 = vmatmul.mubr.f32.gmra.mxu0 %v1359
  %v1439 = vpop.f32.mrf.mxu0
  %v1440 = vadd.f32 %v258, %v1439
  %v1441 = vpop.f32.mrf.mxu0
  %v1442 = vadd.f32 %v258, %v1441
  %1443 = vdwg.mxu0
  %s1444 = scalar_lea.vmem %s3, 64
  %1445 = vst [vmem:[%s1444] sm:$0xff] %v1434
  %1446 = vst [vmem:[%s1444 + $0x8] sm:$0xff] %v1436
  %1447 = vst [vmem:[%s1444 + $0x10] sm:$0x3] %v1440
  %1448 = vst [vmem:[%s1444 + $0x18] sm:$0x3] %v1442
  %s1449 = scalar_lea.vmem %s0, 5
  %v1450 = vld [vmem:[%s1449] ss:$8 sm:$0x7]
  %1451 = vst.msk [vmem:[#allocation2] ss:$8 sm:$0x3] %vm22, %v1450
  %1452 = vst.msk [vmem:[#allocation2] ss:$8 sm:$0x0] %vm22, %v1450
  %1454 = vrot.lane.b32.xlu0 %v1450, 127
  %v1455 = vpop.permute.xlu0 %1454
  %v1456 = vrot.slane %v1455, 1
  %v1457 = vsel %vm29, %v1455, %v1456
  %1459 = vst.msk [vmem:[%s32] ss:$8 sm:$0x3] %vm22, %v1457
  %1460 = vst.msk [vmem:[%s32] ss:$8 sm:$0x0] %vm22, %v1457
  %1461 = vrot.lane.b32.xlu0 %v1450, 126
  %v1462 = vpop.permute.xlu0 %1461
  %v1463 = vrot.slane %v1462, 1
  %v1464 = vsel %vm38, %v1462, %v1463
  %1466 = vst.msk [vmem:[%s41] ss:$8 sm:$0x3] %vm22, %v1464
  %1467 = vst.msk [vmem:[%s41] ss:$8 sm:$0x0] %vm22, %v1464
  %1468 = vrot.lane.b32.xlu0 %v1450, 125
  %v1469 = vpop.permute.xlu0 %1468
  %v1470 = vrot.slane %v1469, 1
  %v1471 = vsel %vm47, %v1469, %v1470
  %1473 = vst.msk [vmem:[%s50] ss:$8 sm:$0x3] %vm22, %v1471
  %1474 = vst.msk [vmem:[%s50] ss:$8 sm:$0x0] %vm22, %v1471
  %1475 = vrot.lane.b32.xlu0 %v1450, 124
  %v1476 = vpop.permute.xlu0 %1475
  %v1477 = vrot.slane %v1476, 1
  %v1478 = vsel %vm56, %v1476, %v1477
  %1480 = vst.msk [vmem:[%s59] ss:$8 sm:$0x3] %vm22, %v1478
  %1481 = vst.msk [vmem:[%s59] ss:$8 sm:$0x0] %vm22, %v1478
  %1482 = vrot.lane.b32.xlu0 %v1450, 112
  %v1483 = vpop.permute.xlu0 %1482
  %v1484 = vrot.slane %v1483, 1
  %v1485 = vsel %vm65, %v1483, %v1484
  %1487 = vst.msk [vmem:[%s68] ss:$8 sm:$0x3] %vm22, %v1485
  %1488 = vst.msk [vmem:[%s68] ss:$8 sm:$0x0] %vm22, %v1485
  %1489 = vrot.lane.b32.xlu0 %v1450, 111
  %v1490 = vpop.permute.xlu0 %1489
  %v1491 = vrot.slane %v1490, 1
  %v1492 = vsel %vm74, %v1490, %v1491
  %1494 = vst.msk [vmem:[%s77] ss:$8 sm:$0x3] %vm22, %v1492
  %1495 = vst.msk [vmem:[%s77] ss:$8 sm:$0x0] %vm22, %v1492
  %1496 = vrot.lane.b32.xlu0 %v1450, 110
  %v1497 = vpop.permute.xlu0 %1496
  %v1498 = vrot.slane %v1497, 1
  %v1499 = vsel %vm83, %v1497, %v1498
  %1501 = vst.msk [vmem:[%s86] ss:$8 sm:$0x3] %vm22, %v1499
  %1502 = vst.msk [vmem:[%s86] ss:$8 sm:$0x0] %vm22, %v1499
  %1503 = vrot.lane.b32.xlu0 %v1450, 109
  %v1504 = vpop.permute.xlu0 %1503
  %v1505 = vrot.slane %v1504, 1
  %v1506 = vsel %vm92, %v1504, %v1505
  %1508 = vst.msk [vmem:[%s95] ss:$8 sm:$0x3] %vm22, %v1506
  %1509 = vst.msk [vmem:[%s95] ss:$8 sm:$0x0] %vm22, %v1506
  %1510 = vrot.lane.b32.xlu0 %v1450, 108
  %v1511 = vpop.permute.xlu0 %1510
  %v1512 = vrot.slane %v1511, 1
  %v1513 = vsel %vm101, %v1511, %v1512
  %1515 = vst.msk [vmem:[%s104] ss:$8 sm:$0x3] %vm22, %v1513
  %1516 = vst.msk [vmem:[%s104] ss:$8 sm:$0x0] %vm22, %v1513
  %1517 = vrot.lane.b32.xlu0 %v1450, 96
  %v1518 = vpop.permute.xlu0 %1517
  %v1519 = vrot.slane %v1518, 1
  %v1520 = vsel %vm110, %v1518, %v1519
  %1522 = vst.msk [vmem:[%s113] ss:$8 sm:$0x3] %vm22, %v1520
  %1523 = vst.msk [vmem:[%s113] ss:$8 sm:$0x0] %vm22, %v1520
  %1524 = vrot.lane.b32.xlu0 %v1450, 95
  %v1525 = vpop.permute.xlu0 %1524
  %v1526 = vrot.slane %v1525, 1
  %v1527 = vsel %vm119, %v1525, %v1526
  %1529 = vst.msk [vmem:[%s122] ss:$8 sm:$0x3] %vm22, %v1527
  %1530 = vst.msk [vmem:[%s122] ss:$8 sm:$0x0] %vm22, %v1527
  %1531 = vrot.lane.b32.xlu0 %v1450, 94
  %v1532 = vpop.permute.xlu0 %1531
  %v1533 = vrot.slane %v1532, 1
  %v1534 = vsel %vm128, %v1532, %v1533
  %1536 = vst.msk [vmem:[%s131] ss:$8 sm:$0x3] %vm22, %v1534
  %1537 = vst.msk [vmem:[%s131] ss:$8 sm:$0x0] %vm22, %v1534
  %1538 = vrot.lane.b32.xlu0 %v1450, 93
  %v1539 = vpop.permute.xlu0 %1538
  %v1540 = vrot.slane %v1539, 1
  %v1541 = vsel %vm137, %v1539, %v1540
  %1543 = vst.msk [vmem:[%s140] ss:$8 sm:$0x3] %vm22, %v1541
  %1544 = vst.msk [vmem:[%s140] ss:$8 sm:$0x0] %vm22, %v1541
  %1545 = vrot.lane.b32.xlu0 %v1450, 92
  %v1546 = vpop.permute.xlu0 %1545
  %v1547 = vrot.slane %v1546, 1
  %v1548 = vsel %vm146, %v1546, %v1547
  %1550 = vst.msk [vmem:[%s149] ss:$8 sm:$0x3] %vm22, %v1548
  %1551 = vst.msk [vmem:[%s149] ss:$8 sm:$0x0] %vm22, %v1548
  %1552 = vrot.lane.b32.xlu0 %v1450, 80
  %v1553 = vpop.permute.xlu0 %1552
  %v1554 = vrot.slane %v1553, 1
  %v1555 = vsel %vm155, %v1553, %v1554
  %1557 = vst.msk [vmem:[%s158] ss:$8 sm:$0x3] %vm22, %v1555
  %1558 = vst.msk [vmem:[%s158] ss:$8 sm:$0x0] %vm22, %v1555
  %1559 = vrot.lane.b32.xlu0 %v1450, 79
  %v1560 = vpop.permute.xlu0 %1559
  %v1561 = vrot.slane %v1560, 1
  %v1562 = vsel %vm164, %v1560, %v1561
  %1564 = vst.msk [vmem:[%s167] ss:$8 sm:$0x3] %vm22, %v1562
  %1565 = vst.msk [vmem:[%s167] ss:$8 sm:$0x0] %vm22, %v1562
  %1566 = vrot.lane.b32.xlu0 %v1450, 78
  %v1567 = vpop.permute.xlu0 %1566
  %v1568 = vrot.slane %v1567, 1
  %v1569 = vsel %vm173, %v1567, %v1568
  %1571 = vst.msk [vmem:[%s176] ss:$8 sm:$0x3] %vm22, %v1569
  %1572 = vst.msk [vmem:[%s176] ss:$8 sm:$0x0] %vm22, %v1569
  %1573 = vrot.lane.b32.xlu0 %v1450, 77
  %v1574 = vpop.permute.xlu0 %1573
  %v1575 = vrot.slane %v1574, 1
  %v1576 = vsel %vm182, %v1574, %v1575
  %1578 = vst.msk [vmem:[%s185] ss:$8 sm:$0x3] %vm22, %v1576
  %1579 = vst.msk [vmem:[%s185] ss:$8 sm:$0x0] %vm22, %v1576
  %1580 = vrot.lane.b32.xlu0 %v1450, 76
  %v1581 = vpop.permute.xlu0 %1580
  %v1582 = vrot.slane %v1581, 1
  %v1583 = vsel %vm191, %v1581, %v1582
  %1585 = vst.msk [vmem:[%s194] ss:$8 sm:$0x3] %vm22, %v1583
  %1586 = vst.msk [vmem:[%s194] ss:$8 sm:$0x0] %vm22, %v1583
  %1587 = vrot.lane.b32.xlu0 %v1450, 64
  %v1588 = vpop.permute.xlu0 %1587
  %v1589 = vrot.slane %v1588, 1
  %v1590 = vsel %vm200, %v1588, %v1589
  %1592 = vst.msk [vmem:[%s203] ss:$8 sm:$0x3] %vm22, %v1590
  %1593 = vst.msk [vmem:[%s203] ss:$8 sm:$0x0] %vm22, %v1590
  %1594 = vrot.lane.b32.xlu0 %v1450, 63
  %v1595 = vpop.permute.xlu0 %1594
  %v1596 = vrot.slane %v1595, 1
  %v1597 = vsel %vm209, %v1595, %v1596
  %1599 = vst.msk [vmem:[%s212] ss:$8 sm:$0x3] %vm22, %v1597
  %1600 = vst.msk [vmem:[%s212] ss:$8 sm:$0x0] %vm22, %v1597
  %1601 = vrot.lane.b32.xlu0 %v1450, 62
  %v1602 = vpop.permute.xlu0 %1601
  %v1603 = vrot.slane %v1602, 1
  %v1604 = vsel %vm218, %v1602, %v1603
  %1606 = vst.msk [vmem:[%s221] ss:$8 sm:$0x3] %vm22, %v1604
  %1607 = vst.msk [vmem:[%s221] ss:$8 sm:$0x0] %vm22, %v1604
  %1608 = vrot.lane.b32.xlu0 %v1450, 61
  %v1609 = vpop.permute.xlu0 %1608
  %v1610 = vrot.slane %v1609, 1
  %v1611 = vsel %vm227, %v1609, %v1610
  %1613 = vst.msk [vmem:[%s230] ss:$8 sm:$0x3] %vm22, %v1611
  %1614 = vst.msk [vmem:[%s230] ss:$8 sm:$0x0] %vm22, %v1611
  %1615 = vrot.lane.b32.xlu0 %v1450, 60
  %v1616 = vpop.permute.xlu0 %1615
  %v1617 = vrot.slane %v1616, 1
  %v1618 = vsel %vm236, %v1616, %v1617
  %1620 = vst.msk [vmem:[%s239] ss:$8 sm:$0x3] %vm22, %v1618
  %1621 = vst.msk [vmem:[%s239] ss:$8 sm:$0x0] %vm22, %v1618
  %v1622 = vld [vmem:[#allocation2] sm:$0xff]
  %v1623 = vld [vmem:[#allocation2 + $0x8] sm:$0xff]
  %v1624 = vld [vmem:[#allocation2 + $0x10] sm:$0xff]
  %v1625 = vld [vmem:[#allocation2 + $0x18] sm:$0xff]
  %v1626 = vld [vmem:[#allocation2 + $0x20] sm:$0xff]
  %v1627 = vld [vmem:[#allocation2 + $0x28] sm:$0xff]
  %v1628 = vld [vmem:[#allocation2 + $0x30] sm:$0x1]
  %v1629 = vld [vmem:[#allocation2 + $0x38] sm:$0x1]
  %v1631 = vsel %vm267, %v1628, 0
  %v1634 = vsel %vm267, %v1629, 0
  %1636 = vmatprep.subr.mxu0 0.0
  %1637 = vmatpush1.msra.mxu0 0.0
  %1638 = vmatprep.subr.mxu0 0.0
  %1639 = vmatpush1.msra.mxu0 0.0
  %1640 = vmatprep.subr.mxu0 0.0
  %1641 = vmatpush1.msra.mxu0 0.0
  %1642 = vmatprep.subr.mxu0 0.0
  %1643 = vmatpush1.msra.mxu0 0.0
  %1644 = vmatprep.subr.mxu0 0.0
  %1645 = vmatpush1.msra.mxu0 0.0
  %1646 = vmatprep.subr.mxu0 0.0
  %1647 = vmatpush1.msra.mxu0 0.0
  %1648 = vmatprep.subr.mxu0 0.0
  %1649 = vmatpush1.msra.mxu0 0.0
  %1650 = vmatprep.subr.mxu0 0.0
  %1651 = vmatpush1.msra.mxu0 0.0
  %1652 = vmatprep.subr.mxu0 0.0
  %1653 = vmatpush1.msra.mxu0 0.0
  %1654 = vmatprep.subr.mxu0 0.0
  %1655 = vmatpush1.msra.mxu0 0.0
  %1656 = vmatprep.subr.mxu0 0.0
  %1657 = vmatpush1.msra.mxu0 0.0
  %1658 = vmatprep.subr.mxu0 0.0
  %1659 = vmatpush1.msra.mxu0 0.0
  %1660 = vmatprep.subr.mxu0 %v1634
  %1661 = vmatpush1.msra.mxu0 %v1631
  %1662 = vmatprep.subr.mxu0 %v1627
  %1663 = vmatpush1.msra.mxu0 %v1626
  %1664 = vmatprep.subr.mxu0 %v1625
  %1665 = vmatpush1.msra.mxu0 %v1624
  %1666 = vmatprep.subr.mxu0 %v1623
  %1667 = vmatpush1.msra.mxu0 %v1622
  %1668 = vmatprep.subr.mxu0 0.0
  %1669 = vmatpush2.msra.mxu0 0.0
  %1670 = vmatprep.subr.mxu0 0.0
  %1671 = vmatpush2.msra.mxu0 0.0
  %1672 = vmatprep.subr.mxu0 0.0
  %1673 = vmatpush2.msra.mxu0 0.0
  %1674 = vmatprep.subr.mxu0 0.0
  %1675 = vmatpush2.msra.mxu0 0.0
  %1676 = vmatprep.subr.mxu0 0.0
  %1677 = vmatpush2.msra.mxu0 0.0
  %1678 = vmatprep.subr.mxu0 0.0
  %1679 = vmatpush2.msra.mxu0 0.0
  %1680 = vmatprep.subr.mxu0 0.0
  %1681 = vmatpush2.msra.mxu0 0.0
  %1682 = vmatprep.subr.mxu0 0.0
  %1683 = vmatpush2.msra.mxu0 0.0
  %1684 = vmatprep.subr.mxu0 0.0
  %1685 = vmatpush2.msra.mxu0 0.0
  %1686 = vmatprep.subr.mxu0 0.0
  %1687 = vmatpush2.msra.mxu0 0.0
  %1688 = vmatprep.subr.mxu0 0.0
  %1689 = vmatpush2.msra.mxu0 0.0
  %1690 = vmatprep.subr.mxu0 0.0
  %1691 = vmatpush2.msra.mxu0 0.0
  %1692 = vmatprep.subr.mxu0 0.0
  %1693 = vmatpush2.msra.mxu0 0.0
  %1694 = vmatprep.subr.mxu0 0.0
  %1695 = vmatpush2.msra.mxu0 0.0
  %1696 = vmatprep.subr.mxu0 0.0
  %1697 = vmatpush2.msra.mxu0 0.0
  %1698 = vmatprep.subr.mxu0 0.0
  %1699 = vmatpush2.msra.mxu0 0.0
  %1700 = vmatprep.mubr.f32.mxu0 0.0
  %1701 = vmatmul.mubr.f32.gmra.mxu0 %v1356
  %v1702 = vpop.f32.mrf.mxu0
  %v1703 = vadd.f32 %v253, %v1702
  %v1704 = vpop.f32.mrf.mxu0
  %v1705 = vadd.f32 %v253, %v1704
  %1706 = vmatprep.mubr.f32.mxu0 0.0
  %1707 = vmatmul.mubr.f32.gmra.mxu0 %v1359
  %v1708 = vpop.f32.mrf.mxu0
  %v1709 = vadd.f32 %v258, %v1708
  %v1710 = vpop.f32.mrf.mxu0
  %v1711 = vadd.f32 %v258, %v1710
  %1712 = vdwg.mxu0
  %s1713 = scalar_lea.vmem %s3, 160
  %1714 = vst [vmem:[%s1713] sm:$0xff] %v1703
  %1715 = vst [vmem:[%s1713 + $0x8] sm:$0xff] %v1705
  %1716 = vst [vmem:[%s1713 + $0x10] sm:$0x3] %v1709
  %1717 = vst [vmem:[%s1713 + $0x18] sm:$0x3] %v1711
  // Predicated region
  $region14: #{tpu_custom_call.1} parent=0 // pred_check
    _
  $region15: #{tpu_custom_call.1} parent=0 // pred_check_branch
    %1719 = sbr.rel (0) target = $region17
  $region16: #{tpu_custom_call.1} parent=0 // pred_region
    _
  $region17: #{tpu_custom_call.1} parent=0 // pred_fallthru
    _
  // Predicated region
  $region18: #{tpu_custom_call.1} parent=0 // pred_check
    _
  $region19: #{tpu_custom_call.1} parent=0 // pred_check_branch
    %1721 = sbr.rel (0) target = $region21
  $region20: #{tpu_custom_call.1} parent=0 // pred_region
    _
  $region21: #{tpu_custom_call.1} parent=0 // pred_fallthru
    _

</llo_original>
